<compile_context>
chip_gen: v7x
topology: tpu7x:2x2x1
jax: 0.10.0
libtpu: 0.0.40
codegen_flags: <defaults>
</compile_context>

<pallas_src>
import functools

import jax
import jax.numpy as jnp
from jax.experimental import pallas as pl
from jax.experimental.pallas import tpu as pltpu


# ----------------------------- kernel helpers ------------------------------

def _layernorm(x, gamma, beta, eps=1e-5):
    # torch.nn.LayerNorm semantics: biased variance over the last axis, eps=1e-5
    mu = jnp.mean(x, axis=-1, keepdims=True)
    var = jnp.mean((x - mu) ** 2, axis=-1, keepdims=True)
    return (x - mu) * jax.lax.rsqrt(var + eps) * gamma + beta


def _gelu_exact(x):
    # torch.nn.GELU default ('none' approximation) -> erf form
    return 0.5 * x * (1.0 + jax.lax.erf(x * 0.7071067811865476))


# --------------------------------- kernel ----------------------------------

def vit_block_kernel(x_q_ref, x_full_ref,
                     ln1_g_ref, ln1_b_ref,
                     wq_ref, bq_ref, wk_ref, bk_ref, wv_ref, bv_ref,
                     wo_ref, bo_ref,
                     ln2_g_ref, ln2_b_ref,
                     w1_ref, b1_ref, w2_ref, b2_ref,
                     out_ref,
                     k_scr, v_scr,
                     *, num_heads, approx_recip):
    qi = pl.program_id(1)
    cdt = wq_ref.dtype                      # MXU operand dtype (bf16 or f32)
    d_k = k_scr.shape[-1]
    scale = 1.0 / float(d_k) ** 0.5

    # ---- once per batch element: LN1 over full sequence + per-head K/V ----
    @pl.when(qi == 0)
    def _():
        xf = x_full_ref[...]                                    # (S, D), f32
        xnf = _layernorm(xf, ln1_g_ref[...], ln1_b_ref[...]).astype(cdt)
        for h in range(num_heads):                              # static unroll
            k_scr[h] = (jnp.dot(xnf, wk_ref[h], preferred_element_type=jnp.float32)
                        + bk_ref[h]).astype(cdt)                # (S, d_k)
            v_scr[h] = (jnp.dot(xnf, wv_ref[h], preferred_element_type=jnp.float32)
                        + bv_ref[h]).astype(cdt)

    # ---- per q-row tile ----
    xq = x_q_ref[...]                                           # (tq, D), f32
    xn = _layernorm(xq, ln1_g_ref[...], ln1_b_ref[...]).astype(cdt)

    attn = jnp.zeros(xq.shape, jnp.float32)                     # (tq, D) accumulator
    for h in range(num_heads):                                  # static unroll
        # q projection for this head; 1/sqrt(d_k) folded into q (small tensor)
        qh = ((jnp.dot(xn, wq_ref[h], preferred_element_type=jnp.float32)
               + bq_ref[h]) * scale).astype(cdt)                # (tq, d_k)
        kh = k_scr[h]                                           # (S, d_k)
        vh = v_scr[h]                                           # (S, d_k)

        # QK^T without materializing kh.T: contract over d_k on both operands
        s = jax.lax.dot_general(qh, kh,
                                dimension_numbers=(((1,), (1,)), ((), ())),
                                preferred_element_type=jnp.float32)   # (tq, S)
        s = s - jnp.max(s, axis=-1, keepdims=True)
        p = jnp.exp(s)
        inv = pl.reciprocal(jnp.sum(p, axis=-1, keepdims=True), approx=approx_recip)
        p = (p * inv).astype(cdt)

        oh = jnp.dot(p, vh, preferred_element_type=jnp.float32).astype(cdt)  # (tq, d_k)
        # output projection: accumulate per-head contribution (no concatenate)
        attn = attn + jnp.dot(oh, wo_ref[h], preferred_element_type=jnp.float32)

    res1 = xq + attn + bo_ref[...]                              # f32 residual

    # ---- LayerNorm 2 + MLP (Linear -> GELU -> Linear) ----
    xn2 = _layernorm(res1, ln2_g_ref[...], ln2_b_ref[...]).astype(cdt)
    h1 = jnp.dot(xn2, w1_ref[...], preferred_element_type=jnp.float32) + b1_ref[...]
    h1 = _gelu_exact(h1).astype(cdt)
    mlp = jnp.dot(h1, w2_ref[...], preferred_element_type=jnp.float32) + b2_ref[...]

    out_ref[...] = (res1 + mlp).astype(out_ref.dtype)


# -------------------------------- wrapper -----------------------------------

PARAM_ORDER = ["ln1_g", "ln1_b",
               "wq", "bq", "wk", "bk", "wv", "bv", "wo", "bo",
               "ln2_g", "ln2_b",
               "w1", "b1", "w2", "b2"]


def _pick_q_tile(S, target=128):
    if S <= target:
        return S
    best = None
    for t in range(8, min(target, S) + 1, 8):   # multiple of 8 (sublane rule)
        if S % t == 0:
            best = t
    return best if best is not None else S


def _prep_params(params, num_heads, compute_dtype):
    """Split attention weights per head on the host (no in-kernel relayout)."""
    D = params["wq"].shape[0]
    d_k = D // num_heads

    def heads_out(w):   # (D, D) (in,out) -> (H, D, d_k): output columns per head
        return jnp.transpose(w.reshape(D, num_heads, d_k), (1, 0, 2)).astype(compute_dtype)

    def heads_bias(b):  # (1, D) -> (H, 1, d_k)
        return b.reshape(num_heads, d_k)[:, None, :]

    def heads_in(w):    # (D, D) (in,out) -> (H, d_k, D): input rows per head
        return w.reshape(num_heads, d_k, D).astype(compute_dtype)

    p = dict(params)
    p["wq"], p["bq"] = heads_out(params["wq"]), heads_bias(params["bq"])
    p["wk"], p["bk"] = heads_out(params["wk"]), heads_bias(params["bk"])
    p["wv"], p["bv"] = heads_out(params["wv"]), heads_bias(params["bv"])
    p["wo"] = heads_in(params["wo"])
    p["w1"] = params["w1"].astype(compute_dtype)
    p["w2"] = params["w2"].astype(compute_dtype)
    return [p[k] for k in PARAM_ORDER]


def _const_index_map(ndim):
    if ndim == 2:
        return lambda b, qi: (0, 0)
    return lambda b, qi: (0, 0, 0)


def vit_block(x, params, num_heads, *, compute_dtype=jnp.bfloat16, q_tile=128):
    B, S, D = x.shape
    d_k = D // num_heads
    tq = _pick_q_tile(S, q_tile)
    n_qt = S // tq

    args = _prep_params(params, num_heads, compute_dtype)

    in_specs = [
        pl.BlockSpec((None, tq, D), lambda b, qi: (b, qi, 0)),   # x: q-row tile
        pl.BlockSpec((None, S, D), lambda b, qi: (b, 0, 0)),     # x: full sequence (K/V)
    ] + [pl.BlockSpec(a.shape, _const_index_map(a.ndim)) for a in args]
    out_spec = pl.BlockSpec((None, tq, D), lambda b, qi: (b, qi, 0))

    approx_recip = bool(jnp.dtype(compute_dtype) != jnp.dtype(jnp.float32))
    kernel = functools.partial(vit_block_kernel,
                               num_heads=num_heads,
                               approx_recip=approx_recip)

    return pl.pallas_call(
        kernel,
        out_shape=jax.ShapeDtypeStruct((B, S, D), x.dtype),
        grid=(B, n_qt),
        in_specs=in_specs,
        out_specs=out_spec,
        scratch_shapes=[pltpu.VMEM((num_heads, S, d_k), compute_dtype),   # K per head
                        pltpu.VMEM((num_heads, S, d_k), compute_dtype)],  # V per head
        compiler_params=pltpu.CompilerParams(
            dimension_semantics=("parallel", "arbitrary"),
            vmem_limit_bytes=64 * 1024 * 1024),
    )(x, x, *args)


# --------------------------- pure-JAX reference ------------------------------

def vit_block_ref(x, p, num_heads):
    def ln(y, g, b):
        mu = y.mean(-1, keepdims=True)
        var = ((y - mu) ** 2).mean(-1, keepdims=True)
        return (y - mu) / jnp.sqrt(var + 1e-5) * g + b

    B, S, D = x.shape
    dk = D // num_heads
    xn = ln(x, p["ln1_g"], p["ln1_b"])
    q = xn @ p["wq"] + p["bq"]
    k = xn @ p["wk"] + p["bk"]
    v = xn @ p["wv"] + p["bv"]
    qh = q.reshape(B, S, num_heads, dk).transpose(0, 2, 1, 3)
    kh = k.reshape(B, S, num_heads, dk).transpose(0, 2, 1, 3)
    vh = v.reshape(B, S, num_heads, dk).transpose(0, 2, 1, 3)
    s = jnp.einsum("bhqd,bhkd->bhqk", qh, kh) / jnp.sqrt(float(dk))
    pr = jax.nn.softmax(s, axis=-1)
    o = jnp.einsum("bhqk,bhkd->bhqd", pr, vh).transpose(0, 2, 1, 3).reshape(B, S, D)
    res1 = x + o @ p["wo"] + p["bo"]
    xn2 = ln(res1, p["ln2_g"], p["ln2_b"])
    h = jax.nn.gelu(xn2 @ p["w1"] + p["b1"], approximate=False)
    return res1 + h @ p["w2"] + p["b2"]


# ---------------------------------- main -------------------------------------

def make_params(key, hidden_d, mlp_ratio):
    d_mlp = mlp_ratio * hidden_d
    ks = jax.random.split(key, 12)
    norm = lambda k, shape: (0.05 * jax.random.normal(k, shape)).astype(jnp.float32)
    return {
        "ln1_g": jnp.ones((1, hidden_d), jnp.float32),
        "ln1_b": jnp.zeros((1, hidden_d), jnp.float32),
        "wq": norm(ks[0], (hidden_d, hidden_d)), "bq": norm(ks[1], (1, hidden_d)),
        "wk": norm(ks[2], (hidden_d, hidden_d)), "bk": norm(ks[3], (1, hidden_d)),
        "wv": norm(ks[4], (hidden_d, hidden_d)), "bv": norm(ks[5], (1, hidden_d)),
        "wo": norm(ks[6], (hidden_d, hidden_d)), "bo": norm(ks[7], (1, hidden_d)),
        "ln2_g": jnp.ones((1, hidden_d), jnp.float32),
        "ln2_b": jnp.zeros((1, hidden_d), jnp.float32),
        "w1": norm(ks[8], (hidden_d, d_mlp)), "b1": norm(ks[9], (1, d_mlp)),
        "w2": norm(ks[10], (d_mlp, hidden_d)), "b2": norm(ks[11], (1, hidden_d)),
    }


if __name__ == "__main__":
    B, S, hidden_d, n_heads, mlp_ratio = 2, 8, 32, 4, 4

    key = jax.random.PRNGKey(0)
    kx, kp = jax.random.split(key)
    x = jax.random.normal(kx, (B, S, hidden_d), dtype=jnp.float32)
    params = make_params(kp, hidden_d, mlp_ratio)

    ref = vit_block_ref(x, params, n_heads)

    # Exact path: f32 MXU operands -> matches PyTorch-equivalent reference tightly.
    out_f32 = jax.block_until_ready(
        vit_block(x, params, n_heads, compute_dtype=jnp.float32))
    assert out_f32.shape == (B, S, hidden_d)
    assert jnp.allclose(out_f32, ref, atol=1e-4, rtol=1e-4), "f32 path mismatch"

    # Performance path: bf16 MXU operands (f32 accumulation), looser tolerance.
    out_bf16 = jax.block_until_ready(
        vit_block(x, params, n_heads, compute_dtype=jnp.bfloat16))
    assert out_bf16.shape == (B, S, hidden_d)
    assert jnp.allclose(out_bf16, ref, atol=3e-2, rtol=3e-2), "bf16 path mismatch"

    print("KERNEL_OK")
</pallas_src>

<mosaic_0001>
module attributes {stable_mosaic.version = 11 : i64} {
  func.func @vit_block_kernel(%arg0: i32, %arg1: i32, %arg2: memref<1x8x32xf32, #tpu.memory_space<vmem>>, %arg3: memref<1x8x32xf32, #tpu.memory_space<vmem>>, %arg4: memref<1x32xf32, #tpu.memory_space<vmem>>, %arg5: memref<1x32xf32, #tpu.memory_space<vmem>>, %arg6: memref<4x32x8xf32, #tpu.memory_space<vmem>>, %arg7: memref<4x1x8xf32, #tpu.memory_space<vmem>>, %arg8: memref<4x32x8xf32, #tpu.memory_space<vmem>>, %arg9: memref<4x1x8xf32, #tpu.memory_space<vmem>>, %arg10: memref<4x32x8xf32, #tpu.memory_space<vmem>>, %arg11: memref<4x1x8xf32, #tpu.memory_space<vmem>>, %arg12: memref<4x8x32xf32, #tpu.memory_space<vmem>>, %arg13: memref<1x32xf32, #tpu.memory_space<vmem>>, %arg14: memref<1x32xf32, #tpu.memory_space<vmem>>, %arg15: memref<1x32xf32, #tpu.memory_space<vmem>>, %arg16: memref<32x128xf32, #tpu.memory_space<vmem>>, %arg17: memref<1x128xf32, #tpu.memory_space<vmem>>, %arg18: memref<128x32xf32, #tpu.memory_space<vmem>>, %arg19: memref<1x32xf32, #tpu.memory_space<vmem>>, %arg20: memref<1x8x32xf32, #tpu.memory_space<vmem>>, %arg21: memref<4x8x8xf32, #tpu.memory_space<vmem>>, %arg22: memref<4x8x8xf32, #tpu.memory_space<vmem>>) attributes {dimension_semantics = [#tpu.dimension_semantics<parallel>, #tpu.dimension_semantics<arbitrary>], iteration_bounds = array<i64: 2, 1>, scalar_prefetch = 0 : i64, scratch_operands = 2 : i64, tpu.core_type = #tpu.core_type<tc>, window_params = [{transform_indices = @transform_0, window_bounds = array<i64: 1, 8, 32>}, {transform_indices = @transform_1, window_bounds = array<i64: 1, 8, 32>}, {pipeline_mode = #tpu.pipeline_mode<synchronous>, transform_indices = @transform_2, window_bounds = array<i64: 1, 32>}, {pipeline_mode = #tpu.pipeline_mode<synchronous>, transform_indices = @transform_3, window_bounds = array<i64: 1, 32>}, {pipeline_mode = #tpu.pipeline_mode<synchronous>, transform_indices = @transform_4, window_bounds = array<i64: 4, 32, 8>}, {pipeline_mode = #tpu.pipeline_mode<synchronous>, transform_indices = @transform_5, window_bounds = array<i64: 4, 1, 8>}, {pipeline_mode = #tpu.pipeline_mode<synchronous>, transform_indices = @transform_6, window_bounds = array<i64: 4, 32, 8>}, {pipeline_mode = #tpu.pipeline_mode<synchronous>, transform_indices = @transform_7, window_bounds = array<i64: 4, 1, 8>}, {pipeline_mode = #tpu.pipeline_mode<synchronous>, transform_indices = @transform_8, window_bounds = array<i64: 4, 32, 8>}, {pipeline_mode = #tpu.pipeline_mode<synchronous>, transform_indices = @transform_9, window_bounds = array<i64: 4, 1, 8>}, {pipeline_mode = #tpu.pipeline_mode<synchronous>, transform_indices = @transform_10, window_bounds = array<i64: 4, 8, 32>}, {pipeline_mode = #tpu.pipeline_mode<synchronous>, transform_indices = @transform_11, window_bounds = array<i64: 1, 32>}, {pipeline_mode = #tpu.pipeline_mode<synchronous>, transform_indices = @transform_12, window_bounds = array<i64: 1, 32>}, {pipeline_mode = #tpu.pipeline_mode<synchronous>, transform_indices = @transform_13, window_bounds = array<i64: 1, 32>}, {pipeline_mode = #tpu.pipeline_mode<synchronous>, transform_indices = @transform_14, window_bounds = array<i64: 32, 128>}, {pipeline_mode = #tpu.pipeline_mode<synchronous>, transform_indices = @transform_15, window_bounds = array<i64: 1, 128>}, {pipeline_mode = #tpu.pipeline_mode<synchronous>, transform_indices = @transform_16, window_bounds = array<i64: 128, 32>}, {pipeline_mode = #tpu.pipeline_mode<synchronous>, transform_indices = @transform_17, window_bounds = array<i64: 1, 32>}, {transform_indices = @transform_18, window_bounds = array<i64: 1, 8, 32>}]} {
    %c0_i32 = arith.constant 0 : i32
    %0 = arith.cmpi eq, %arg1, %c0_i32 : i32
    %1 = arith.extui %0 : i1 to i32
    %c0_i32_0 = arith.constant 0 : i32
    %2 = arith.cmpi ne, %1, %c0_i32_0 : i32
    scf.if %2 {
      %c0_124 = arith.constant 0 : index
      %c0_125 = arith.constant 0 : index
      %c0_126 = arith.constant 0 : index
      %196 = vector.load %arg3[%c0_124, %c0_125, %c0_126] : memref<1x8x32xf32, #tpu.memory_space<vmem>>, vector<1x8x32xf32>
      %197 = vector.shape_cast %196 : vector<1x8x32xf32> to vector<8x32xf32>
      %c0_127 = arith.constant 0 : index
      %c0_128 = arith.constant 0 : index
      %198 = vector.load %arg4[%c0_127, %c0_128] : memref<1x32xf32, #tpu.memory_space<vmem>>, vector<1x32xf32>
      %c0_129 = arith.constant 0 : index
      %c0_130 = arith.constant 0 : index
      %199 = vector.load %arg5[%c0_129, %c0_130] : memref<1x32xf32, #tpu.memory_space<vmem>>, vector<1x32xf32>
      %cst_131 = arith.constant dense<0.000000e+00> : vector<8xf32>
      %200 = vector.multi_reduction <add>, %197, %cst_131 [1] : vector<8x32xf32> to vector<8xf32>
      %201 = vector.shape_cast %200 : vector<8xf32> to vector<8x1xf32>
      %cst_132 = arith.constant 3.200000e+01 : f32
      %202 = vector.broadcast %cst_132 : f32 to vector<8x1xf32>
      %203 = arith.divf %201, %202 : vector<8x1xf32>
      %204 = vector.broadcast %203 : vector<8x1xf32> to vector<8x32xf32>
      %205 = arith.subf %197, %204 : vector<8x32xf32>
      %206 = arith.mulf %205, %205 : vector<8x32xf32>
      %cst_133 = arith.constant dense<0.000000e+00> : vector<8xf32>
      %207 = vector.multi_reduction <add>, %206, %cst_133 [1] : vector<8x32xf32> to vector<8xf32>
      %208 = vector.shape_cast %207 : vector<8xf32> to vector<8x1xf32>
      %cst_134 = arith.constant 3.200000e+01 : f32
      %209 = vector.broadcast %cst_134 : f32 to vector<8x1xf32>
      %210 = arith.divf %208, %209 : vector<8x1xf32>
      %211 = vector.broadcast %203 : vector<8x1xf32> to vector<8x32xf32>
      %212 = arith.subf %197, %211 : vector<8x32xf32>
      %cst_135 = arith.constant 9.99999974E-6 : f32
      %213 = vector.broadcast %cst_135 : f32 to vector<8x1xf32>
      %214 = arith.addf %210, %213 : vector<8x1xf32>
      %215 = math.rsqrt %214 : vector<8x1xf32>
      %216 = vector.broadcast %215 : vector<8x1xf32> to vector<8x32xf32>
      %217 = arith.mulf %212, %216 : vector<8x32xf32>
      %218 = vector.broadcast %198 : vector<1x32xf32> to vector<8x32xf32>
      %219 = arith.mulf %217, %218 : vector<8x32xf32>
      %220 = vector.broadcast %199 : vector<1x32xf32> to vector<8x32xf32>
      %221 = arith.addf %219, %220 : vector<8x32xf32>
      %c0_136 = arith.constant 0 : index
      %c0_137 = arith.constant 0 : index
      %c0_138 = arith.constant 0 : index
      %222 = vector.load %arg8[%c0_136, %c0_137, %c0_138] : memref<4x32x8xf32, #tpu.memory_space<vmem>>, vector<1x32x8xf32>
      %223 = vector.shape_cast %222 : vector<1x32x8xf32> to vector<32x8xf32>
      %cst_139 = arith.constant dense<0.000000e+00> : vector<8x8xf32>
      %224 = tpu.matmul %221, %223, %cst_139 {dimension_numbers = #tpu.dot_dimension_numbers<[1], [0], [0], [1], [0, 0, 1, 1], [], []>} : vector<8x32xf32>, vector<32x8xf32>, vector<8x8xf32> -> vector<8x8xf32>
      %c0_140 = arith.constant 0 : index
      %c0_141 = arith.constant 0 : index
      %c0_142 = arith.constant 0 : index
      %225 = vector.load %arg9[%c0_140, %c0_141, %c0_142] : memref<4x1x8xf32, #tpu.memory_space<vmem>>, vector<1x1x8xf32>
      %226 = vector.shape_cast %225 : vector<1x1x8xf32> to vector<1x8xf32>
      %227 = vector.broadcast %226 : vector<1x8xf32> to vector<8x8xf32>
      %228 = arith.addf %224, %227 : vector<8x8xf32>
      %c0_143 = arith.constant 0 : index
      %c0_144 = arith.constant 0 : index
      %c0_145 = arith.constant 0 : index
      %229 = vector.load %arg21[%c0_143, %c0_144, %c0_145] : memref<4x8x8xf32, #tpu.memory_space<vmem>>, vector<1x8x8xf32>
      %230 = vector.shape_cast %229 : vector<1x8x8xf32> to vector<8x8xf32>
      %231 = vector.shape_cast %228 : vector<8x8xf32> to vector<1x8x8xf32>
      tpu.vector_store %arg21[%c0_143, %c0_144, %c0_145], %231 {strides = array<i32>} : memref<4x8x8xf32, #tpu.memory_space<vmem>>, vector<1x8x8xf32>,
      %c0_146 = arith.constant 0 : index
      %c0_147 = arith.constant 0 : index
      %c0_148 = arith.constant 0 : index
      %232 = vector.load %arg10[%c0_146, %c0_147, %c0_148] : memref<4x32x8xf32, #tpu.memory_space<vmem>>, vector<1x32x8xf32>
      %233 = vector.shape_cast %232 : vector<1x32x8xf32> to vector<32x8xf32>
      %cst_149 = arith.constant dense<0.000000e+00> : vector<8x8xf32>
      %234 = tpu.matmul %221, %233, %cst_149 {dimension_numbers = #tpu.dot_dimension_numbers<[1], [0], [0], [1], [0, 0, 1, 1], [], []>} : vector<8x32xf32>, vector<32x8xf32>, vector<8x8xf32> -> vector<8x8xf32>
      %c0_150 = arith.constant 0 : index
      %c0_151 = arith.constant 0 : index
      %c0_152 = arith.constant 0 : index
      %235 = vector.load %arg11[%c0_150, %c0_151, %c0_152] : memref<4x1x8xf32, #tpu.memory_space<vmem>>, vector<1x1x8xf32>
      %236 = vector.shape_cast %235 : vector<1x1x8xf32> to vector<1x8xf32>
      %237 = vector.broadcast %236 : vector<1x8xf32> to vector<8x8xf32>
      %238 = arith.addf %234, %237 : vector<8x8xf32>
      %c0_153 = arith.constant 0 : index
      %c0_154 = arith.constant 0 : index
      %c0_155 = arith.constant 0 : index
      %239 = vector.load %arg22[%c0_153, %c0_154, %c0_155] : memref<4x8x8xf32, #tpu.memory_space<vmem>>, vector<1x8x8xf32>
      %240 = vector.shape_cast %239 : vector<1x8x8xf32> to vector<8x8xf32>
      %241 = vector.shape_cast %238 : vector<8x8xf32> to vector<1x8x8xf32>
      tpu.vector_store %arg22[%c0_153, %c0_154, %c0_155], %241 {strides = array<i32>} : memref<4x8x8xf32, #tpu.memory_space<vmem>>, vector<1x8x8xf32>,
      %c1_156 = arith.constant 1 : index
      %c0_157 = arith.constant 0 : index
      %c0_158 = arith.constant 0 : index
      %242 = vector.load %arg8[%c1_156, %c0_157, %c0_158] : memref<4x32x8xf32, #tpu.memory_space<vmem>>, vector<1x32x8xf32>
      %243 = vector.shape_cast %242 : vector<1x32x8xf32> to vector<32x8xf32>
      %cst_159 = arith.constant dense<0.000000e+00> : vector<8x8xf32>
      %244 = tpu.matmul %221, %243, %cst_159 {dimension_numbers = #tpu.dot_dimension_numbers<[1], [0], [0], [1], [0, 0, 1, 1], [], []>} : vector<8x32xf32>, vector<32x8xf32>, vector<8x8xf32> -> vector<8x8xf32>
      %c1_160 = arith.constant 1 : index
      %c0_161 = arith.constant 0 : index
      %c0_162 = arith.constant 0 : index
      %245 = vector.load %arg9[%c1_160, %c0_161, %c0_162] : memref<4x1x8xf32, #tpu.memory_space<vmem>>, vector<1x1x8xf32>
      %246 = vector.shape_cast %245 : vector<1x1x8xf32> to vector<1x8xf32>
      %247 = vector.broadcast %246 : vector<1x8xf32> to vector<8x8xf32>
      %248 = arith.addf %244, %247 : vector<8x8xf32>
      %c1_163 = arith.constant 1 : index
      %c0_164 = arith.constant 0 : index
      %c0_165 = arith.constant 0 : index
      %249 = vector.load %arg21[%c1_163, %c0_164, %c0_165] : memref<4x8x8xf32, #tpu.memory_space<vmem>>, vector<1x8x8xf32>
      %250 = vector.shape_cast %249 : vector<1x8x8xf32> to vector<8x8xf32>
      %251 = vector.shape_cast %248 : vector<8x8xf32> to vector<1x8x8xf32>
      tpu.vector_store %arg21[%c1_163, %c0_164, %c0_165], %251 {strides = array<i32>} : memref<4x8x8xf32, #tpu.memory_space<vmem>>, vector<1x8x8xf32>,
      %c1_166 = arith.constant 1 : index
      %c0_167 = arith.constant 0 : index
      %c0_168 = arith.constant 0 : index
      %252 = vector.load %arg10[%c1_166, %c0_167, %c0_168] : memref<4x32x8xf32, #tpu.memory_space<vmem>>, vector<1x32x8xf32>
      %253 = vector.shape_cast %252 : vector<1x32x8xf32> to vector<32x8xf32>
      %cst_169 = arith.constant dense<0.000000e+00> : vector<8x8xf32>
      %254 = tpu.matmul %221, %253, %cst_169 {dimension_numbers = #tpu.dot_dimension_numbers<[1], [0], [0], [1], [0, 0, 1, 1], [], []>} : vector<8x32xf32>, vector<32x8xf32>, vector<8x8xf32> -> vector<8x8xf32>
      %c1_170 = arith.constant 1 : index
      %c0_171 = arith.constant 0 : index
      %c0_172 = arith.constant 0 : index
      %255 = vector.load %arg11[%c1_170, %c0_171, %c0_172] : memref<4x1x8xf32, #tpu.memory_space<vmem>>, vector<1x1x8xf32>
      %256 = vector.shape_cast %255 : vector<1x1x8xf32> to vector<1x8xf32>
      %257 = vector.broadcast %256 : vector<1x8xf32> to vector<8x8xf32>
      %258 = arith.addf %254, %257 : vector<8x8xf32>
      %c1_173 = arith.constant 1 : index
      %c0_174 = arith.constant 0 : index
      %c0_175 = arith.constant 0 : index
      %259 = vector.load %arg22[%c1_173, %c0_174, %c0_175] : memref<4x8x8xf32, #tpu.memory_space<vmem>>, vector<1x8x8xf32>
      %260 = vector.shape_cast %259 : vector<1x8x8xf32> to vector<8x8xf32>
      %261 = vector.shape_cast %258 : vector<8x8xf32> to vector<1x8x8xf32>
      tpu.vector_store %arg22[%c1_173, %c0_174, %c0_175], %261 {strides = array<i32>} : memref<4x8x8xf32, #tpu.memory_space<vmem>>, vector<1x8x8xf32>,
      %c2_176 = arith.constant 2 : index
      %c0_177 = arith.constant 0 : index
      %c0_178 = arith.constant 0 : index
      %262 = vector.load %arg8[%c2_176, %c0_177, %c0_178] : memref<4x32x8xf32, #tpu.memory_space<vmem>>, vector<1x32x8xf32>
      %263 = vector.shape_cast %262 : vector<1x32x8xf32> to vector<32x8xf32>
      %cst_179 = arith.constant dense<0.000000e+00> : vector<8x8xf32>
      %264 = tpu.matmul %221, %263, %cst_179 {dimension_numbers = #tpu.dot_dimension_numbers<[1], [0], [0], [1], [0, 0, 1, 1], [], []>} : vector<8x32xf32>, vector<32x8xf32>, vector<8x8xf32> -> vector<8x8xf32>
      %c2_180 = arith.constant 2 : index
      %c0_181 = arith.constant 0 : index
      %c0_182 = arith.constant 0 : index
      %265 = vector.load %arg9[%c2_180, %c0_181, %c0_182] : memref<4x1x8xf32, #tpu.memory_space<vmem>>, vector<1x1x8xf32>
      %266 = vector.shape_cast %265 : vector<1x1x8xf32> to vector<1x8xf32>
      %267 = vector.broadcast %266 : vector<1x8xf32> to vector<8x8xf32>
      %268 = arith.addf %264, %267 : vector<8x8xf32>
      %c2_183 = arith.constant 2 : index
      %c0_184 = arith.constant 0 : index
      %c0_185 = arith.constant 0 : index
      %269 = vector.load %arg21[%c2_183, %c0_184, %c0_185] : memref<4x8x8xf32, #tpu.memory_space<vmem>>, vector<1x8x8xf32>
      %270 = vector.shape_cast %269 : vector<1x8x8xf32> to vector<8x8xf32>
      %271 = vector.shape_cast %268 : vector<8x8xf32> to vector<1x8x8xf32>
      tpu.vector_store %arg21[%c2_183, %c0_184, %c0_185], %271 {strides = array<i32>} : memref<4x8x8xf32, #tpu.memory_space<vmem>>, vector<1x8x8xf32>,
      %c2_186 = arith.constant 2 : index
      %c0_187 = arith.constant 0 : index
      %c0_188 = arith.constant 0 : index
      %272 = vector.load %arg10[%c2_186, %c0_187, %c0_188] : memref<4x32x8xf32, #tpu.memory_space<vmem>>, vector<1x32x8xf32>
      %273 = vector.shape_cast %272 : vector<1x32x8xf32> to vector<32x8xf32>
      %cst_189 = arith.constant dense<0.000000e+00> : vector<8x8xf32>
      %274 = tpu.matmul %221, %273, %cst_189 {dimension_numbers = #tpu.dot_dimension_numbers<[1], [0], [0], [1], [0, 0, 1, 1], [], []>} : vector<8x32xf32>, vector<32x8xf32>, vector<8x8xf32> -> vector<8x8xf32>
      %c2_190 = arith.constant 2 : index
      %c0_191 = arith.constant 0 : index
      %c0_192 = arith.constant 0 : index
      %275 = vector.load %arg11[%c2_190, %c0_191, %c0_192] : memref<4x1x8xf32, #tpu.memory_space<vmem>>, vector<1x1x8xf32>
      %276 = vector.shape_cast %275 : vector<1x1x8xf32> to vector<1x8xf32>
      %277 = vector.broadcast %276 : vector<1x8xf32> to vector<8x8xf32>
      %278 = arith.addf %274, %277 : vector<8x8xf32>
      %c2_193 = arith.constant 2 : index
      %c0_194 = arith.constant 0 : index
      %c0_195 = arith.constant 0 : index
      %279 = vector.load %arg22[%c2_193, %c0_194, %c0_195] : memref<4x8x8xf32, #tpu.memory_space<vmem>>, vector<1x8x8xf32>
      %280 = vector.shape_cast %279 : vector<1x8x8xf32> to vector<8x8xf32>
      %281 = vector.shape_cast %278 : vector<8x8xf32> to vector<1x8x8xf32>
      tpu.vector_store %arg22[%c2_193, %c0_194, %c0_195], %281 {strides = array<i32>} : memref<4x8x8xf32, #tpu.memory_space<vmem>>, vector<1x8x8xf32>,
      %c3_196 = arith.constant 3 : index
      %c0_197 = arith.constant 0 : index
      %c0_198 = arith.constant 0 : index
      %282 = vector.load %arg8[%c3_196, %c0_197, %c0_198] : memref<4x32x8xf32, #tpu.memory_space<vmem>>, vector<1x32x8xf32>
      %283 = vector.shape_cast %282 : vector<1x32x8xf32> to vector<32x8xf32>
      %cst_199 = arith.constant dense<0.000000e+00> : vector<8x8xf32>
      %284 = tpu.matmul %221, %283, %cst_199 {dimension_numbers = #tpu.dot_dimension_numbers<[1], [0], [0], [1], [0, 0, 1, 1], [], []>} : vector<8x32xf32>, vector<32x8xf32>, vector<8x8xf32> -> vector<8x8xf32>
      %c3_200 = arith.constant 3 : index
      %c0_201 = arith.constant 0 : index
      %c0_202 = arith.constant 0 : index
      %285 = vector.load %arg9[%c3_200, %c0_201, %c0_202] : memref<4x1x8xf32, #tpu.memory_space<vmem>>, vector<1x1x8xf32>
      %286 = vector.shape_cast %285 : vector<1x1x8xf32> to vector<1x8xf32>
      %287 = vector.broadcast %286 : vector<1x8xf32> to vector<8x8xf32>
      %288 = arith.addf %284, %287 : vector<8x8xf32>
      %c3_203 = arith.constant 3 : index
      %c0_204 = arith.constant 0 : index
      %c0_205 = arith.constant 0 : index
      %289 = vector.load %arg21[%c3_203, %c0_204, %c0_205] : memref<4x8x8xf32, #tpu.memory_space<vmem>>, vector<1x8x8xf32>
      %290 = vector.shape_cast %289 : vector<1x8x8xf32> to vector<8x8xf32>
      %291 = vector.shape_cast %288 : vector<8x8xf32> to vector<1x8x8xf32>
      tpu.vector_store %arg21[%c3_203, %c0_204, %c0_205], %291 {strides = array<i32>} : memref<4x8x8xf32, #tpu.memory_space<vmem>>, vector<1x8x8xf32>,
      %c3_206 = arith.constant 3 : index
      %c0_207 = arith.constant 0 : index
      %c0_208 = arith.constant 0 : index
      %292 = vector.load %arg10[%c3_206, %c0_207, %c0_208] : memref<4x32x8xf32, #tpu.memory_space<vmem>>, vector<1x32x8xf32>
      %293 = vector.shape_cast %292 : vector<1x32x8xf32> to vector<32x8xf32>
      %cst_209 = arith.constant dense<0.000000e+00> : vector<8x8xf32>
      %294 = tpu.matmul %221, %293, %cst_209 {dimension_numbers = #tpu.dot_dimension_numbers<[1], [0], [0], [1], [0, 0, 1, 1], [], []>} : vector<8x32xf32>, vector<32x8xf32>, vector<8x8xf32> -> vector<8x8xf32>
      %c3_210 = arith.constant 3 : index
      %c0_211 = arith.constant 0 : index
      %c0_212 = arith.constant 0 : index
      %295 = vector.load %arg11[%c3_210, %c0_211, %c0_212] : memref<4x1x8xf32, #tpu.memory_space<vmem>>, vector<1x1x8xf32>
      %296 = vector.shape_cast %295 : vector<1x1x8xf32> to vector<1x8xf32>
      %297 = vector.broadcast %296 : vector<1x8xf32> to vector<8x8xf32>
      %298 = arith.addf %294, %297 : vector<8x8xf32>
      %c3_213 = arith.constant 3 : index
      %c0_214 = arith.constant 0 : index
      %c0_215 = arith.constant 0 : index
      %299 = vector.load %arg22[%c3_213, %c0_214, %c0_215] : memref<4x8x8xf32, #tpu.memory_space<vmem>>, vector<1x8x8xf32>
      %300 = vector.shape_cast %299 : vector<1x8x8xf32> to vector<8x8xf32>
      %301 = vector.shape_cast %298 : vector<8x8xf32> to vector<1x8x8xf32>
      tpu.vector_store %arg22[%c3_213, %c0_214, %c0_215], %301 {strides = array<i32>} : memref<4x8x8xf32, #tpu.memory_space<vmem>>, vector<1x8x8xf32>,
    } else {
    }
    %c0 = arith.constant 0 : index
    %c0_1 = arith.constant 0 : index
    %c0_2 = arith.constant 0 : index
    %3 = vector.load %arg2[%c0, %c0_1, %c0_2] : memref<1x8x32xf32, #tpu.memory_space<vmem>>, vector<1x8x32xf32>
    %4 = vector.shape_cast %3 : vector<1x8x32xf32> to vector<8x32xf32>
    %c0_3 = arith.constant 0 : index
    %c0_4 = arith.constant 0 : index
    %5 = vector.load %arg4[%c0_3, %c0_4] : memref<1x32xf32, #tpu.memory_space<vmem>>, vector<1x32xf32>
    %c0_5 = arith.constant 0 : index
    %c0_6 = arith.constant 0 : index
    %6 = vector.load %arg5[%c0_5, %c0_6] : memref<1x32xf32, #tpu.memory_space<vmem>>, vector<1x32xf32>
    %cst = arith.constant dense<0.000000e+00> : vector<8xf32>
    %7 = vector.multi_reduction <add>, %4, %cst [1] : vector<8x32xf32> to vector<8xf32>
    %8 = vector.shape_cast %7 : vector<8xf32> to vector<8x1xf32>
    %cst_7 = arith.constant 3.200000e+01 : f32
    %9 = vector.broadcast %cst_7 : f32 to vector<8x1xf32>
    %10 = arith.divf %8, %9 : vector<8x1xf32>
    %11 = vector.broadcast %10 : vector<8x1xf32> to vector<8x32xf32>
    %12 = arith.subf %4, %11 : vector<8x32xf32>
    %13 = arith.mulf %12, %12 : vector<8x32xf32>
    %cst_8 = arith.constant dense<0.000000e+00> : vector<8xf32>
    %14 = vector.multi_reduction <add>, %13, %cst_8 [1] : vector<8x32xf32> to vector<8xf32>
    %15 = vector.shape_cast %14 : vector<8xf32> to vector<8x1xf32>
    %cst_9 = arith.constant 3.200000e+01 : f32
    %16 = vector.broadcast %cst_9 : f32 to vector<8x1xf32>
    %17 = arith.divf %15, %16 : vector<8x1xf32>
    %18 = vector.broadcast %10 : vector<8x1xf32> to vector<8x32xf32>
    %19 = arith.subf %4, %18 : vector<8x32xf32>
    %cst_10 = arith.constant 9.99999974E-6 : f32
    %20 = vector.broadcast %cst_10 : f32 to vector<8x1xf32>
    %21 = arith.addf %17, %20 : vector<8x1xf32>
    %22 = math.rsqrt %21 : vector<8x1xf32>
    %23 = vector.broadcast %22 : vector<8x1xf32> to vector<8x32xf32>
    %24 = arith.mulf %19, %23 : vector<8x32xf32>
    %25 = vector.broadcast %5 : vector<1x32xf32> to vector<8x32xf32>
    %26 = arith.mulf %24, %25 : vector<8x32xf32>
    %27 = vector.broadcast %6 : vector<1x32xf32> to vector<8x32xf32>
    %28 = arith.addf %26, %27 : vector<8x32xf32>
    %cst_11 = arith.constant 0.000000e+00 : f32
    %29 = vector.broadcast %cst_11 : f32 to vector<8x32xf32>
    %c0_12 = arith.constant 0 : index
    %c0_13 = arith.constant 0 : index
    %c0_14 = arith.constant 0 : index
    %30 = vector.load %arg6[%c0_12, %c0_13, %c0_14] : memref<4x32x8xf32, #tpu.memory_space<vmem>>, vector<1x32x8xf32>
    %31 = vector.shape_cast %30 : vector<1x32x8xf32> to vector<32x8xf32>
    %cst_15 = arith.constant dense<0.000000e+00> : vector<8x8xf32>
    %32 = tpu.matmul %28, %31, %cst_15 {dimension_numbers = #tpu.dot_dimension_numbers<[1], [0], [0], [1], [0, 0, 1, 1], [], []>} : vector<8x32xf32>, vector<32x8xf32>, vector<8x8xf32> -> vector<8x8xf32>
    %c0_16 = arith.constant 0 : index
    %c0_17 = arith.constant 0 : index
    %c0_18 = arith.constant 0 : index
    %33 = vector.load %arg7[%c0_16, %c0_17, %c0_18] : memref<4x1x8xf32, #tpu.memory_space<vmem>>, vector<1x1x8xf32>
    %34 = vector.shape_cast %33 : vector<1x1x8xf32> to vector<1x8xf32>
    %35 = vector.broadcast %34 : vector<1x8xf32> to vector<8x8xf32>
    %36 = arith.addf %32, %35 : vector<8x8xf32>
    %cst_19 = arith.constant 0.353553385 : f32
    %37 = vector.broadcast %cst_19 : f32 to vector<8x8xf32>
    %38 = arith.mulf %36, %37 : vector<8x8xf32>
    %c0_20 = arith.constant 0 : index
    %c0_21 = arith.constant 0 : index
    %c0_22 = arith.constant 0 : index
    %39 = vector.load %arg21[%c0_20, %c0_21, %c0_22] : memref<4x8x8xf32, #tpu.memory_space<vmem>>, vector<1x8x8xf32>
    %40 = vector.shape_cast %39 : vector<1x8x8xf32> to vector<8x8xf32>
    %c0_23 = arith.constant 0 : index
    %c0_24 = arith.constant 0 : index
    %c0_25 = arith.constant 0 : index
    %41 = vector.load %arg22[%c0_23, %c0_24, %c0_25] : memref<4x8x8xf32, #tpu.memory_space<vmem>>, vector<1x8x8xf32>
    %42 = vector.shape_cast %41 : vector<1x8x8xf32> to vector<8x8xf32>
    %cst_26 = arith.constant dense<0.000000e+00> : vector<8x8xf32>
    %43 = tpu.matmul %38, %40, %cst_26 {dimension_numbers = #tpu.dot_dimension_numbers<[1], [1], [0], [0], [0, 0, 1, 0], [], []>} : vector<8x8xf32>, vector<8x8xf32>, vector<8x8xf32> -> vector<8x8xf32>
    %cst_27 = arith.constant dense<0xFF800000> : vector<8xf32>
    %44 = vector.multi_reduction <maximumf>, %43, %cst_27 [1] : vector<8x8xf32> to vector<8xf32>
    %45 = vector.shape_cast %44 : vector<8xf32> to vector<8x1xf32>
    %46 = vector.broadcast %45 : vector<8x1xf32> to vector<8x8xf32>
    %47 = arith.subf %43, %46 : vector<8x8xf32>
    %48 = math.exp %47 : vector<8x8xf32>
    %cst_28 = arith.constant dense<0.000000e+00> : vector<8xf32>
    %49 = vector.multi_reduction <add>, %48, %cst_28 [1] : vector<8x8xf32> to vector<8xf32>
    %50 = vector.shape_cast %49 : vector<8xf32> to vector<8x1xf32>
    %51 = tpu.reciprocal %50 : vector<8x1xf32> -> vector<8x1xf32>
    %52 = vector.broadcast %51 : vector<8x1xf32> to vector<8x8xf32>
    %53 = arith.mulf %48, %52 : vector<8x8xf32>
    %cst_29 = arith.constant dense<0.000000e+00> : vector<8x8xf32>
    %54 = tpu.matmul %53, %42, %cst_29 {dimension_numbers = #tpu.dot_dimension_numbers<[1], [0], [0], [1], [0, 0, 1, 1], [], []>} : vector<8x8xf32>, vector<8x8xf32>, vector<8x8xf32> -> vector<8x8xf32>
    %c0_30 = arith.constant 0 : index
    %c0_31 = arith.constant 0 : index
    %c0_32 = arith.constant 0 : index
    %55 = vector.load %arg12[%c0_30, %c0_31, %c0_32] : memref<4x8x32xf32, #tpu.memory_space<vmem>>, vector<1x8x32xf32>
    %56 = vector.shape_cast %55 : vector<1x8x32xf32> to vector<8x32xf32>
    %cst_33 = arith.constant dense<0.000000e+00> : vector<8x32xf32>
    %57 = tpu.matmul %54, %56, %cst_33 {dimension_numbers = #tpu.dot_dimension_numbers<[1], [0], [0], [1], [0, 0, 1, 1], [], []>} : vector<8x8xf32>, vector<8x32xf32>, vector<8x32xf32> -> vector<8x32xf32>
    %58 = arith.addf %29, %57 : vector<8x32xf32>
    %c1 = arith.constant 1 : index
    %c0_34 = arith.constant 0 : index
    %c0_35 = arith.constant 0 : index
    %59 = vector.load %arg6[%c1, %c0_34, %c0_35] : memref<4x32x8xf32, #tpu.memory_space<vmem>>, vector<1x32x8xf32>
    %60 = vector.shape_cast %59 : vector<1x32x8xf32> to vector<32x8xf32>
    %cst_36 = arith.constant dense<0.000000e+00> : vector<8x8xf32>
    %61 = tpu.matmul %28, %60, %cst_36 {dimension_numbers = #tpu.dot_dimension_numbers<[1], [0], [0], [1], [0, 0, 1, 1], [], []>} : vector<8x32xf32>, vector<32x8xf32>, vector<8x8xf32> -> vector<8x8xf32>
    %c1_37 = arith.constant 1 : index
    %c0_38 = arith.constant 0 : index
    %c0_39 = arith.constant 0 : index
    %62 = vector.load %arg7[%c1_37, %c0_38, %c0_39] : memref<4x1x8xf32, #tpu.memory_space<vmem>>, vector<1x1x8xf32>
    %63 = vector.shape_cast %62 : vector<1x1x8xf32> to vector<1x8xf32>
    %64 = vector.broadcast %63 : vector<1x8xf32> to vector<8x8xf32>
    %65 = arith.addf %61, %64 : vector<8x8xf32>
    %cst_40 = arith.constant 0.353553385 : f32
    %66 = vector.broadcast %cst_40 : f32 to vector<8x8xf32>
    %67 = arith.mulf %65, %66 : vector<8x8xf32>
    %c1_41 = arith.constant 1 : index
    %c0_42 = arith.constant 0 : index
    %c0_43 = arith.constant 0 : index
    %68 = vector.load %arg21[%c1_41, %c0_42, %c0_43] : memref<4x8x8xf32, #tpu.memory_space<vmem>>, vector<1x8x8xf32>
    %69 = vector.shape_cast %68 : vector<1x8x8xf32> to vector<8x8xf32>
    %c1_44 = arith.constant 1 : index
    %c0_45 = arith.constant 0 : index
    %c0_46 = arith.constant 0 : index
    %70 = vector.load %arg22[%c1_44, %c0_45, %c0_46] : memref<4x8x8xf32, #tpu.memory_space<vmem>>, vector<1x8x8xf32>
    %71 = vector.shape_cast %70 : vector<1x8x8xf32> to vector<8x8xf32>
    %cst_47 = arith.constant dense<0.000000e+00> : vector<8x8xf32>
    %72 = tpu.matmul %67, %69, %cst_47 {dimension_numbers = #tpu.dot_dimension_numbers<[1], [1], [0], [0], [0, 0, 1, 0], [], []>} : vector<8x8xf32>, vector<8x8xf32>, vector<8x8xf32> -> vector<8x8xf32>
    %cst_48 = arith.constant dense<0xFF800000> : vector<8xf32>
    %73 = vector.multi_reduction <maximumf>, %72, %cst_48 [1] : vector<8x8xf32> to vector<8xf32>
    %74 = vector.shape_cast %73 : vector<8xf32> to vector<8x1xf32>
    %75 = vector.broadcast %74 : vector<8x1xf32> to vector<8x8xf32>
    %76 = arith.subf %72, %75 : vector<8x8xf32>
    %77 = math.exp %76 : vector<8x8xf32>
    %cst_49 = arith.constant dense<0.000000e+00> : vector<8xf32>
    %78 = vector.multi_reduction <add>, %77, %cst_49 [1] : vector<8x8xf32> to vector<8xf32>
    %79 = vector.shape_cast %78 : vector<8xf32> to vector<8x1xf32>
    %80 = tpu.reciprocal %79 : vector<8x1xf32> -> vector<8x1xf32>
    %81 = vector.broadcast %80 : vector<8x1xf32> to vector<8x8xf32>
    %82 = arith.mulf %77, %81 : vector<8x8xf32>
    %cst_50 = arith.constant dense<0.000000e+00> : vector<8x8xf32>
    %83 = tpu.matmul %82, %71, %cst_50 {dimension_numbers = #tpu.dot_dimension_numbers<[1], [0], [0], [1], [0, 0, 1, 1], [], []>} : vector<8x8xf32>, vector<8x8xf32>, vector<8x8xf32> -> vector<8x8xf32>
    %c1_51 = arith.constant 1 : index
    %c0_52 = arith.constant 0 : index
    %c0_53 = arith.constant 0 : index
    %84 = vector.load %arg12[%c1_51, %c0_52, %c0_53] : memref<4x8x32xf32, #tpu.memory_space<vmem>>, vector<1x8x32xf32>
    %85 = vector.shape_cast %84 : vector<1x8x32xf32> to vector<8x32xf32>
    %cst_54 = arith.constant dense<0.000000e+00> : vector<8x32xf32>
    %86 = tpu.matmul %83, %85, %cst_54 {dimension_numbers = #tpu.dot_dimension_numbers<[1], [0], [0], [1], [0, 0, 1, 1], [], []>} : vector<8x8xf32>, vector<8x32xf32>, vector<8x32xf32> -> vector<8x32xf32>
    %87 = arith.addf %58, %86 : vector<8x32xf32>
    %c2 = arith.constant 2 : index
    %c0_55 = arith.constant 0 : index
    %c0_56 = arith.constant 0 : index
    %88 = vector.load %arg6[%c2, %c0_55, %c0_56] : memref<4x32x8xf32, #tpu.memory_space<vmem>>, vector<1x32x8xf32>
    %89 = vector.shape_cast %88 : vector<1x32x8xf32> to vector<32x8xf32>
    %cst_57 = arith.constant dense<0.000000e+00> : vector<8x8xf32>
    %90 = tpu.matmul %28, %89, %cst_57 {dimension_numbers = #tpu.dot_dimension_numbers<[1], [0], [0], [1], [0, 0, 1, 1], [], []>} : vector<8x32xf32>, vector<32x8xf32>, vector<8x8xf32> -> vector<8x8xf32>
    %c2_58 = arith.constant 2 : index
    %c0_59 = arith.constant 0 : index
    %c0_60 = arith.constant 0 : index
    %91 = vector.load %arg7[%c2_58, %c0_59, %c0_60] : memref<4x1x8xf32, #tpu.memory_space<vmem>>, vector<1x1x8xf32>
    %92 = vector.shape_cast %91 : vector<1x1x8xf32> to vector<1x8xf32>
    %93 = vector.broadcast %92 : vector<1x8xf32> to vector<8x8xf32>
    %94 = arith.addf %90, %93 : vector<8x8xf32>
    %cst_61 = arith.constant 0.353553385 : f32
    %95 = vector.broadcast %cst_61 : f32 to vector<8x8xf32>
    %96 = arith.mulf %94, %95 : vector<8x8xf32>
    %c2_62 = arith.constant 2 : index
    %c0_63 = arith.constant 0 : index
    %c0_64 = arith.constant 0 : index
    %97 = vector.load %arg21[%c2_62, %c0_63, %c0_64] : memref<4x8x8xf32, #tpu.memory_space<vmem>>, vector<1x8x8xf32>
    %98 = vector.shape_cast %97 : vector<1x8x8xf32> to vector<8x8xf32>
    %c2_65 = arith.constant 2 : index
    %c0_66 = arith.constant 0 : index
    %c0_67 = arith.constant 0 : index
    %99 = vector.load %arg22[%c2_65, %c0_66, %c0_67] : memref<4x8x8xf32, #tpu.memory_space<vmem>>, vector<1x8x8xf32>
    %100 = vector.shape_cast %99 : vector<1x8x8xf32> to vector<8x8xf32>
    %cst_68 = arith.constant dense<0.000000e+00> : vector<8x8xf32>
    %101 = tpu.matmul %96, %98, %cst_68 {dimension_numbers = #tpu.dot_dimension_numbers<[1], [1], [0], [0], [0, 0, 1, 0], [], []>} : vector<8x8xf32>, vector<8x8xf32>, vector<8x8xf32> -> vector<8x8xf32>
    %cst_69 = arith.constant dense<0xFF800000> : vector<8xf32>
    %102 = vector.multi_reduction <maximumf>, %101, %cst_69 [1] : vector<8x8xf32> to vector<8xf32>
    %103 = vector.shape_cast %102 : vector<8xf32> to vector<8x1xf32>
    %104 = vector.broadcast %103 : vector<8x1xf32> to vector<8x8xf32>
    %105 = arith.subf %101, %104 : vector<8x8xf32>
    %106 = math.exp %105 : vector<8x8xf32>
    %cst_70 = arith.constant dense<0.000000e+00> : vector<8xf32>
    %107 = vector.multi_reduction <add>, %106, %cst_70 [1] : vector<8x8xf32> to vector<8xf32>
    %108 = vector.shape_cast %107 : vector<8xf32> to vector<8x1xf32>
    %109 = tpu.reciprocal %108 : vector<8x1xf32> -> vector<8x1xf32>
    %110 = vector.broadcast %109 : vector<8x1xf32> to vector<8x8xf32>
    %111 = arith.mulf %106, %110 : vector<8x8xf32>
    %cst_71 = arith.constant dense<0.000000e+00> : vector<8x8xf32>
    %112 = tpu.matmul %111, %100, %cst_71 {dimension_numbers = #tpu.dot_dimension_numbers<[1], [0], [0], [1], [0, 0, 1, 1], [], []>} : vector<8x8xf32>, vector<8x8xf32>, vector<8x8xf32> -> vector<8x8xf32>
    %c2_72 = arith.constant 2 : index
    %c0_73 = arith.constant 0 : index
    %c0_74 = arith.constant 0 : index
    %113 = vector.load %arg12[%c2_72, %c0_73, %c0_74] : memref<4x8x32xf32, #tpu.memory_space<vmem>>, vector<1x8x32xf32>
    %114 = vector.shape_cast %113 : vector<1x8x32xf32> to vector<8x32xf32>
    %cst_75 = arith.constant dense<0.000000e+00> : vector<8x32xf32>
    %115 = tpu.matmul %112, %114, %cst_75 {dimension_numbers = #tpu.dot_dimension_numbers<[1], [0], [0], [1], [0, 0, 1, 1], [], []>} : vector<8x8xf32>, vector<8x32xf32>, vector<8x32xf32> -> vector<8x32xf32>
    %116 = arith.addf %87, %115 : vector<8x32xf32>
    %c3 = arith.constant 3 : index
    %c0_76 = arith.constant 0 : index
    %c0_77 = arith.constant 0 : index
    %117 = vector.load %arg6[%c3, %c0_76, %c0_77] : memref<4x32x8xf32, #tpu.memory_space<vmem>>, vector<1x32x8xf32>
    %118 = vector.shape_cast %117 : vector<1x32x8xf32> to vector<32x8xf32>
    %cst_78 = arith.constant dense<0.000000e+00> : vector<8x8xf32>
    %119 = tpu.matmul %28, %118, %cst_78 {dimension_numbers = #tpu.dot_dimension_numbers<[1], [0], [0], [1], [0, 0, 1, 1], [], []>} : vector<8x32xf32>, vector<32x8xf32>, vector<8x8xf32> -> vector<8x8xf32>
    %c3_79 = arith.constant 3 : index
    %c0_80 = arith.constant 0 : index
    %c0_81 = arith.constant 0 : index
    %120 = vector.load %arg7[%c3_79, %c0_80, %c0_81] : memref<4x1x8xf32, #tpu.memory_space<vmem>>, vector<1x1x8xf32>
    %121 = vector.shape_cast %120 : vector<1x1x8xf32> to vector<1x8xf32>
    %122 = vector.broadcast %121 : vector<1x8xf32> to vector<8x8xf32>
    %123 = arith.addf %119, %122 : vector<8x8xf32>
    %cst_82 = arith.constant 0.353553385 : f32
    %124 = vector.broadcast %cst_82 : f32 to vector<8x8xf32>
    %125 = arith.mulf %123, %124 : vector<8x8xf32>
    %c3_83 = arith.constant 3 : index
    %c0_84 = arith.constant 0 : index
    %c0_85 = arith.constant 0 : index
    %126 = vector.load %arg21[%c3_83, %c0_84, %c0_85] : memref<4x8x8xf32, #tpu.memory_space<vmem>>, vector<1x8x8xf32>
    %127 = vector.shape_cast %126 : vector<1x8x8xf32> to vector<8x8xf32>
    %c3_86 = arith.constant 3 : index
    %c0_87 = arith.constant 0 : index
    %c0_88 = arith.constant 0 : index
    %128 = vector.load %arg22[%c3_86, %c0_87, %c0_88] : memref<4x8x8xf32, #tpu.memory_space<vmem>>, vector<1x8x8xf32>
    %129 = vector.shape_cast %128 : vector<1x8x8xf32> to vector<8x8xf32>
    %cst_89 = arith.constant dense<0.000000e+00> : vector<8x8xf32>
    %130 = tpu.matmul %125, %127, %cst_89 {dimension_numbers = #tpu.dot_dimension_numbers<[1], [1], [0], [0], [0, 0, 1, 0], [], []>} : vector<8x8xf32>, vector<8x8xf32>, vector<8x8xf32> -> vector<8x8xf32>
    %cst_90 = arith.constant dense<0xFF800000> : vector<8xf32>
    %131 = vector.multi_reduction <maximumf>, %130, %cst_90 [1] : vector<8x8xf32> to vector<8xf32>
    %132 = vector.shape_cast %131 : vector<8xf32> to vector<8x1xf32>
    %133 = vector.broadcast %132 : vector<8x1xf32> to vector<8x8xf32>
    %134 = arith.subf %130, %133 : vector<8x8xf32>
    %135 = math.exp %134 : vector<8x8xf32>
    %cst_91 = arith.constant dense<0.000000e+00> : vector<8xf32>
    %136 = vector.multi_reduction <add>, %135, %cst_91 [1] : vector<8x8xf32> to vector<8xf32>
    %137 = vector.shape_cast %136 : vector<8xf32> to vector<8x1xf32>
    %138 = tpu.reciprocal %137 : vector<8x1xf32> -> vector<8x1xf32>
    %139 = vector.broadcast %138 : vector<8x1xf32> to vector<8x8xf32>
    %140 = arith.mulf %135, %139 : vector<8x8xf32>
    %cst_92 = arith.constant dense<0.000000e+00> : vector<8x8xf32>
    %141 = tpu.matmul %140, %129, %cst_92 {dimension_numbers = #tpu.dot_dimension_numbers<[1], [0], [0], [1], [0, 0, 1, 1], [], []>} : vector<8x8xf32>, vector<8x8xf32>, vector<8x8xf32> -> vector<8x8xf32>
    %c3_93 = arith.constant 3 : index
    %c0_94 = arith.constant 0 : index
    %c0_95 = arith.constant 0 : index
    %142 = vector.load %arg12[%c3_93, %c0_94, %c0_95] : memref<4x8x32xf32, #tpu.memory_space<vmem>>, vector<1x8x32xf32>
    %143 = vector.shape_cast %142 : vector<1x8x32xf32> to vector<8x32xf32>
    %cst_96 = arith.constant dense<0.000000e+00> : vector<8x32xf32>
    %144 = tpu.matmul %141, %143, %cst_96 {dimension_numbers = #tpu.dot_dimension_numbers<[1], [0], [0], [1], [0, 0, 1, 1], [], []>} : vector<8x8xf32>, vector<8x32xf32>, vector<8x32xf32> -> vector<8x32xf32>
    %145 = arith.addf %116, %144 : vector<8x32xf32>
    %146 = arith.addf %4, %145 : vector<8x32xf32>
    %c0_97 = arith.constant 0 : index
    %c0_98 = arith.constant 0 : index
    %147 = vector.load %arg13[%c0_97, %c0_98] : memref<1x32xf32, #tpu.memory_space<vmem>>, vector<1x32xf32>
    %148 = vector.broadcast %147 : vector<1x32xf32> to vector<8x32xf32>
    %149 = arith.addf %146, %148 : vector<8x32xf32>
    %c0_99 = arith.constant 0 : index
    %c0_100 = arith.constant 0 : index
    %150 = vector.load %arg14[%c0_99, %c0_100] : memref<1x32xf32, #tpu.memory_space<vmem>>, vector<1x32xf32>
    %c0_101 = arith.constant 0 : index
    %c0_102 = arith.constant 0 : index
    %151 = vector.load %arg15[%c0_101, %c0_102] : memref<1x32xf32, #tpu.memory_space<vmem>>, vector<1x32xf32>
    %cst_103 = arith.constant dense<0.000000e+00> : vector<8xf32>
    %152 = vector.multi_reduction <add>, %149, %cst_103 [1] : vector<8x32xf32> to vector<8xf32>
    %153 = vector.shape_cast %152 : vector<8xf32> to vector<8x1xf32>
    %cst_104 = arith.constant 3.200000e+01 : f32
    %154 = vector.broadcast %cst_104 : f32 to vector<8x1xf32>
    %155 = arith.divf %153, %154 : vector<8x1xf32>
    %156 = vector.broadcast %155 : vector<8x1xf32> to vector<8x32xf32>
    %157 = arith.subf %149, %156 : vector<8x32xf32>
    %158 = arith.mulf %157, %157 : vector<8x32xf32>
    %cst_105 = arith.constant dense<0.000000e+00> : vector<8xf32>
    %159 = vector.multi_reduction <add>, %158, %cst_105 [1] : vector<8x32xf32> to vector<8xf32>
    %160 = vector.shape_cast %159 : vector<8xf32> to vector<8x1xf32>
    %cst_106 = arith.constant 3.200000e+01 : f32
    %161 = vector.broadcast %cst_106 : f32 to vector<8x1xf32>
    %162 = arith.divf %160, %161 : vector<8x1xf32>
    %163 = vector.broadcast %155 : vector<8x1xf32> to vector<8x32xf32>
    %164 = arith.subf %149, %163 : vector<8x32xf32>
    %cst_107 = arith.constant 9.99999974E-6 : f32
    %165 = vector.broadcast %cst_107 : f32 to vector<8x1xf32>
    %166 = arith.addf %162, %165 : vector<8x1xf32>
    %167 = math.rsqrt %166 : vector<8x1xf32>
    %168 = vector.broadcast %167 : vector<8x1xf32> to vector<8x32xf32>
    %169 = arith.mulf %164, %168 : vector<8x32xf32>
    %170 = vector.broadcast %150 : vector<1x32xf32> to vector<8x32xf32>
    %171 = arith.mulf %169, %170 : vector<8x32xf32>
    %172 = vector.broadcast %151 : vector<1x32xf32> to vector<8x32xf32>
    %173 = arith.addf %171, %172 : vector<8x32xf32>
    %c0_108 = arith.constant 0 : index
    %c0_109 = arith.constant 0 : index
    %174 = vector.load %arg16[%c0_108, %c0_109] : memref<32x128xf32, #tpu.memory_space<vmem>>, vector<32x128xf32>
    %cst_110 = arith.constant dense<0.000000e+00> : vector<8x128xf32>
    %175 = tpu.matmul %173, %174, %cst_110 {dimension_numbers = #tpu.dot_dimension_numbers<[1], [0], [0], [1], [0, 0, 1, 1], [], []>} : vector<8x32xf32>, vector<32x128xf32>, vector<8x128xf32> -> vector<8x128xf32>
    %c0_111 = arith.constant 0 : index
    %c0_112 = arith.constant 0 : index
    %176 = vector.load %arg17[%c0_111, %c0_112] : memref<1x128xf32, #tpu.memory_space<vmem>>, vector<1x128xf32>
    %177 = vector.broadcast %176 : vector<1x128xf32> to vector<8x128xf32>
    %178 = arith.addf %175, %177 : vector<8x128xf32>
    %cst_113 = arith.constant 5.000000e-01 : f32
    %179 = vector.broadcast %cst_113 : f32 to vector<8x128xf32>
    %180 = arith.mulf %179, %178 : vector<8x128xf32>
    %cst_114 = arith.constant 0.707106769 : f32
    %181 = vector.broadcast %cst_114 : f32 to vector<8x128xf32>
    %182 = arith.mulf %178, %181 : vector<8x128xf32>
    %183 = math.erf %182 : vector<8x128xf32>
    %cst_115 = arith.constant 1.000000e+00 : f32
    %184 = vector.broadcast %cst_115 : f32 to vector<8x128xf32>
    %185 = arith.addf %184, %183 : vector<8x128xf32>
    %186 = arith.mulf %180, %185 : vector<8x128xf32>
    %c0_116 = arith.constant 0 : index
    %c0_117 = arith.constant 0 : index
    %187 = vector.load %arg18[%c0_116, %c0_117] : memref<128x32xf32, #tpu.memory_space<vmem>>, vector<128x32xf32>
    %cst_118 = arith.constant dense<0.000000e+00> : vector<8x32xf32>
    %188 = tpu.matmul %186, %187, %cst_118 {dimension_numbers = #tpu.dot_dimension_numbers<[1], [0], [0], [1], [0, 0, 1, 1], [], []>} : vector<8x128xf32>, vector<128x32xf32>, vector<8x32xf32> -> vector<8x32xf32>
    %c0_119 = arith.constant 0 : index
    %c0_120 = arith.constant 0 : index
    %189 = vector.load %arg19[%c0_119, %c0_120] : memref<1x32xf32, #tpu.memory_space<vmem>>, vector<1x32xf32>
    %190 = vector.broadcast %189 : vector<1x32xf32> to vector<8x32xf32>
    %191 = arith.addf %188, %190 : vector<8x32xf32>
    %192 = arith.addf %149, %191 : vector<8x32xf32>
    %c0_121 = arith.constant 0 : index
    %c0_122 = arith.constant 0 : index
    %c0_123 = arith.constant 0 : index
    %193 = vector.load %arg20[%c0_121, %c0_122, %c0_123] : memref<1x8x32xf32, #tpu.memory_space<vmem>>, vector<1x8x32xf32>
    %194 = vector.shape_cast %193 : vector<1x8x32xf32> to vector<8x32xf32>
    %195 = vector.shape_cast %192 : vector<8x32xf32> to vector<1x8x32xf32>
    tpu.vector_store %arg20[%c0_121, %c0_122, %c0_123], %195 {strides = array<i32>} : memref<1x8x32xf32, #tpu.memory_space<vmem>>, vector<1x8x32xf32>,
    return
  }
  func.func @transform_0(%arg0: i32, %arg1: i32) -> (i32, i32, i32) {
    %c0_i32 = arith.constant 0 : i32
    %c0_i32_0 = arith.constant 0 : i32
    return %arg0, %arg1, %c0_i32 : i32, i32, i32
  }
  func.func @transform_1(%arg0: i32, %arg1: i32) -> (i32, i32, i32) {
    %c0_i32 = arith.constant 0 : i32
    %c0_i32_0 = arith.constant 0 : i32
    %c0_i32_1 = arith.constant 0 : i32
    return %arg0, %c0_i32, %c0_i32_0 : i32, i32, i32
  }
  func.func @transform_2(%arg0: i32, %arg1: i32) -> (i32, i32) {
    %c0_i32 = arith.constant 0 : i32
    %c0_i32_0 = arith.constant 0 : i32
    %c0_i32_1 = arith.constant 0 : i32
    return %c0_i32, %c0_i32_0 : i32, i32
  }
  func.func @transform_3(%arg0: i32, %arg1: i32) -> (i32, i32) {
    %c0_i32 = arith.constant 0 : i32
    %c0_i32_0 = arith.constant 0 : i32
    %c0_i32_1 = arith.constant 0 : i32
    return %c0_i32, %c0_i32_0 : i32, i32
  }
  func.func @transform_4(%arg0: i32, %arg1: i32) -> (i32, i32, i32) {
    %c0_i32 = arith.constant 0 : i32
    %c0_i32_0 = arith.constant 0 : i32
    %c0_i32_1 = arith.constant 0 : i32
    %c0_i32_2 = arith.constant 0 : i32
    return %c0_i32, %c0_i32_0, %c0_i32_1 : i32, i32, i32
  }
  func.func @transform_5(%arg0: i32, %arg1: i32) -> (i32, i32, i32) {
    %c0_i32 = arith.constant 0 : i32
    %c0_i32_0 = arith.constant 0 : i32
    %c0_i32_1 = arith.constant 0 : i32
    %c0_i32_2 = arith.constant 0 : i32
    return %c0_i32, %c0_i32_0, %c0_i32_1 : i32, i32, i32
  }
  func.func @transform_6(%arg0: i32, %arg1: i32) -> (i32, i32, i32) {
    %c0_i32 = arith.constant 0 : i32
    %c0_i32_0 = arith.constant 0 : i32
    %c0_i32_1 = arith.constant 0 : i32
    %c0_i32_2 = arith.constant 0 : i32
    return %c0_i32, %c0_i32_0, %c0_i32_1 : i32, i32, i32
  }
  func.func @transform_7(%arg0: i32, %arg1: i32) -> (i32, i32, i32) {
    %c0_i32 = arith.constant 0 : i32
    %c0_i32_0 = arith.constant 0 : i32
    %c0_i32_1 = arith.constant 0 : i32
    %c0_i32_2 = arith.constant 0 : i32
    return %c0_i32, %c0_i32_0, %c0_i32_1 : i32, i32, i32
  }
  func.func @transform_8(%arg0: i32, %arg1: i32) -> (i32, i32, i32) {
    %c0_i32 = arith.constant 0 : i32
    %c0_i32_0 = arith.constant 0 : i32
    %c0_i32_1 = arith.constant 0 : i32
    %c0_i32_2 = arith.constant 0 : i32
    return %c0_i32, %c0_i32_0, %c0_i32_1 : i32, i32, i32
  }
  func.func @transform_9(%arg0: i32, %arg1: i32) -> (i32, i32, i32) {
    %c0_i32 = arith.constant 0 : i32
    %c0_i32_0 = arith.constant 0 : i32
    %c0_i32_1 = arith.constant 0 : i32
    %c0_i32_2 = arith.constant 0 : i32
    return %c0_i32, %c0_i32_0, %c0_i32_1 : i32, i32, i32
  }
  func.func @transform_10(%arg0: i32, %arg1: i32) -> (i32, i32, i32) {
    %c0_i32 = arith.constant 0 : i32
    %c0_i32_0 = arith.constant 0 : i32
    %c0_i32_1 = arith.constant 0 : i32
    %c0_i32_2 = arith.constant 0 : i32
    return %c0_i32, %c0_i32_0, %c0_i32_1 : i32, i32, i32
  }
  func.func @transform_11(%arg0: i32, %arg1: i32) -> (i32, i32) {
    %c0_i32 = arith.constant 0 : i32
    %c0_i32_0 = arith.constant 0 : i32
    %c0_i32_1 = arith.constant 0 : i32
    return %c0_i32, %c0_i32_0 : i32, i32
  }
  func.func @transform_12(%arg0: i32, %arg1: i32) -> (i32, i32) {
    %c0_i32 = arith.constant 0 : i32
    %c0_i32_0 = arith.constant 0 : i32
    %c0_i32_1 = arith.constant 0 : i32
    return %c0_i32, %c0_i32_0 : i32, i32
  }
  func.func @transform_13(%arg0: i32, %arg1: i32) -> (i32, i32) {
    %c0_i32 = arith.constant 0 : i32
    %c0_i32_0 = arith.constant 0 : i32
    %c0_i32_1 = arith.constant 0 : i32
    return %c0_i32, %c0_i32_0 : i32, i32
  }
  func.func @transform_14(%arg0: i32, %arg1: i32) -> (i32, i32) {
    %c0_i32 = arith.constant 0 : i32
    %c0_i32_0 = arith.constant 0 : i32
    %c0_i32_1 = arith.constant 0 : i32
    return %c0_i32, %c0_i32_0 : i32, i32
  }
  func.func @transform_15(%arg0: i32, %arg1: i32) -> (i32, i32) {
    %c0_i32 = arith.constant 0 : i32
    %c0_i32_0 = arith.constant 0 : i32
    %c0_i32_1 = arith.constant 0 : i32
    return %c0_i32, %c0_i32_0 : i32, i32
  }
  func.func @transform_16(%arg0: i32, %arg1: i32) -> (i32, i32) {
    %c0_i32 = arith.constant 0 : i32
    %c0_i32_0 = arith.constant 0 : i32
    %c0_i32_1 = arith.constant 0 : i32
    return %c0_i32, %c0_i32_0 : i32, i32
  }
  func.func @transform_17(%arg0: i32, %arg1: i32) -> (i32, i32) {
    %c0_i32 = arith.constant 0 : i32
    %c0_i32_0 = arith.constant 0 : i32
    %c0_i32_1 = arith.constant 0 : i32
    return %c0_i32, %c0_i32_0 : i32, i32
  }
  func.func @transform_18(%arg0: i32, %arg1: i32) -> (i32, i32, i32) {
    %c0_i32 = arith.constant 0 : i32
    %c0_i32_0 = arith.constant 0 : i32
    return %arg0, %arg1, %c0_i32 : i32, i32, i32
  }
}

</mosaic_0001>

<llo_original>
// kernel: tpu_custom_call.1
$region0: #{tpu_custom_call.1}
  #allocation0 [shape = 'u32[]', space=smem, size = 0x4, offset = 0x4, fixed_abs, tag = 'smem constant byte address 0x4 - core index']
  #allocation1 [shape = 'u32[144,128]{1,0:T(1,128)}', space=vmem, size = 0x12000, scoped, tag = 'internal scratch']
  #allocation2 [shape = 'f32[4,8,8]{2,1,0:T(8,128)}', space=vmem, size = 0x4000, scoped, tag = 'scratch operand']
  #allocation3 [shape = 'f32[4,8,8]{2,1,0:T(8,128)}', space=vmem, size = 0x4000, scoped, tag = 'scratch operand']
  %s0 = inlined_call_operand.hbm [shape: f32[2,8,32], index: 0, kind: input, shape index: {}]
  %s1 = inlined_call_operand.hbm [shape: f32[2,8,32], index: 1, kind: input, shape index: {}]
  %s2 = inlined_call_operand.hbm [shape: f32[1,32], index: 2, kind: input, shape index: {}]
  %s3 = inlined_call_operand.hbm [shape: f32[1,32], index: 3, kind: input, shape index: {}]
  %s4 = inlined_call_operand.hbm [shape: f32[4,32,8], index: 4, kind: input, shape index: {}]
  %s5 = inlined_call_operand.hbm [shape: f32[4,1,8], index: 5, kind: input, shape index: {}]
  %s6 = inlined_call_operand.hbm [shape: f32[4,32,8], index: 6, kind: input, shape index: {}]
  %s7 = inlined_call_operand.hbm [shape: f32[4,1,8], index: 7, kind: input, shape index: {}]
  %s8 = inlined_call_operand.hbm [shape: f32[4,32,8], index: 8, kind: input, shape index: {}]
  %s9 = inlined_call_operand.hbm [shape: f32[4,1,8], index: 9, kind: input, shape index: {}]
  %s10 = inlined_call_operand.hbm [shape: f32[4,8,32], index: 10, kind: input, shape index: {}]
  %s11 = inlined_call_operand.hbm [shape: f32[1,32], index: 11, kind: input, shape index: {}]
  %s12 = inlined_call_operand.hbm [shape: f32[1,32], index: 12, kind: input, shape index: {}]
  %s13 = inlined_call_operand.hbm [shape: f32[1,32], index: 13, kind: input, shape index: {}]
  %s14 = inlined_call_operand.hbm [shape: f32[32,128], index: 14, kind: input, shape index: {}]
  %s15 = inlined_call_operand.hbm [shape: f32[1,128], index: 15, kind: input, shape index: {}]
  %s16 = inlined_call_operand.hbm [shape: f32[128,32], index: 16, kind: input, shape index: {}]
  %s17 = inlined_call_operand.hbm [shape: f32[1,32], index: 17, kind: input, shape index: {}]
  %s18 = inlined_call_operand.hbm [shape: f32[2,8,32], index: 18, kind: output, shape index: {}]
  %s19 = sld [smem:[#allocation0]]
  $region181: #{tpu_custom_call.1} parent=0
    _
  %s21 = ssub.s32 1, %s19
  %s22 = scalar_select 0, %s21, %s19
  $region1: #{tpu_custom_call.1} parent=0
    #allocation4 [shape = 'u8[8192]{0}', space=vmem, size = 0x2000, scoped, tag = 'input window, operand 0']
    #allocation5 [shape = 's32[2]{0}', space=sflag, size = 0x8, scoped, tag = 'scoped memory for tpu_custom_call.1']
    #allocation6 [shape = 's32[2]{0}', space=sflag, size = 0x8, scoped, tag = 'scoped memory for tpu_custom_call.1']
    #allocation7 [shape = 'u8[8192]{0}', space=vmem, size = 0x2000, scoped, tag = 'input window, operand 1']
    #allocation8 [shape = 's32[2]{0}', space=sflag, size = 0x8, scoped, tag = 'scoped memory for tpu_custom_call.1']
    #allocation9 [shape = 'u8[512]{0}', space=vmem, size = 0x400, scoped, tag = 'input window, operand 2, single buffered']
    #allocation10 [shape = 'u8[512]{0}', space=vmem, size = 0x400, scoped, tag = 'input window, operand 3, single buffered']
    #allocation11 [shape = 's32[1]{0}', space=sflag, size = 0x4, scoped, tag = 'scoped memory for tpu_custom_call.1']
    #allocation12 [shape = 'u8[65536]{0}', space=vmem, size = 0x10000, scoped, tag = 'input window, operand 4, single buffered']
    #allocation13 [shape = 'u8[2048]{0}', space=vmem, size = 0x800, scoped, tag = 'input window, operand 5, single buffered']
    #allocation14 [shape = 's32[1]{0}', space=sflag, size = 0x4, scoped, tag = 'scoped memory for tpu_custom_call.1']
    #allocation15 [shape = 'u8[65536]{0}', space=vmem, size = 0x10000, scoped, tag = 'input window, operand 6, single buffered']
    #allocation16 [shape = 'u8[2048]{0}', space=vmem, size = 0x800, scoped, tag = 'input window, operand 7, single buffered']
    #allocation17 [shape = 's32[1]{0}', space=sflag, size = 0x4, scoped, tag = 'scoped memory for tpu_custom_call.1']
    #allocation18 [shape = 'u8[65536]{0}', space=vmem, size = 0x10000, scoped, tag = 'input window, operand 8, single buffered']
    #allocation19 [shape = 'u8[2048]{0}', space=vmem, size = 0x800, scoped, tag = 'input window, operand 9, single buffered']
    #allocation20 [shape = 's32[1]{0}', space=sflag, size = 0x4, scoped, tag = 'scoped memory for tpu_custom_call.1']
    #allocation21 [shape = 'u8[16384]{0}', space=vmem, size = 0x4000, scoped, tag = 'input window, operand 10, single buffered']
    #allocation22 [shape = 'u8[512]{0}', space=vmem, size = 0x400, scoped, tag = 'input window, operand 11, single buffered']
    #allocation23 [shape = 's32[1]{0}', space=sflag, size = 0x4, scoped, tag = 'scoped memory for tpu_custom_call.1']
    #allocation24 [shape = 'u8[512]{0}', space=vmem, size = 0x400, scoped, tag = 'input window, operand 12, single buffered']
    #allocation25 [shape = 'u8[512]{0}', space=vmem, size = 0x400, scoped, tag = 'input window, operand 13, single buffered']
    #allocation26 [shape = 's32[1]{0}', space=sflag, size = 0x4, scoped, tag = 'scoped memory for tpu_custom_call.1']
    #allocation27 [shape = 'u8[16384]{0}', space=vmem, size = 0x4000, scoped, tag = 'input window, operand 14, single buffered']
    #allocation28 [shape = 'u8[512]{0}', space=vmem, size = 0x400, scoped, tag = 'input window, operand 15, single buffered']
    #allocation29 [shape = 's32[1]{0}', space=sflag, size = 0x4, scoped, tag = 'scoped memory for tpu_custom_call.1']
    #allocation30 [shape = 'u8[65536]{0}', space=vmem, size = 0x10000, scoped, tag = 'input window, operand 16, single buffered']
    #allocation31 [shape = 'u8[512]{0}', space=vmem, size = 0x400, scoped, tag = 'input window, operand 17, single buffered']
    #allocation32 [shape = 's32[1]{0}', space=sflag, size = 0x4, scoped, tag = 'scoped memory for tpu_custom_call.1']
    #allocation33 [shape = 'u8[8192]{0}', space=vmem, size = 0x2000, scoped, tag = 'output window, operand 0']
    %23 = vsyncpa [#allocation5], 0
    %s24 = scalar_lea.sflag [#allocation5], 1
    %25 = vsyncpa %s24, 0
    %26 = vsyncpa [#allocation8], 0
    %s27 = scalar_lea.sflag [#allocation8], 1
    %28 = vsyncpa %s27, 0
    %29 = vsyncpa [#allocation11], 0
    %30 = vsyncpa [#allocation14], 0
    %31 = vsyncpa [#allocation17], 0
    %32 = vsyncpa [#allocation20], 0
    %33 = vsyncpa [#allocation23], 0
    %34 = vsyncpa [#allocation26], 0
    %35 = vsyncpa [#allocation29], 0
    %36 = vsyncpa [#allocation32], 0
    %37 = vsyncpa [#allocation6], 0
    %s38 = scalar_lea.sflag [#allocation6], 1
    %39 = vsyncpa %s38, 0
    loop: start=0, step=1, limit=4
    $region2: #{tpu_custom_call.1} parent=1 // loop_pre_header
      _
    $region3: #{tpu_custom_call.1} parent=1 // loop_header
      %s41 = sphi 0, %s45
      %p42 = scmp.ge.s32.totalorder %s41, 4
      %s48 = sphi 0, %s60
      %s49 = sphi 0, %s56
      %s50 = sphi 0, %s48
      %s51 = sphi 0, %s49
      %s52 = sphi 0, %s50
      %s53 = sphi 0, %s51
      %s65 = sphi 0, %s67
      %s68 = sphi 0, %s65
      %s69 = sphi 0, %s68
      %s85 = sphi 0, %s69
      %s91 = sphi 0, %s93
      %s94 = sphi 0, %s91
      %s95 = sphi 0, %s94
      %s111 = sphi 0, %s95
      %s115 = sphi 0, %s115
      %s117 = sphi 0, %s115
      %s118 = sphi 0, %s117
      %s132 = sphi 0, %s118
      %s136 = sphi 0, %s136
      %s138 = sphi 0, %s136
      %s139 = sphi 0, %s138
      %s153 = sphi 0, %s139
      %s157 = sphi 0, %s157
      %s159 = sphi 0, %s157
      %s160 = sphi 0, %s159
      %s174 = sphi 0, %s160
      %s178 = sphi 0, %s178
      %s180 = sphi 0, %s178
      %s181 = sphi 0, %s180
      %s195 = sphi 0, %s181
      %s199 = sphi 0, %s199
      %s201 = sphi 0, %s199
      %s202 = sphi 0, %s201
      %s216 = sphi 0, %s202
      %s220 = sphi 0, %s220
      %s222 = sphi 0, %s220
      %s223 = sphi 0, %s222
      %s237 = sphi 0, %s223
      %s241 = sphi 0, %s241
      %s243 = sphi 0, %s241
      %s244 = sphi 0, %s243
      %s258 = sphi 0, %s244
      %s262 = sphi 0, %s262
      %s264 = sphi 0, %s262
      %s265 = sphi 0, %s264
      %s279 = sphi 0, %s265
      %s283 = sphi 0, %s283
      %s285 = sphi 0, %s283
      %s286 = sphi 0, %s285
      %s300 = sphi 0, %s286
      %s304 = sphi 0, %s304
      %s306 = sphi 0, %s304
      %s307 = sphi 0, %s306
      %s321 = sphi 0, %s307
      %s325 = sphi 0, %s325
      %s327 = sphi 0, %s325
      %s328 = sphi 0, %s327
      %s342 = sphi 0, %s328
      %s346 = sphi 0, %s346
      %s348 = sphi 0, %s346
      %s349 = sphi 0, %s348
      %s363 = sphi 0, %s349
      %s367 = sphi 0, %s367
      %s369 = sphi 0, %s367
      %s370 = sphi 0, %s369
      %s384 = sphi 0, %s370
      %s388 = sphi 0, %s388
      %s390 = sphi 0, %s388
      %s391 = sphi 0, %s390
      %s405 = sphi 0, %s391
      %s409 = sphi 0, %s409
      %s411 = sphi 0, %s409
      %s412 = sphi 0, %s411
      %s426 = sphi 0, %s412
      %s430 = sphi 0, %s430
      %s432 = sphi 0, %s430
      %s433 = sphi 0, %s432
      %s447 = sphi 0, %s433
      %s455 = sphi 0, %s457
      %s458 = sphi 0, %s455
      %s459 = sphi 0, %s458
      %s475 = sphi 0, %s459
    $region4: #{tpu_custom_call.1} parent=1 // loop_header_branch
      %44 = sbr.rel (%p42) target = $region8
    $region5: #{tpu_custom_call.1} parent=1 // loop_body
      %s46 = ssub.s32 %s41, 1
      %s47 = ssub.s32 %s41, 2
      %s54 = sadd.s32 1, %s49
      %p55 = scmp.ge.s32.totalorder %s54, 1
      %s56 = scalar_select %p55, 0, %s54
      %s57 = sadd.s32 1, %s48
      %s58 = scalar_select %p55, %s57, %s48
      %p59 = scmp.ge.s32.totalorder %s58, 2
      %s60 = scalar_select %p59, 0, %s58
      %s61 = ssub.s32 %s48, %s60
      %s62 = ssub.s32 %s49, %s56
      %s63 = sor.u32 %s61, %s62
      %p64 = scmp.eq.s32.totalorder %s63, 0
      %s66 = sadd.s32 %s65, 1
      %s67 = scalar_select %p64, %s65, %s66
      %p70 = pneg %p64
      %p71 = scmp.eq.s32.totalorder %s41, 1
      %p72 = por %p70, %p71
      %p73 = scmp.ne.s32.totalorder %s65, %s68
      %p74 = scmp.eq.s32.totalorder %s41, 0
      %p75 = por %p73, %p74
      %p76 = scmp.ne.s32.totalorder %s65, %s68
      %p77 = scmp.eq.s32.totalorder %s46, 1
      %p78 = por %p76, %p77
      %p79 = scmp.ne.s32.totalorder %s68, %s69
      %p80 = scmp.eq.s32.totalorder %s46, 0
      %p81 = por %p79, %p80
      %p82 = scmp.ne.s32.totalorder %s68, %s69
      %p83 = scmp.eq.s32.totalorder %s47, 1
      %p84 = por %p82, %p83
      %p86 = scmp.ne.s32.totalorder %s69, %s85
      %p87 = scmp.eq.s32.totalorder %s47, 0
      %p88 = por %p86, %p87
      %s89 = ssub.s32 %s48, %s60
      %p90 = scmp.eq.s32.totalorder %s89, 0
      %s92 = sadd.s32 %s91, 1
      %s93 = scalar_select %p90, %s91, %s92
      %p96 = pneg %p90
      %p97 = scmp.eq.s32.totalorder %s41, 1
      %p98 = por %p96, %p97
      %p99 = scmp.ne.s32.totalorder %s91, %s94
      %p100 = scmp.eq.s32.totalorder %s41, 0
      %p101 = por %p99, %p100
      %p102 = scmp.ne.s32.totalorder %s91, %s94
      %p103 = scmp.eq.s32.totalorder %s46, 1
      %p104 = por %p102, %p103
      %p105 = scmp.ne.s32.totalorder %s94, %s95
      %p106 = scmp.eq.s32.totalorder %s46, 0
      %p107 = por %p105, %p106
      %p108 = scmp.ne.s32.totalorder %s94, %s95
      %p109 = scmp.eq.s32.totalorder %s47, 1
      %p110 = por %p108, %p109
      %p112 = scmp.ne.s32.totalorder %s95, %s111
      %p113 = scmp.eq.s32.totalorder %s47, 0
      %p114 = por %p112, %p113
      %s116 = sadd.s32 %s115, 1
      %p119 = scmp.eq.s32.totalorder %s41, 1
      %p120 = scmp.ne.s32.totalorder %s115, %s117
      %p121 = scmp.eq.s32.totalorder %s41, 0
      %p122 = por %p120, %p121
      %p123 = scmp.ne.s32.totalorder %s115, %s117
      %p124 = scmp.eq.s32.totalorder %s46, 1
      %p125 = por %p123, %p124
      %p126 = scmp.ne.s32.totalorder %s117, %s118
      %p127 = scmp.eq.s32.totalorder %s46, 0
      %p128 = por %p126, %p127
      %p129 = scmp.ne.s32.totalorder %s117, %s118
      %p130 = scmp.eq.s32.totalorder %s47, 1
      %p131 = por %p129, %p130
      %p133 = scmp.ne.s32.totalorder %s118, %s132
      %p134 = scmp.eq.s32.totalorder %s47, 0
      %p135 = por %p133, %p134
      %s137 = sadd.s32 %s136, 1
      %p140 = scmp.eq.s32.totalorder %s41, 1
      %p141 = scmp.ne.s32.totalorder %s136, %s138
      %p142 = scmp.eq.s32.totalorder %s41, 0
      %p143 = por %p141, %p142
      %p144 = scmp.ne.s32.totalorder %s136, %s138
      %p145 = scmp.eq.s32.totalorder %s46, 1
      %p146 = por %p144, %p145
      %p147 = scmp.ne.s32.totalorder %s138, %s139
      %p148 = scmp.eq.s32.totalorder %s46, 0
      %p149 = por %p147, %p148
      %p150 = scmp.ne.s32.totalorder %s138, %s139
      %p151 = scmp.eq.s32.totalorder %s47, 1
      %p152 = por %p150, %p151
      %p154 = scmp.ne.s32.totalorder %s139, %s153
      %p155 = scmp.eq.s32.totalorder %s47, 0
      %p156 = por %p154, %p155
      %s158 = sadd.s32 %s157, 1
      %p161 = scmp.eq.s32.totalorder %s41, 1
      %p162 = scmp.ne.s32.totalorder %s157, %s159
      %p163 = scmp.eq.s32.totalorder %s41, 0
      %p164 = por %p162, %p163
      %p165 = scmp.ne.s32.totalorder %s157, %s159
      %p166 = scmp.eq.s32.totalorder %s46, 1
      %p167 = por %p165, %p166
      %p168 = scmp.ne.s32.totalorder %s159, %s160
      %p169 = scmp.eq.s32.totalorder %s46, 0
      %p170 = por %p168, %p169
      %p171 = scmp.ne.s32.totalorder %s159, %s160
      %p172 = scmp.eq.s32.totalorder %s47, 1
      %p173 = por %p171, %p172
      %p175 = scmp.ne.s32.totalorder %s160, %s174
      %p176 = scmp.eq.s32.totalorder %s47, 0
      %p177 = por %p175, %p176
      %s179 = sadd.s32 %s178, 1
      %p182 = scmp.eq.s32.totalorder %s41, 1
      %p183 = scmp.ne.s32.totalorder %s178, %s180
      %p184 = scmp.eq.s32.totalorder %s41, 0
      %p185 = por %p183, %p184
      %p186 = scmp.ne.s32.totalorder %s178, %s180
      %p187 = scmp.eq.s32.totalorder %s46, 1
      %p188 = por %p186, %p187
      %p189 = scmp.ne.s32.totalorder %s180, %s181
      %p190 = scmp.eq.s32.totalorder %s46, 0
      %p191 = por %p189, %p190
      %p192 = scmp.ne.s32.totalorder %s180, %s181
      %p193 = scmp.eq.s32.totalorder %s47, 1
      %p194 = por %p192, %p193
      %p196 = scmp.ne.s32.totalorder %s181, %s195
      %p197 = scmp.eq.s32.totalorder %s47, 0
      %p198 = por %p196, %p197
      %s200 = sadd.s32 %s199, 1
      %p203 = scmp.eq.s32.totalorder %s41, 1
      %p204 = scmp.ne.s32.totalorder %s199, %s201
      %p205 = scmp.eq.s32.totalorder %s41, 0
      %p206 = por %p204, %p205
      %p207 = scmp.ne.s32.totalorder %s199, %s201
      %p208 = scmp.eq.s32.totalorder %s46, 1
      %p209 = por %p207, %p208
      %p210 = scmp.ne.s32.totalorder %s201, %s202
      %p211 = scmp.eq.s32.totalorder %s46, 0
      %p212 = por %p210, %p211
      %p213 = scmp.ne.s32.totalorder %s201, %s202
      %p214 = scmp.eq.s32.totalorder %s47, 1
      %p215 = por %p213, %p214
      %p217 = scmp.ne.s32.totalorder %s202, %s216
      %p218 = scmp.eq.s32.totalorder %s47, 0
      %p219 = por %p217, %p218
      %s221 = sadd.s32 %s220, 1
      %p224 = scmp.eq.s32.totalorder %s41, 1
      %p225 = scmp.ne.s32.totalorder %s220, %s222
      %p226 = scmp.eq.s32.totalorder %s41, 0
      %p227 = por %p225, %p226
      %p228 = scmp.ne.s32.totalorder %s220, %s222
      %p229 = scmp.eq.s32.totalorder %s46, 1
      %p230 = por %p228, %p229
      %p231 = scmp.ne.s32.totalorder %s222, %s223
      %p232 = scmp.eq.s32.totalorder %s46, 0
      %p233 = por %p231, %p232
      %p234 = scmp.ne.s32.totalorder %s222, %s223
      %p235 = scmp.eq.s32.totalorder %s47, 1
      %p236 = por %p234, %p235
      %p238 = scmp.ne.s32.totalorder %s223, %s237
      %p239 = scmp.eq.s32.totalorder %s47, 0
      %p240 = por %p238, %p239
      %s242 = sadd.s32 %s241, 1
      %p245 = scmp.eq.s32.totalorder %s41, 1
      %p246 = scmp.ne.s32.totalorder %s241, %s243
      %p247 = scmp.eq.s32.totalorder %s41, 0
      %p248 = por %p246, %p247
      %p249 = scmp.ne.s32.totalorder %s241, %s243
      %p250 = scmp.eq.s32.totalorder %s46, 1
      %p251 = por %p249, %p250
      %p252 = scmp.ne.s32.totalorder %s243, %s244
      %p253 = scmp.eq.s32.totalorder %s46, 0
      %p254 = por %p252, %p253
      %p255 = scmp.ne.s32.totalorder %s243, %s244
      %p256 = scmp.eq.s32.totalorder %s47, 1
      %p257 = por %p255, %p256
      %p259 = scmp.ne.s32.totalorder %s244, %s258
      %p260 = scmp.eq.s32.totalorder %s47, 0
      %p261 = por %p259, %p260
      %s263 = sadd.s32 %s262, 1
      %p266 = scmp.eq.s32.totalorder %s41, 1
      %p267 = scmp.ne.s32.totalorder %s262, %s264
      %p268 = scmp.eq.s32.totalorder %s41, 0
      %p269 = por %p267, %p268
      %p270 = scmp.ne.s32.totalorder %s262, %s264
      %p271 = scmp.eq.s32.totalorder %s46, 1
      %p272 = por %p270, %p271
      %p273 = scmp.ne.s32.totalorder %s264, %s265
      %p274 = scmp.eq.s32.totalorder %s46, 0
      %p275 = por %p273, %p274
      %p276 = scmp.ne.s32.totalorder %s264, %s265
      %p277 = scmp.eq.s32.totalorder %s47, 1
      %p278 = por %p276, %p277
      %p280 = scmp.ne.s32.totalorder %s265, %s279
      %p281 = scmp.eq.s32.totalorder %s47, 0
      %p282 = por %p280, %p281
      %s284 = sadd.s32 %s283, 1
      %p287 = scmp.eq.s32.totalorder %s41, 1
      %p288 = scmp.ne.s32.totalorder %s283, %s285
      %p289 = scmp.eq.s32.totalorder %s41, 0
      %p290 = por %p288, %p289
      %p291 = scmp.ne.s32.totalorder %s283, %s285
      %p292 = scmp.eq.s32.totalorder %s46, 1
      %p293 = por %p291, %p292
      %p294 = scmp.ne.s32.totalorder %s285, %s286
      %p295 = scmp.eq.s32.totalorder %s46, 0
      %p296 = por %p294, %p295
      %p297 = scmp.ne.s32.totalorder %s285, %s286
      %p298 = scmp.eq.s32.totalorder %s47, 1
      %p299 = por %p297, %p298
      %p301 = scmp.ne.s32.totalorder %s286, %s300
      %p302 = scmp.eq.s32.totalorder %s47, 0
      %p303 = por %p301, %p302
      %s305 = sadd.s32 %s304, 1
      %p308 = scmp.eq.s32.totalorder %s41, 1
      %p309 = scmp.ne.s32.totalorder %s304, %s306
      %p310 = scmp.eq.s32.totalorder %s41, 0
      %p311 = por %p309, %p310
      %p312 = scmp.ne.s32.totalorder %s304, %s306
      %p313 = scmp.eq.s32.totalorder %s46, 1
      %p314 = por %p312, %p313
      %p315 = scmp.ne.s32.totalorder %s306, %s307
      %p316 = scmp.eq.s32.totalorder %s46, 0
      %p317 = por %p315, %p316
      %p318 = scmp.ne.s32.totalorder %s306, %s307
      %p319 = scmp.eq.s32.totalorder %s47, 1
      %p320 = por %p318, %p319
      %p322 = scmp.ne.s32.totalorder %s307, %s321
      %p323 = scmp.eq.s32.totalorder %s47, 0
      %p324 = por %p322, %p323
      %s326 = sadd.s32 %s325, 1
      %p329 = scmp.eq.s32.totalorder %s41, 1
      %p330 = scmp.ne.s32.totalorder %s325, %s327
      %p331 = scmp.eq.s32.totalorder %s41, 0
      %p332 = por %p330, %p331
      %p333 = scmp.ne.s32.totalorder %s325, %s327
      %p334 = scmp.eq.s32.totalorder %s46, 1
      %p335 = por %p333, %p334
      %p336 = scmp.ne.s32.totalorder %s327, %s328
      %p337 = scmp.eq.s32.totalorder %s46, 0
      %p338 = por %p336, %p337
      %p339 = scmp.ne.s32.totalorder %s327, %s328
      %p340 = scmp.eq.s32.totalorder %s47, 1
      %p341 = por %p339, %p340
      %p343 = scmp.ne.s32.totalorder %s328, %s342
      %p344 = scmp.eq.s32.totalorder %s47, 0
      %p345 = por %p343, %p344
      %s347 = sadd.s32 %s346, 1
      %p350 = scmp.eq.s32.totalorder %s41, 1
      %p351 = scmp.ne.s32.totalorder %s346, %s348
      %p352 = scmp.eq.s32.totalorder %s41, 0
      %p353 = por %p351, %p352
      %p354 = scmp.ne.s32.totalorder %s346, %s348
      %p355 = scmp.eq.s32.totalorder %s46, 1
      %p356 = por %p354, %p355
      %p357 = scmp.ne.s32.totalorder %s348, %s349
      %p358 = scmp.eq.s32.totalorder %s46, 0
      %p359 = por %p357, %p358
      %p360 = scmp.ne.s32.totalorder %s348, %s349
      %p361 = scmp.eq.s32.totalorder %s47, 1
      %p362 = por %p360, %p361
      %p364 = scmp.ne.s32.totalorder %s349, %s363
      %p365 = scmp.eq.s32.totalorder %s47, 0
      %p366 = por %p364, %p365
      %s368 = sadd.s32 %s367, 1
      %p371 = scmp.eq.s32.totalorder %s41, 1
      %p372 = scmp.ne.s32.totalorder %s367, %s369
      %p373 = scmp.eq.s32.totalorder %s41, 0
      %p374 = por %p372, %p373
      %p375 = scmp.ne.s32.totalorder %s367, %s369
      %p376 = scmp.eq.s32.totalorder %s46, 1
      %p377 = por %p375, %p376
      %p378 = scmp.ne.s32.totalorder %s369, %s370
      %p379 = scmp.eq.s32.totalorder %s46, 0
      %p380 = por %p378, %p379
      %p381 = scmp.ne.s32.totalorder %s369, %s370
      %p382 = scmp.eq.s32.totalorder %s47, 1
      %p383 = por %p381, %p382
      %p385 = scmp.ne.s32.totalorder %s370, %s384
      %p386 = scmp.eq.s32.totalorder %s47, 0
      %p387 = por %p385, %p386
      %s389 = sadd.s32 %s388, 1
      %p392 = scmp.eq.s32.totalorder %s41, 1
      %p393 = scmp.ne.s32.totalorder %s388, %s390
      %p394 = scmp.eq.s32.totalorder %s41, 0
      %p395 = por %p393, %p394
      %p396 = scmp.ne.s32.totalorder %s388, %s390
      %p397 = scmp.eq.s32.totalorder %s46, 1
      %p398 = por %p396, %p397
      %p399 = scmp.ne.s32.totalorder %s390, %s391
      %p400 = scmp.eq.s32.totalorder %s46, 0
      %p401 = por %p399, %p400
      %p402 = scmp.ne.s32.totalorder %s390, %s391
      %p403 = scmp.eq.s32.totalorder %s47, 1
      %p404 = por %p402, %p403
      %p406 = scmp.ne.s32.totalorder %s391, %s405
      %p407 = scmp.eq.s32.totalorder %s47, 0
      %p408 = por %p406, %p407
      %s410 = sadd.s32 %s409, 1
      %p413 = scmp.eq.s32.totalorder %s41, 1
      %p414 = scmp.ne.s32.totalorder %s409, %s411
      %p415 = scmp.eq.s32.totalorder %s41, 0
      %p416 = por %p414, %p415
      %p417 = scmp.ne.s32.totalorder %s409, %s411
      %p418 = scmp.eq.s32.totalorder %s46, 1
      %p419 = por %p417, %p418
      %p420 = scmp.ne.s32.totalorder %s411, %s412
      %p421 = scmp.eq.s32.totalorder %s46, 0
      %p422 = por %p420, %p421
      %p423 = scmp.ne.s32.totalorder %s411, %s412
      %p424 = scmp.eq.s32.totalorder %s47, 1
      %p425 = por %p423, %p424
      %p427 = scmp.ne.s32.totalorder %s412, %s426
      %p428 = scmp.eq.s32.totalorder %s47, 0
      %p429 = por %p427, %p428
      %s431 = sadd.s32 %s430, 1
      %p434 = scmp.eq.s32.totalorder %s41, 1
      %p435 = scmp.ne.s32.totalorder %s430, %s432
      %p436 = scmp.eq.s32.totalorder %s41, 0
      %p437 = por %p435, %p436
      %p438 = scmp.ne.s32.totalorder %s430, %s432
      %p439 = scmp.eq.s32.totalorder %s46, 1
      %p440 = por %p438, %p439
      %p441 = scmp.ne.s32.totalorder %s432, %s433
      %p442 = scmp.eq.s32.totalorder %s46, 0
      %p443 = por %p441, %p442
      %p444 = scmp.ne.s32.totalorder %s432, %s433
      %p445 = scmp.eq.s32.totalorder %s47, 1
      %p446 = por %p444, %p445
      %p448 = scmp.ne.s32.totalorder %s433, %s447
      %p449 = scmp.eq.s32.totalorder %s47, 0
      %p450 = por %p448, %p449
      %s451 = ssub.s32 %s48, %s60
      %s452 = ssub.s32 %s49, %s56
      %s453 = sor.u32 %s451, %s452
      %p454 = scmp.eq.s32.totalorder %s453, 0
      %s456 = sadd.s32 %s455, 1
      %s457 = scalar_select %p454, %s455, %s456
      %p460 = pneg %p454
      %p461 = scmp.eq.s32.totalorder %s41, 1
      %p462 = por %p460, %p461
      %p463 = scmp.ne.s32.totalorder %s455, %s458
      %p464 = scmp.eq.s32.totalorder %s41, 0
      %p465 = por %p463, %p464
      %p466 = scmp.ne.s32.totalorder %s455, %s458
      %p467 = scmp.eq.s32.totalorder %s46, 1
      %p468 = por %p466, %p467
      %p469 = scmp.ne.s32.totalorder %s458, %s459
      %p470 = scmp.eq.s32.totalorder %s46, 0
      %p471 = por %p469, %p470
      %p472 = scmp.ne.s32.totalorder %s458, %s459
      %p473 = scmp.eq.s32.totalorder %s47, 1
      %p474 = por %p472, %p473
      %p476 = scmp.ne.s32.totalorder %s459, %s475
      %p477 = scmp.eq.s32.totalorder %s47, 0
      %p478 = por %p476, %p477
      %p479 = scmp.le.s32.totalorder 1, %s41
      %p480 = scmp.lt.s32.totalorder %s41, 3
      %p481 = pnand %p479, %p480
      %p482 = pneg %p481
      // Predicated region
      $region9: #{tpu_custom_call.1} parent=5 // pred_check
        _
      $region10: #{tpu_custom_call.1} parent=5 // pred_check_branch
        %484 = sbr.rel (%p481) target = $region12
      $region11: #{tpu_custom_call.1} parent=5 // pred_region
        %s485 = ssub.s32 %s41, 1
        // Predicated region
        $region13: #{tpu_custom_call.1} parent=11 // pred_check
          %p486 = pneg %p128
        $region14: #{tpu_custom_call.1} parent=11 // pred_check_branch
          %488 = sbr.rel (%p486) target = $region16
        $region15: #{tpu_custom_call.1} parent=11 // pred_region
          %s490 = ssub.s32 16, 16
          %491 = vsyncadd [#allocation8], %s490
          %s493 = sshll.u32 [#allocation9], 4
          %s494 = int_to_ptr.vmem [resolvable:$true] %s493
          %496 = dma.hbm_to_vmem [thread:$0]  %s2, 16, %s494, [#allocation8]
        $region16: #{tpu_custom_call.1} parent=11 // pred_fallthru
          _
        // Predicated region
        $region17: #{tpu_custom_call.1} parent=11 // pred_check
          %p497 = pneg %p149
        $region18: #{tpu_custom_call.1} parent=11 // pred_check_branch
          %499 = sbr.rel (%p497) target = $region20
        $region19: #{tpu_custom_call.1} parent=11 // pred_region
          %s501 = ssub.s32 16, 16
          %502 = vsyncadd [#allocation11], %s501
          %s504 = sshll.u32 [#allocation10], 4
          %s505 = int_to_ptr.vmem [resolvable:$true] %s504
          %507 = dma.hbm_to_vmem [thread:$0]  %s3, 16, %s505, [#allocation11]
        $region20: #{tpu_custom_call.1} parent=11 // pred_fallthru
          _
        // Predicated region
        $region21: #{tpu_custom_call.1} parent=11 // pred_check
          %p508 = pneg %p170
        $region22: #{tpu_custom_call.1} parent=11 // pred_check_branch
          %510 = sbr.rel (%p508) target = $region24
        $region23: #{tpu_custom_call.1} parent=11 // pred_region
          %s512 = ssub.s32 2048, 2048
          %513 = vsyncadd [#allocation11], %s512
          %s514 = sshll.u32 [#allocation12], 4
          %s515 = int_to_ptr.vmem [resolvable:$true] %s514
          %520 = dma.hbm_to_vmem [thread:$0]  %s4, 2048, %s515, [#allocation11], 128, 128, 8
        $region24: #{tpu_custom_call.1} parent=11 // pred_fallthru
          _
        // Predicated region
        $region25: #{tpu_custom_call.1} parent=11 // pred_check
          %p521 = pneg %p191
        $region26: #{tpu_custom_call.1} parent=11 // pred_check_branch
          %523 = sbr.rel (%p521) target = $region28
        $region27: #{tpu_custom_call.1} parent=11 // pred_region
          %s525 = ssub.s32 64, 64
          %526 = vsyncadd [#allocation14], %s525
          %s527 = sshll.u32 [#allocation13], 4
          %s528 = int_to_ptr.vmem [resolvable:$true] %s527
          %533 = dma.hbm_to_vmem [thread:$0]  %s5, 64, %s528, [#allocation14], 16, 16, 1
        $region28: #{tpu_custom_call.1} parent=11 // pred_fallthru
          _
        // Predicated region
        $region29: #{tpu_custom_call.1} parent=11 // pred_check
          %p534 = pneg %p212
        $region30: #{tpu_custom_call.1} parent=11 // pred_check_branch
          %536 = sbr.rel (%p534) target = $region32
        $region31: #{tpu_custom_call.1} parent=11 // pred_region
          %s538 = ssub.s32 2048, 2048
          %539 = vsyncadd [#allocation14], %s538
          %s540 = sshll.u32 [#allocation15], 4
          %s541 = int_to_ptr.vmem [resolvable:$true] %s540
          %546 = dma.hbm_to_vmem [thread:$0]  %s6, 2048, %s541, [#allocation14], 128, 128, 8
        $region32: #{tpu_custom_call.1} parent=11 // pred_fallthru
          _
        // Predicated region
        $region33: #{tpu_custom_call.1} parent=11 // pred_check
          %p547 = pneg %p233
        $region34: #{tpu_custom_call.1} parent=11 // pred_check_branch
          %549 = sbr.rel (%p547) target = $region36
        $region35: #{tpu_custom_call.1} parent=11 // pred_region
          %s551 = ssub.s32 64, 64
          %552 = vsyncadd [#allocation17], %s551
          %s553 = sshll.u32 [#allocation16], 4
          %s554 = int_to_ptr.vmem [resolvable:$true] %s553
          %559 = dma.hbm_to_vmem [thread:$0]  %s7, 64, %s554, [#allocation17], 16, 16, 1
        $region36: #{tpu_custom_call.1} parent=11 // pred_fallthru
          _
        // Predicated region
        $region37: #{tpu_custom_call.1} parent=11 // pred_check
          %p560 = pneg %p254
        $region38: #{tpu_custom_call.1} parent=11 // pred_check_branch
          %562 = sbr.rel (%p560) target = $region40
        $region39: #{tpu_custom_call.1} parent=11 // pred_region
          %s564 = ssub.s32 2048, 2048
          %565 = vsyncadd [#allocation17], %s564
          %s566 = sshll.u32 [#allocation18], 4
          %s567 = int_to_ptr.vmem [resolvable:$true] %s566
          %572 = dma.hbm_to_vmem [thread:$0]  %s8, 2048, %s567, [#allocation17], 128, 128, 8
        $region40: #{tpu_custom_call.1} parent=11 // pred_fallthru
          _
        // Predicated region
        $region41: #{tpu_custom_call.1} parent=11 // pred_check
          %p573 = pneg %p275
        $region42: #{tpu_custom_call.1} parent=11 // pred_check_branch
          %575 = sbr.rel (%p573) target = $region44
        $region43: #{tpu_custom_call.1} parent=11 // pred_region
          %s577 = ssub.s32 64, 64
          %578 = vsyncadd [#allocation20], %s577
          %s579 = sshll.u32 [#allocation19], 4
          %s580 = int_to_ptr.vmem [resolvable:$true] %s579
          %585 = dma.hbm_to_vmem [thread:$0]  %s9, 64, %s580, [#allocation20], 16, 16, 1
        $region44: #{tpu_custom_call.1} parent=11 // pred_fallthru
          _
        // Predicated region
        $region45: #{tpu_custom_call.1} parent=11 // pred_check
          %p586 = pneg %p296
        $region46: #{tpu_custom_call.1} parent=11 // pred_check_branch
          %588 = sbr.rel (%p586) target = $region48
        $region47: #{tpu_custom_call.1} parent=11 // pred_region
          %s590 = ssub.s32 512, 512
          %591 = vsyncadd [#allocation20], %s590
          %s592 = sshll.u32 [#allocation21], 4
          %s593 = int_to_ptr.vmem [resolvable:$true] %s592
          %598 = dma.hbm_to_vmem [thread:$0]  %s10, 512, %s593, [#allocation20], 128, 128, 8
        $region48: #{tpu_custom_call.1} parent=11 // pred_fallthru
          _
        // Predicated region
        $region49: #{tpu_custom_call.1} parent=11 // pred_check
          %p599 = pneg %p317
        $region50: #{tpu_custom_call.1} parent=11 // pred_check_branch
          %601 = sbr.rel (%p599) target = $region52
        $region51: #{tpu_custom_call.1} parent=11 // pred_region
          %s603 = ssub.s32 16, 16
          %604 = vsyncadd [#allocation23], %s603
          %s606 = sshll.u32 [#allocation22], 4
          %s607 = int_to_ptr.vmem [resolvable:$true] %s606
          %609 = dma.hbm_to_vmem [thread:$0]  %s11, 16, %s607, [#allocation23]
        $region52: #{tpu_custom_call.1} parent=11 // pred_fallthru
          _
        // Predicated region
        $region53: #{tpu_custom_call.1} parent=11 // pred_check
          %p610 = pneg %p338
        $region54: #{tpu_custom_call.1} parent=11 // pred_check_branch
          %612 = sbr.rel (%p610) target = $region56
        $region55: #{tpu_custom_call.1} parent=11 // pred_region
          %s614 = ssub.s32 16, 16
          %615 = vsyncadd [#allocation23], %s614
          %s617 = sshll.u32 [#allocation24], 4
          %s618 = int_to_ptr.vmem [resolvable:$true] %s617
          %620 = dma.hbm_to_vmem [thread:$0]  %s12, 16, %s618, [#allocation23]
        $region56: #{tpu_custom_call.1} parent=11 // pred_fallthru
          _
        // Predicated region
        $region57: #{tpu_custom_call.1} parent=11 // pred_check
          %p621 = pneg %p359
        $region58: #{tpu_custom_call.1} parent=11 // pred_check_branch
          %623 = sbr.rel (%p621) target = $region60
        $region59: #{tpu_custom_call.1} parent=11 // pred_region
          %s625 = ssub.s32 16, 16
          %626 = vsyncadd [#allocation26], %s625
          %s628 = sshll.u32 [#allocation25], 4
          %s629 = int_to_ptr.vmem [resolvable:$true] %s628
          %631 = dma.hbm_to_vmem [thread:$0]  %s13, 16, %s629, [#allocation26]
        $region60: #{tpu_custom_call.1} parent=11 // pred_fallthru
          _
        // Predicated region
        $region61: #{tpu_custom_call.1} parent=11 // pred_check
          %p632 = pneg %p380
        $region62: #{tpu_custom_call.1} parent=11 // pred_check_branch
          %634 = sbr.rel (%p632) target = $region64
        $region63: #{tpu_custom_call.1} parent=11 // pred_region
          %s636 = ssub.s32 512, 512
          %637 = vsyncadd [#allocation26], %s636
          %s638 = sshll.u32 [#allocation27], 4
          %s639 = int_to_ptr.vmem [resolvable:$true] %s638
          %644 = dma.hbm_to_vmem [thread:$0]  %s14, 512, %s639, [#allocation26], 128, 128, 8
        $region64: #{tpu_custom_call.1} parent=11 // pred_fallthru
          _
        // Predicated region
        $region65: #{tpu_custom_call.1} parent=11 // pred_check
          %p645 = pneg %p401
        $region66: #{tpu_custom_call.1} parent=11 // pred_check_branch
          %647 = sbr.rel (%p645) target = $region68
        $region67: #{tpu_custom_call.1} parent=11 // pred_region
          %s649 = ssub.s32 16, 16
          %650 = vsyncadd [#allocation29], %s649
          %s652 = sshll.u32 [#allocation28], 4
          %s653 = int_to_ptr.vmem [resolvable:$true] %s652
          %655 = dma.hbm_to_vmem [thread:$0]  %s15, 16, %s653, [#allocation29]
        $region68: #{tpu_custom_call.1} parent=11 // pred_fallthru
          _
        // Predicated region
        $region69: #{tpu_custom_call.1} parent=11 // pred_check
          %p656 = pneg %p422
        $region70: #{tpu_custom_call.1} parent=11 // pred_check_branch
          %658 = sbr.rel (%p656) target = $region72
        $region71: #{tpu_custom_call.1} parent=11 // pred_region
          %s660 = ssub.s32 2048, 2048
          %661 = vsyncadd [#allocation29], %s660
          %s662 = sshll.u32 [#allocation30], 4
          %s663 = int_to_ptr.vmem [resolvable:$true] %s662
          %668 = dma.hbm_to_vmem [thread:$0]  %s16, 2048, %s663, [#allocation29], 128, 128, 8
        $region72: #{tpu_custom_call.1} parent=11 // pred_fallthru
          _
        // Predicated region
        $region73: #{tpu_custom_call.1} parent=11 // pred_check
          %p669 = pneg %p443
        $region74: #{tpu_custom_call.1} parent=11 // pred_check_branch
          %671 = sbr.rel (%p669) target = $region76
        $region75: #{tpu_custom_call.1} parent=11 // pred_region
          %s673 = ssub.s32 16, 16
          %674 = vsyncadd [#allocation32], %s673
          %s676 = sshll.u32 [#allocation31], 4
          %s677 = int_to_ptr.vmem [resolvable:$true] %s676
          %679 = dma.hbm_to_vmem [thread:$0]  %s17, 16, %s677, [#allocation32]
        $region76: #{tpu_custom_call.1} parent=11 // pred_fallthru
          _
      $region12: #{tpu_custom_call.1} parent=5 // pred_fallthru
        _
      %p680 = scmp.lt.s32.totalorder %s41, 2
      // Predicated region
      $region77: #{tpu_custom_call.1} parent=5 // pred_check
        %p681 = pneg %p680
      $region78: #{tpu_custom_call.1} parent=5 // pred_check_branch
        %683 = sbr.rel (%p681) target = $region80
      $region79: #{tpu_custom_call.1} parent=5 // pred_region
        // Predicated region
        $region81: #{tpu_custom_call.1} parent=79 // pred_check
          %p684 = pneg %p75
        $region82: #{tpu_custom_call.1} parent=79 // pred_check_branch
          %686 = sbr.rel (%p684) target = $region84
        $region83: #{tpu_custom_call.1} parent=79 // pred_region
          %s687 = sand.u32 %s65, 1
          %s688 = scalar_lea.sflag [#allocation5], %s687
          %s689 = sand.u32 %s65, 1
          %s690 = smul.addr %s689, 8
          %s691 = scalar_lea.vmem [#allocation4], %s690
          %s693 = ssub.s32 128, 128
          %694 = vsyncadd %s688, %s693
          %s695 = sadd.s32 %s49, %s48
          %s696 = smul.addr %s695, 128
          %s697 = scalar_lea.hbm %s0, %s696
          %s699 = sshll.u32 %s691, 4
          %s700 = int_to_ptr.vmem [resolvable:$true] %s699
          %702 = dma.hbm_to_vmem [thread:$0]  %s697, 128, %s700, %s688
        $region84: #{tpu_custom_call.1} parent=79 // pred_fallthru
          _
        // Predicated region
        $region85: #{tpu_custom_call.1} parent=79 // pred_check
          %p703 = pneg %p101
        $region86: #{tpu_custom_call.1} parent=79 // pred_check_branch
          %705 = sbr.rel (%p703) target = $region88
        $region87: #{tpu_custom_call.1} parent=79 // pred_region
          %s706 = sand.u32 %s41, 1
          %s707 = scalar_lea.sflag [#allocation8], %s706
          %s708 = sand.u32 %s91, 1
          %s709 = smul.addr %s708, 8
          %s710 = scalar_lea.vmem [#allocation7], %s709
          %s712 = ssub.s32 128, 128
          %713 = vsyncadd %s707, %s712
          %s714 = smul.addr %s48, 128
          %s715 = scalar_lea.hbm %s1, %s714
          %s717 = sshll.u32 %s710, 4
          %s718 = int_to_ptr.vmem [resolvable:$true] %s717
          %720 = dma.hbm_to_vmem [thread:$0]  %s715, 128, %s718, %s707
        $region88: #{tpu_custom_call.1} parent=79 // pred_fallthru
          _
      $region80: #{tpu_custom_call.1} parent=5 // pred_fallthru
        _
      %p721 = scmp.le.s32.totalorder 1, %s41
      %p722 = scmp.lt.s32.totalorder %s41, 3
      %p723 = pnand %p721, %p722
      %p724 = pneg %p723
      // Predicated region
      $region89: #{tpu_custom_call.1} parent=5 // pred_check
        _
      $region90: #{tpu_custom_call.1} parent=5 // pred_check_branch
        %726 = sbr.rel (%p723) target = $region92
      $region91: #{tpu_custom_call.1} parent=5 // pred_region
        %s727 = ssub.s32 %s41, 1
        %s728 = sand.u32 %s68, 1
        %s729 = scalar_lea.sflag [#allocation5], %s728
        %s730 = sand.u32 %s68, 1
        %s731 = smul.addr %s730, 8
        %s732 = scalar_lea.vmem [#allocation4], %s731
        // Predicated region
        $region93: #{tpu_custom_call.1} parent=91 // pred_check
          %p733 = pneg %p81
        $region94: #{tpu_custom_call.1} parent=91 // pred_check_branch
          %735 = sbr.rel (%p733) target = $region96
        $region95: #{tpu_custom_call.1} parent=91 // pred_region
          %736 = dma.done %s729, 128
        $region96: #{tpu_custom_call.1} parent=91 // pred_fallthru
          _
        %s737 = sand.u32 %s46, 1
        %s738 = scalar_lea.sflag [#allocation8], %s737
        %s739 = sand.u32 %s94, 1
        %s740 = smul.addr %s739, 8
        %s741 = scalar_lea.vmem [#allocation7], %s740
        // Predicated region
        $region97: #{tpu_custom_call.1} parent=91 // pred_check
          %p742 = pneg %p107
        $region98: #{tpu_custom_call.1} parent=91 // pred_check_branch
          %744 = sbr.rel (%p742) target = $region100
        $region99: #{tpu_custom_call.1} parent=91 // pred_region
          %745 = dma.done %s738, 128
        $region100: #{tpu_custom_call.1} parent=91 // pred_fallthru
          _
        // Predicated region
        $region101: #{tpu_custom_call.1} parent=91 // pred_check
          %p746 = pneg %p128
        $region102: #{tpu_custom_call.1} parent=91 // pred_check_branch
          %748 = sbr.rel (%p746) target = $region104
        $region103: #{tpu_custom_call.1} parent=91 // pred_region
          %749 = dma.done [#allocation8], 16
        $region104: #{tpu_custom_call.1} parent=91 // pred_fallthru
          _
        // Predicated region
        $region105: #{tpu_custom_call.1} parent=91 // pred_check
          %p750 = pneg %p149
        $region106: #{tpu_custom_call.1} parent=91 // pred_check_branch
          %752 = sbr.rel (%p750) target = $region108
        $region107: #{tpu_custom_call.1} parent=91 // pred_region
          %753 = dma.done [#allocation11], 16
        $region108: #{tpu_custom_call.1} parent=91 // pred_fallthru
          _
        // Predicated region
        $region109: #{tpu_custom_call.1} parent=91 // pred_check
          %p754 = pneg %p170
        $region110: #{tpu_custom_call.1} parent=91 // pred_check_branch
          %756 = sbr.rel (%p754) target = $region112
        $region111: #{tpu_custom_call.1} parent=91 // pred_region
          %757 = dma.done [#allocation11], 2048
        $region112: #{tpu_custom_call.1} parent=91 // pred_fallthru
          _
        // Predicated region
        $region113: #{tpu_custom_call.1} parent=91 // pred_check
          %p758 = pneg %p191
        $region114: #{tpu_custom_call.1} parent=91 // pred_check_branch
          %760 = sbr.rel (%p758) target = $region116
        $region115: #{tpu_custom_call.1} parent=91 // pred_region
          %761 = dma.done [#allocation14], 64
        $region116: #{tpu_custom_call.1} parent=91 // pred_fallthru
          _
        // Predicated region
        $region117: #{tpu_custom_call.1} parent=91 // pred_check
          %p762 = pneg %p212
        $region118: #{tpu_custom_call.1} parent=91 // pred_check_branch
          %764 = sbr.rel (%p762) target = $region120
        $region119: #{tpu_custom_call.1} parent=91 // pred_region
          %765 = dma.done [#allocation14], 2048
        $region120: #{tpu_custom_call.1} parent=91 // pred_fallthru
          _
        // Predicated region
        $region121: #{tpu_custom_call.1} parent=91 // pred_check
          %p766 = pneg %p233
        $region122: #{tpu_custom_call.1} parent=91 // pred_check_branch
          %768 = sbr.rel (%p766) target = $region124
        $region123: #{tpu_custom_call.1} parent=91 // pred_region
          %769 = dma.done [#allocation17], 64
        $region124: #{tpu_custom_call.1} parent=91 // pred_fallthru
          _
        // Predicated region
        $region125: #{tpu_custom_call.1} parent=91 // pred_check
          %p770 = pneg %p254
        $region126: #{tpu_custom_call.1} parent=91 // pred_check_branch
          %772 = sbr.rel (%p770) target = $region128
        $region127: #{tpu_custom_call.1} parent=91 // pred_region
          %773 = dma.done [#allocation17], 2048
        $region128: #{tpu_custom_call.1} parent=91 // pred_fallthru
          _
        // Predicated region
        $region129: #{tpu_custom_call.1} parent=91 // pred_check
          %p774 = pneg %p275
        $region130: #{tpu_custom_call.1} parent=91 // pred_check_branch
          %776 = sbr.rel (%p774) target = $region132
        $region131: #{tpu_custom_call.1} parent=91 // pred_region
          %777 = dma.done [#allocation20], 64
        $region132: #{tpu_custom_call.1} parent=91 // pred_fallthru
          _
        // Predicated region
        $region133: #{tpu_custom_call.1} parent=91 // pred_check
          %p778 = pneg %p296
        $region134: #{tpu_custom_call.1} parent=91 // pred_check_branch
          %780 = sbr.rel (%p778) target = $region136
        $region135: #{tpu_custom_call.1} parent=91 // pred_region
          %781 = dma.done [#allocation20], 512
        $region136: #{tpu_custom_call.1} parent=91 // pred_fallthru
          _
        // Predicated region
        $region137: #{tpu_custom_call.1} parent=91 // pred_check
          %p782 = pneg %p317
        $region138: #{tpu_custom_call.1} parent=91 // pred_check_branch
          %784 = sbr.rel (%p782) target = $region140
        $region139: #{tpu_custom_call.1} parent=91 // pred_region
          %785 = dma.done [#allocation23], 16
        $region140: #{tpu_custom_call.1} parent=91 // pred_fallthru
          _
        // Predicated region
        $region141: #{tpu_custom_call.1} parent=91 // pred_check
          %p786 = pneg %p338
        $region142: #{tpu_custom_call.1} parent=91 // pred_check_branch
          %788 = sbr.rel (%p786) target = $region144
        $region143: #{tpu_custom_call.1} parent=91 // pred_region
          %789 = dma.done [#allocation23], 16
        $region144: #{tpu_custom_call.1} parent=91 // pred_fallthru
          _
        // Predicated region
        $region145: #{tpu_custom_call.1} parent=91 // pred_check
          %p790 = pneg %p359
        $region146: #{tpu_custom_call.1} parent=91 // pred_check_branch
          %792 = sbr.rel (%p790) target = $region148
        $region147: #{tpu_custom_call.1} parent=91 // pred_region
          %793 = dma.done [#allocation26], 16
        $region148: #{tpu_custom_call.1} parent=91 // pred_fallthru
          _
        // Predicated region
        $region149: #{tpu_custom_call.1} parent=91 // pred_check
          %p794 = pneg %p380
        $region150: #{tpu_custom_call.1} parent=91 // pred_check_branch
          %796 = sbr.rel (%p794) target = $region152
        $region151: #{tpu_custom_call.1} parent=91 // pred_region
          %797 = dma.done [#allocation26], 512
        $region152: #{tpu_custom_call.1} parent=91 // pred_fallthru
          _
        // Predicated region
        $region153: #{tpu_custom_call.1} parent=91 // pred_check
          %p798 = pneg %p401
        $region154: #{tpu_custom_call.1} parent=91 // pred_check_branch
          %800 = sbr.rel (%p798) target = $region156
        $region155: #{tpu_custom_call.1} parent=91 // pred_region
          %801 = dma.done [#allocation29], 16
        $region156: #{tpu_custom_call.1} parent=91 // pred_fallthru
          _
        // Predicated region
        $region157: #{tpu_custom_call.1} parent=91 // pred_check
          %p802 = pneg %p422
        $region158: #{tpu_custom_call.1} parent=91 // pred_check_branch
          %804 = sbr.rel (%p802) target = $region160
        $region159: #{tpu_custom_call.1} parent=91 // pred_region
          %805 = dma.done [#allocation29], 2048
        $region160: #{tpu_custom_call.1} parent=91 // pred_fallthru
          _
        // Predicated region
        $region161: #{tpu_custom_call.1} parent=91 // pred_check
          %p806 = pneg %p443
        $region162: #{tpu_custom_call.1} parent=91 // pred_check_branch
          %808 = sbr.rel (%p806) target = $region164
        $region163: #{tpu_custom_call.1} parent=91 // pred_region
          %809 = dma.done [#allocation32], 16
        $region164: #{tpu_custom_call.1} parent=91 // pred_fallthru
          _
        %s810 = sand.u32 %s68, 1
        %s811 = scalar_lea.sflag [#allocation5], %s810
        %s812 = sand.u32 %s68, 1
        %s813 = smul.addr %s812, 8
        %s814 = scalar_lea.vmem [#allocation4], %s813
        %p815 = pneg %p81
        %p816 = pneg %p78
        %s817 = sand.u32 %s46, 1
        %s818 = scalar_lea.sflag [#allocation8], %s817
        %s819 = sand.u32 %s94, 1
        %s820 = smul.addr %s819, 8
        %s821 = scalar_lea.vmem [#allocation7], %s820
        %p822 = pneg %p107
        %p823 = pneg %p104
        %p824 = pneg %p128
        %p825 = pneg %p125
        %p826 = pneg %p149
        %p827 = pneg %p146
        %p828 = pneg %p170
        %p829 = pneg %p167
        %p830 = pneg %p191
        %p831 = pneg %p188
        %p832 = pneg %p212
        %p833 = pneg %p209
        %p834 = pneg %p233
        %p835 = pneg %p230
        %p836 = pneg %p254
        %p837 = pneg %p251
        %p838 = pneg %p275
        %p839 = pneg %p272
        %p840 = pneg %p296
        %p841 = pneg %p293
        %p842 = pneg %p317
        %p843 = pneg %p314
        %p844 = pneg %p338
        %p845 = pneg %p335
        %p846 = pneg %p359
        %p847 = pneg %p356
        %p848 = pneg %p380
        %p849 = pneg %p377
        %p850 = pneg %p401
        %p851 = pneg %p398
        %p852 = pneg %p422
        %p853 = pneg %p419
        %p854 = pneg %p443
        %p855 = pneg %p440
        %p856 = pneg %p471
        %p857 = pneg %p468
        %s858 = sand.u32 %s458, 1
        %s859 = scalar_lea.sflag [#allocation6], %s858
        %s860 = sand.u32 %s458, 1
        %s861 = smul.addr %s860, 8
        %s862 = scalar_lea.vmem [#allocation33], %s861
        %p863 = scmp.eq.s32.totalorder %s51, 0
        // Predicated region
        $region165: #{tpu_custom_call.1} parent=91 // pred_check
          %p864 = pneg %p863
        $region166: #{tpu_custom_call.1} parent=91 // pred_check_branch
          %866 = sbr.rel (%p864) target = $region168
        $region167: #{tpu_custom_call.1} parent=91 // pred_region
          %v867 = vld [vmem:[%s741] sm:$0xff]
          %v868 = vld [vmem:[#allocation9] sm:$0x1]
          %v869 = vld [vmem:[#allocation10] sm:$0x1]
          %vm870 = vcmask 261120
          %v871 = vsel %vm870, %v867, 0.0
          %872 = vadd.xlane.f32.xlu0 %v871
          %v873 = vpop.xlane.xlu0 %872
          %v874 = vrcp.pop 32.0
          %v875 = vmul.f32 %v873, %v874
          %v876 = vsub.f32 %v867, %v875
          %v877 = vmul.f32 %v876, %v876
          %v878 = vsel %vm870, %v877, 0.0
          %879 = vadd.xlane.f32.xlu0 %v878
          %v880 = vpop.xlane.xlu0 %879
          %v881 = vmul.f32 %v880, %v874
          %v882 = vadd.f32 %v881, 1e-05
          %v883 = vrsqrt.pop %v882
          %v884 = vmul.f32 %v876, %v883
          %v886 = vlaneseq
          %v887 = vshrl.u32 %v886, 7
          %v888 = vsub.s32 0, %v887
          %v889 = vrot.slane %v868, %v888
          %v891 = vmul.f32 %v884, %v889
          %v893 = vlaneseq
          %v894 = vshrl.u32 %v893, 7
          %v895 = vsub.s32 0, %v894
          %v896 = vrot.slane %v869, %v895
          %v898 = vadd.f32 %v891, %v896
          %v899 = vld [vmem:[#allocation15] sm:$0xff]
          %v900 = vld [vmem:[#allocation15 + $0x8] sm:$0xff]
          %v901 = vld [vmem:[#allocation15 + $0x10] sm:$0xff]
          %v902 = vld [vmem:[#allocation15 + $0x18] sm:$0xff]
          %v903 = vld [vmem:[#allocation16] sm:$0x1]
          %v905 = vlaneseq
          %v906 = vshrl.u32 %v905, 7
          %v907 = vsub.s32 0, %v906
          %v908 = vrot.slane %v903, %v907
          %v911 = vsel %vm870, %v898, 0
          %913 = vmatprep.subr.mxu0 0.0
          %914 = vmatpush1.msra.mxu0 %v899
          %915 = vmatprep.subr.mxu0 0.0
          %916 = vmatpush1.msra.mxu0 %v900
          %917 = vmatprep.subr.mxu0 0.0
          %918 = vmatpush1.msra.mxu0 %v901
          %919 = vmatprep.subr.mxu0 0.0
          %920 = vmatpush1.msra.mxu0 %v902
          %921 = vmatprep.subr.mxu0 0.0
          %922 = vmatpush1.msra.mxu0 0.0
          %923 = vmatprep.subr.mxu0 0.0
          %924 = vmatpush1.msra.mxu0 0.0
          %925 = vmatprep.subr.mxu0 0.0
          %926 = vmatpush1.msra.mxu0 0.0
          %927 = vmatprep.subr.mxu0 0.0
          %928 = vmatpush1.msra.mxu0 0.0
          %929 = vmatprep.subr.mxu0 0.0
          %930 = vmatpush1.msra.mxu0 0.0
          %931 = vmatprep.subr.mxu0 0.0
          %932 = vmatpush1.msra.mxu0 0.0
          %933 = vmatprep.subr.mxu0 0.0
          %934 = vmatpush1.msra.mxu0 0.0
          %935 = vmatprep.subr.mxu0 0.0
          %936 = vmatpush1.msra.mxu0 0.0
          %937 = vmatprep.subr.mxu0 0.0
          %938 = vmatpush1.msra.mxu0 0.0
          %939 = vmatprep.subr.mxu0 0.0
          %940 = vmatpush1.msra.mxu0 0.0
          %941 = vmatprep.subr.mxu0 0.0
          %942 = vmatpush1.msra.mxu0 0.0
          %943 = vmatprep.subr.mxu0 0.0
          %944 = vmatpush1.msra.mxu0 0.0
          %945 = vmatprep.subr.mxu0 0.0
          %946 = vmatpush1.msra.mxu0 0.0
          %947 = vmatprep.subr.mxu0 0.0
          %948 = vmatpush1.msra.mxu0 0.0
          %949 = vmatprep.subr.mxu0 0.0
          %950 = vmatpush1.msra.mxu0 0.0
          %951 = vmatprep.subr.mxu0 0.0
          %952 = vmatpush1.msra.mxu0 0.0
          %953 = vmatprep.subr.mxu0 0.0
          %954 = vmatpush1.msra.mxu0 0.0
          %955 = vmatprep.subr.mxu0 0.0
          %956 = vmatpush1.msra.mxu0 0.0
          %957 = vmatprep.subr.mxu0 0.0
          %958 = vmatpush1.msra.mxu0 0.0
          %959 = vmatprep.subr.mxu0 0.0
          %960 = vmatpush1.msra.mxu0 0.0
          %961 = vmatprep.subr.mxu0 0.0
          %962 = vmatpush1.msra.mxu0 0.0
          %963 = vmatprep.subr.mxu0 0.0
          %964 = vmatpush1.msra.mxu0 0.0
          %965 = vmatprep.subr.mxu0 0.0
          %966 = vmatpush1.msra.mxu0 0.0
          %967 = vmatprep.subr.mxu0 0.0
          %968 = vmatpush1.msra.mxu0 0.0
          %969 = vmatprep.subr.mxu0 0.0
          %970 = vmatpush1.msra.mxu0 0.0
          %971 = vmatprep.subr.mxu0 0.0
          %972 = vmatpush1.msra.mxu0 0.0
          %973 = vmatprep.subr.mxu0 0.0
          %974 = vmatpush1.msra.mxu0 0.0
          %975 = vmatprep.subr.mxu0 0.0
          %976 = vmatpush1.msra.mxu0 0.0
          %977 = vmatprep.mubr.f32.mxu0 0.0
          %978 = vmatmul.mubr.f32.gmra.mrb[0].mxu0 %v911
          %v979 = vpop.f32.mrb[0].mxu0
          %v980 = vadd.f32 %v908, %v979
          %v981 = vpop.f32.mrb[0].mxu0
          %982 = vdwg.mxu0
          %vm983 = vcmask 64512
          %984 = vst.msk [vmem:[#allocation2] sm:$0xff] %vm983, %v980
          %v985 = vld [vmem:[#allocation18] sm:$0xff]
          %v986 = vld [vmem:[#allocation18 + $0x8] sm:$0xff]
          %v987 = vld [vmem:[#allocation18 + $0x10] sm:$0xff]
          %v988 = vld [vmem:[#allocation18 + $0x18] sm:$0xff]
          %v989 = vld [vmem:[#allocation19] sm:$0x1]
          %v991 = vlaneseq
          %v992 = vshrl.u32 %v991, 7
          %v993 = vsub.s32 0, %v992
          %v994 = vrot.slane %v989, %v993
          %996 = vmatprep.subr.mxu0 0.0
          %997 = vmatpush1.msra.mxu0 %v985
          %998 = vmatprep.subr.mxu0 0.0
          %999 = vmatpush1.msra.mxu0 %v986
          %1000 = vmatprep.subr.mxu0 0.0
          %1001 = vmatpush1.msra.mxu0 %v987
          %1002 = vmatprep.subr.mxu0 0.0
          %1003 = vmatpush1.msra.mxu0 %v988
          %1004 = vmatprep.subr.mxu0 0.0
          %1005 = vmatpush1.msra.mxu0 0.0
          %1006 = vmatprep.subr.mxu0 0.0
          %1007 = vmatpush1.msra.mxu0 0.0
          %1008 = vmatprep.subr.mxu0 0.0
          %1009 = vmatpush1.msra.mxu0 0.0
          %1010 = vmatprep.subr.mxu0 0.0
          %1011 = vmatpush1.msra.mxu0 0.0
          %1012 = vmatprep.subr.mxu0 0.0
          %1013 = vmatpush1.msra.mxu0 0.0
          %1014 = vmatprep.subr.mxu0 0.0
          %1015 = vmatpush1.msra.mxu0 0.0
          %1016 = vmatprep.subr.mxu0 0.0
          %1017 = vmatpush1.msra.mxu0 0.0
          %1018 = vmatprep.subr.mxu0 0.0
          %1019 = vmatpush1.msra.mxu0 0.0
          %1020 = vmatprep.subr.mxu0 0.0
          %1021 = vmatpush1.msra.mxu0 0.0
          %1022 = vmatprep.subr.mxu0 0.0
          %1023 = vmatpush1.msra.mxu0 0.0
          %1024 = vmatprep.subr.mxu0 0.0
          %1025 = vmatpush1.msra.mxu0 0.0
          %1026 = vmatprep.subr.mxu0 0.0
          %1027 = vmatpush1.msra.mxu0 0.0
          %1028 = vmatprep.subr.mxu0 0.0
          %1029 = vmatpush1.msra.mxu0 0.0
          %1030 = vmatprep.subr.mxu0 0.0
          %1031 = vmatpush1.msra.mxu0 0.0
          %1032 = vmatprep.subr.mxu0 0.0
          %1033 = vmatpush1.msra.mxu0 0.0
          %1034 = vmatprep.subr.mxu0 0.0
          %1035 = vmatpush1.msra.mxu0 0.0
          %1036 = vmatprep.subr.mxu0 0.0
          %1037 = vmatpush1.msra.mxu0 0.0
          %1038 = vmatprep.subr.mxu0 0.0
          %1039 = vmatpush1.msra.mxu0 0.0
          %1040 = vmatprep.subr.mxu0 0.0
          %1041 = vmatpush1.msra.mxu0 0.0
          %1042 = vmatprep.subr.mxu0 0.0
          %1043 = vmatpush1.msra.mxu0 0.0
          %1044 = vmatprep.subr.mxu0 0.0
          %1045 = vmatpush1.msra.mxu0 0.0
          %1046 = vmatprep.subr.mxu0 0.0
          %1047 = vmatpush1.msra.mxu0 0.0
          %1048 = vmatprep.subr.mxu0 0.0
          %1049 = vmatpush1.msra.mxu0 0.0
          %1050 = vmatprep.subr.mxu0 0.0
          %1051 = vmatpush1.msra.mxu0 0.0
          %1052 = vmatprep.subr.mxu0 0.0
          %1053 = vmatpush1.msra.mxu0 0.0
          %1054 = vmatprep.subr.mxu0 0.0
          %1055 = vmatpush1.msra.mxu0 0.0
          %1056 = vmatprep.subr.mxu0 0.0
          %1057 = vmatpush1.msra.mxu0 0.0
          %1058 = vmatprep.subr.mxu0 0.0
          %1059 = vmatpush1.msra.mxu0 0.0
          %1060 = vmatprep.mubr.f32.mxu0 0.0
          %1061 = vmatmul.mubr.f32.gmra.mrb[0].mxu0 %v911
          %v1062 = vpop.f32.mrb[0].mxu0
          %v1063 = vadd.f32 %v994, %v1062
          %v1064 = vpop.f32.mrb[0].mxu0
          %1065 = vdwg.mxu0
          %1066 = vst.msk [vmem:[#allocation3] sm:$0xff] %vm983, %v1063
          %s1067 = scalar_lea.vmem [#allocation15], 32
          %v1068 = vld [vmem:[%s1067] sm:$0xff]
          %v1069 = vld [vmem:[%s1067 + $0x8] sm:$0xff]
          %v1070 = vld [vmem:[%s1067 + $0x10] sm:$0xff]
          %v1071 = vld [vmem:[%s1067 + $0x18] sm:$0xff]
          %s1072 = scalar_lea.vmem [#allocation16], 1
          %v1073 = vld [vmem:[%s1072] sm:$0x1]
          %v1075 = vlaneseq
          %v1076 = vshrl.u32 %v1075, 7
          %v1077 = vsub.s32 0, %v1076
          %v1078 = vrot.slane %v1073, %v1077
          %1080 = vmatprep.subr.mxu0 0.0
          %1081 = vmatpush1.msra.mxu0 %v1068
          %1082 = vmatprep.subr.mxu0 0.0
          %1083 = vmatpush1.msra.mxu0 %v1069
          %1084 = vmatprep.subr.mxu0 0.0
          %1085 = vmatpush1.msra.mxu0 %v1070
          %1086 = vmatprep.subr.mxu0 0.0
          %1087 = vmatpush1.msra.mxu0 %v1071
          %1088 = vmatprep.subr.mxu0 0.0
          %1089 = vmatpush1.msra.mxu0 0.0
          %1090 = vmatprep.subr.mxu0 0.0
          %1091 = vmatpush1.msra.mxu0 0.0
          %1092 = vmatprep.subr.mxu0 0.0
          %1093 = vmatpush1.msra.mxu0 0.0
          %1094 = vmatprep.subr.mxu0 0.0
          %1095 = vmatpush1.msra.mxu0 0.0
          %1096 = vmatprep.subr.mxu0 0.0
          %1097 = vmatpush1.msra.mxu0 0.0
          %1098 = vmatprep.subr.mxu0 0.0
          %1099 = vmatpush1.msra.mxu0 0.0
          %1100 = vmatprep.subr.mxu0 0.0
          %1101 = vmatpush1.msra.mxu0 0.0
          %1102 = vmatprep.subr.mxu0 0.0
          %1103 = vmatpush1.msra.mxu0 0.0
          %1104 = vmatprep.subr.mxu0 0.0
          %1105 = vmatpush1.msra.mxu0 0.0
          %1106 = vmatprep.subr.mxu0 0.0
          %1107 = vmatpush1.msra.mxu0 0.0
          %1108 = vmatprep.subr.mxu0 0.0
          %1109 = vmatpush1.msra.mxu0 0.0
          %1110 = vmatprep.subr.mxu0 0.0
          %1111 = vmatpush1.msra.mxu0 0.0
          %1112 = vmatprep.subr.mxu0 0.0
          %1113 = vmatpush1.msra.mxu0 0.0
          %1114 = vmatprep.subr.mxu0 0.0
          %1115 = vmatpush1.msra.mxu0 0.0
          %1116 = vmatprep.subr.mxu0 0.0
          %1117 = vmatpush1.msra.mxu0 0.0
          %1118 = vmatprep.subr.mxu0 0.0
          %1119 = vmatpush1.msra.mxu0 0.0
          %1120 = vmatprep.subr.mxu0 0.0
          %1121 = vmatpush1.msra.mxu0 0.0
          %1122 = vmatprep.subr.mxu0 0.0
          %1123 = vmatpush1.msra.mxu0 0.0
          %1124 = vmatprep.subr.mxu0 0.0
          %1125 = vmatpush1.msra.mxu0 0.0
          %1126 = vmatprep.subr.mxu0 0.0
          %1127 = vmatpush1.msra.mxu0 0.0
          %1128 = vmatprep.subr.mxu0 0.0
          %1129 = vmatpush1.msra.mxu0 0.0
          %1130 = vmatprep.subr.mxu0 0.0
          %1131 = vmatpush1.msra.mxu0 0.0
          %1132 = vmatprep.subr.mxu0 0.0
          %1133 = vmatpush1.msra.mxu0 0.0
          %1134 = vmatprep.subr.mxu0 0.0
          %1135 = vmatpush1.msra.mxu0 0.0
          %1136 = vmatprep.subr.mxu0 0.0
          %1137 = vmatpush1.msra.mxu0 0.0
          %1138 = vmatprep.subr.mxu0 0.0
          %1139 = vmatpush1.msra.mxu0 0.0
          %1140 = vmatprep.subr.mxu0 0.0
          %1141 = vmatpush1.msra.mxu0 0.0
          %1142 = vmatprep.subr.mxu0 0.0
          %1143 = vmatpush1.msra.mxu0 0.0
          %1144 = vmatprep.mubr.f32.mxu0 0.0
          %1145 = vmatmul.mubr.f32.gmra.mrb[0].mxu0 %v911
          %v1146 = vpop.f32.mrb[0].mxu0
          %v1147 = vadd.f32 %v1078, %v1146
          %v1148 = vpop.f32.mrb[0].mxu0
          %1149 = vdwg.mxu0
          %s1150 = scalar_lea.vmem [#allocation2], 8
          %1151 = vst.msk [vmem:[%s1150] sm:$0xff] %vm983, %v1147
          %s1152 = scalar_lea.vmem [#allocation18], 32
          %v1153 = vld [vmem:[%s1152] sm:$0xff]
          %v1154 = vld [vmem:[%s1152 + $0x8] sm:$0xff]
          %v1155 = vld [vmem:[%s1152 + $0x10] sm:$0xff]
          %v1156 = vld [vmem:[%s1152 + $0x18] sm:$0xff]
          %s1157 = scalar_lea.vmem [#allocation19], 1
          %v1158 = vld [vmem:[%s1157] sm:$0x1]
          %v1160 = vlaneseq
          %v1161 = vshrl.u32 %v1160, 7
          %v1162 = vsub.s32 0, %v1161
          %v1163 = vrot.slane %v1158, %v1162
          %1165 = vmatprep.subr.mxu0 0.0
          %1166 = vmatpush1.msra.mxu0 %v1153
          %1167 = vmatprep.subr.mxu0 0.0
          %1168 = vmatpush1.msra.mxu0 %v1154
          %1169 = vmatprep.subr.mxu0 0.0
          %1170 = vmatpush1.msra.mxu0 %v1155
          %1171 = vmatprep.subr.mxu0 0.0
          %1172 = vmatpush1.msra.mxu0 %v1156
          %1173 = vmatprep.subr.mxu0 0.0
          %1174 = vmatpush1.msra.mxu0 0.0
          %1175 = vmatprep.subr.mxu0 0.0
          %1176 = vmatpush1.msra.mxu0 0.0
          %1177 = vmatprep.subr.mxu0 0.0
          %1178 = vmatpush1.msra.mxu0 0.0
          %1179 = vmatprep.subr.mxu0 0.0
          %1180 = vmatpush1.msra.mxu0 0.0
          %1181 = vmatprep.subr.mxu0 0.0
          %1182 = vmatpush1.msra.mxu0 0.0
          %1183 = vmatprep.subr.mxu0 0.0
          %1184 = vmatpush1.msra.mxu0 0.0
          %1185 = vmatprep.subr.mxu0 0.0
          %1186 = vmatpush1.msra.mxu0 0.0
          %1187 = vmatprep.subr.mxu0 0.0
          %1188 = vmatpush1.msra.mxu0 0.0
          %1189 = vmatprep.subr.mxu0 0.0
          %1190 = vmatpush1.msra.mxu0 0.0
          %1191 = vmatprep.subr.mxu0 0.0
          %1192 = vmatpush1.msra.mxu0 0.0
          %1193 = vmatprep.subr.mxu0 0.0
          %1194 = vmatpush1.msra.mxu0 0.0
          %1195 = vmatprep.subr.mxu0 0.0
          %1196 = vmatpush1.msra.mxu0 0.0
          %1197 = vmatprep.subr.mxu0 0.0
          %1198 = vmatpush1.msra.mxu0 0.0
          %1199 = vmatprep.subr.mxu0 0.0
          %1200 = vmatpush1.msra.mxu0 0.0
          %1201 = vmatprep.subr.mxu0 0.0
          %1202 = vmatpush1.msra.mxu0 0.0
          %1203 = vmatprep.subr.mxu0 0.0
          %1204 = vmatpush1.msra.mxu0 0.0
          %1205 = vmatprep.subr.mxu0 0.0
          %1206 = vmatpush1.msra.mxu0 0.0
          %1207 = vmatprep.subr.mxu0 0.0
          %1208 = vmatpush1.msra.mxu0 0.0
          %1209 = vmatprep.subr.mxu0 0.0
          %1210 = vmatpush1.msra.mxu0 0.0
          %1211 = vmatprep.subr.mxu0 0.0
          %1212 = vmatpush1.msra.mxu0 0.0
          %1213 = vmatprep.subr.mxu0 0.0
          %1214 = vmatpush1.msra.mxu0 0.0
          %1215 = vmatprep.subr.mxu0 0.0
          %1216 = vmatpush1.msra.mxu0 0.0
          %1217 = vmatprep.subr.mxu0 0.0
          %1218 = vmatpush1.msra.mxu0 0.0
          %1219 = vmatprep.subr.mxu0 0.0
          %1220 = vmatpush1.msra.mxu0 0.0
          %1221 = vmatprep.subr.mxu0 0.0
          %1222 = vmatpush1.msra.mxu0 0.0
          %1223 = vmatprep.subr.mxu0 0.0
          %1224 = vmatpush1.msra.mxu0 0.0
          %1225 = vmatprep.subr.mxu0 0.0
          %1226 = vmatpush1.msra.mxu0 0.0
          %1227 = vmatprep.subr.mxu0 0.0
          %1228 = vmatpush1.msra.mxu0 0.0
          %1229 = vmatprep.mubr.f32.mxu0 0.0
          %1230 = vmatmul.mubr.f32.gmra.mrb[0].mxu0 %v911
          %v1231 = vpop.f32.mrb[0].mxu0
          %v1232 = vadd.f32 %v1163, %v1231
          %v1233 = vpop.f32.mrb[0].mxu0
          %1234 = vdwg.mxu0
          %s1235 = scalar_lea.vmem [#allocation3], 8
          %1236 = vst.msk [vmem:[%s1235] sm:$0xff] %vm983, %v1232
          %s1237 = scalar_lea.vmem [#allocation15], 64
          %v1238 = vld [vmem:[%s1237] sm:$0xff]
          %v1239 = vld [vmem:[%s1237 + $0x8] sm:$0xff]
          %v1240 = vld [vmem:[%s1237 + $0x10] sm:$0xff]
          %v1241 = vld [vmem:[%s1237 + $0x18] sm:$0xff]
          %s1242 = scalar_lea.vmem [#allocation16], 2
          %v1243 = vld [vmem:[%s1242] sm:$0x1]
          %v1245 = vlaneseq
          %v1246 = vshrl.u32 %v1245, 7
          %v1247 = vsub.s32 0, %v1246
          %v1248 = vrot.slane %v1243, %v1247
          %1250 = vmatprep.subr.mxu0 0.0
          %1251 = vmatpush1.msra.mxu0 %v1238
          %1252 = vmatprep.subr.mxu0 0.0
          %1253 = vmatpush1.msra.mxu0 %v1239
          %1254 = vmatprep.subr.mxu0 0.0
          %1255 = vmatpush1.msra.mxu0 %v1240
          %1256 = vmatprep.subr.mxu0 0.0
          %1257 = vmatpush1.msra.mxu0 %v1241
          %1258 = vmatprep.subr.mxu0 0.0
          %1259 = vmatpush1.msra.mxu0 0.0
          %1260 = vmatprep.subr.mxu0 0.0
          %1261 = vmatpush1.msra.mxu0 0.0
          %1262 = vmatprep.subr.mxu0 0.0
          %1263 = vmatpush1.msra.mxu0 0.0
          %1264 = vmatprep.subr.mxu0 0.0
          %1265 = vmatpush1.msra.mxu0 0.0
          %1266 = vmatprep.subr.mxu0 0.0
          %1267 = vmatpush1.msra.mxu0 0.0
          %1268 = vmatprep.subr.mxu0 0.0
          %1269 = vmatpush1.msra.mxu0 0.0
          %1270 = vmatprep.subr.mxu0 0.0
          %1271 = vmatpush1.msra.mxu0 0.0
          %1272 = vmatprep.subr.mxu0 0.0
          %1273 = vmatpush1.msra.mxu0 0.0
          %1274 = vmatprep.subr.mxu0 0.0
          %1275 = vmatpush1.msra.mxu0 0.0
          %1276 = vmatprep.subr.mxu0 0.0
          %1277 = vmatpush1.msra.mxu0 0.0
          %1278 = vmatprep.subr.mxu0 0.0
          %1279 = vmatpush1.msra.mxu0 0.0
          %1280 = vmatprep.subr.mxu0 0.0
          %1281 = vmatpush1.msra.mxu0 0.0
          %1282 = vmatprep.subr.mxu0 0.0
          %1283 = vmatpush1.msra.mxu0 0.0
          %1284 = vmatprep.subr.mxu0 0.0
          %1285 = vmatpush1.msra.mxu0 0.0
          %1286 = vmatprep.subr.mxu0 0.0
          %1287 = vmatpush1.msra.mxu0 0.0
          %1288 = vmatprep.subr.mxu0 0.0
          %1289 = vmatpush1.msra.mxu0 0.0
          %1290 = vmatprep.subr.mxu0 0.0
          %1291 = vmatpush1.msra.mxu0 0.0
          %1292 = vmatprep.subr.mxu0 0.0
          %1293 = vmatpush1.msra.mxu0 0.0
          %1294 = vmatprep.subr.mxu0 0.0
          %1295 = vmatpush1.msra.mxu0 0.0
          %1296 = vmatprep.subr.mxu0 0.0
          %1297 = vmatpush1.msra.mxu0 0.0
          %1298 = vmatprep.subr.mxu0 0.0
          %1299 = vmatpush1.msra.mxu0 0.0
          %1300 = vmatprep.subr.mxu0 0.0
          %1301 = vmatpush1.msra.mxu0 0.0
          %1302 = vmatprep.subr.mxu0 0.0
          %1303 = vmatpush1.msra.mxu0 0.0
          %1304 = vmatprep.subr.mxu0 0.0
          %1305 = vmatpush1.msra.mxu0 0.0
          %1306 = vmatprep.subr.mxu0 0.0
          %1307 = vmatpush1.msra.mxu0 0.0
          %1308 = vmatprep.subr.mxu0 0.0
          %1309 = vmatpush1.msra.mxu0 0.0
          %1310 = vmatprep.subr.mxu0 0.0
          %1311 = vmatpush1.msra.mxu0 0.0
          %1312 = vmatprep.subr.mxu0 0.0
          %1313 = vmatpush1.msra.mxu0 0.0
          %1314 = vmatprep.mubr.f32.mxu0 0.0
          %1315 = vmatmul.mubr.f32.gmra.mrb[0].mxu0 %v911
          %v1316 = vpop.f32.mrb[0].mxu0
          %v1317 = vadd.f32 %v1248, %v1316
          %v1318 = vpop.f32.mrb[0].mxu0
          %1319 = vdwg.mxu0
          %s1320 = scalar_lea.vmem [#allocation2], 16
          %1321 = vst.msk [vmem:[%s1320] sm:$0xff] %vm983, %v1317
          %s1322 = scalar_lea.vmem [#allocation18], 64
          %v1323 = vld [vmem:[%s1322] sm:$0xff]
          %v1324 = vld [vmem:[%s1322 + $0x8] sm:$0xff]
          %v1325 = vld [vmem:[%s1322 + $0x10] sm:$0xff]
          %v1326 = vld [vmem:[%s1322 + $0x18] sm:$0xff]
          %s1327 = scalar_lea.vmem [#allocation19], 2
          %v1328 = vld [vmem:[%s1327] sm:$0x1]
          %v1330 = vlaneseq
          %v1331 = vshrl.u32 %v1330, 7
          %v1332 = vsub.s32 0, %v1331
          %v1333 = vrot.slane %v1328, %v1332
          %1335 = vmatprep.subr.mxu0 0.0
          %1336 = vmatpush1.msra.mxu0 %v1323
          %1337 = vmatprep.subr.mxu0 0.0
          %1338 = vmatpush1.msra.mxu0 %v1324
          %1339 = vmatprep.subr.mxu0 0.0
          %1340 = vmatpush1.msra.mxu0 %v1325
          %1341 = vmatprep.subr.mxu0 0.0
          %1342 = vmatpush1.msra.mxu0 %v1326
          %1343 = vmatprep.subr.mxu0 0.0
          %1344 = vmatpush1.msra.mxu0 0.0
          %1345 = vmatprep.subr.mxu0 0.0
          %1346 = vmatpush1.msra.mxu0 0.0
          %1347 = vmatprep.subr.mxu0 0.0
          %1348 = vmatpush1.msra.mxu0 0.0
          %1349 = vmatprep.subr.mxu0 0.0
          %1350 = vmatpush1.msra.mxu0 0.0
          %1351 = vmatprep.subr.mxu0 0.0
          %1352 = vmatpush1.msra.mxu0 0.0
          %1353 = vmatprep.subr.mxu0 0.0
          %1354 = vmatpush1.msra.mxu0 0.0
          %1355 = vmatprep.subr.mxu0 0.0
          %1356 = vmatpush1.msra.mxu0 0.0
          %1357 = vmatprep.subr.mxu0 0.0
          %1358 = vmatpush1.msra.mxu0 0.0
          %1359 = vmatprep.subr.mxu0 0.0
          %1360 = vmatpush1.msra.mxu0 0.0
          %1361 = vmatprep.subr.mxu0 0.0
          %1362 = vmatpush1.msra.mxu0 0.0
          %1363 = vmatprep.subr.mxu0 0.0
          %1364 = vmatpush1.msra.mxu0 0.0
          %1365 = vmatprep.subr.mxu0 0.0
          %1366 = vmatpush1.msra.mxu0 0.0
          %1367 = vmatprep.subr.mxu0 0.0
          %1368 = vmatpush1.msra.mxu0 0.0
          %1369 = vmatprep.subr.mxu0 0.0
          %1370 = vmatpush1.msra.mxu0 0.0
          %1371 = vmatprep.subr.mxu0 0.0
          %1372 = vmatpush1.msra.mxu0 0.0
          %1373 = vmatprep.subr.mxu0 0.0
          %1374 = vmatpush1.msra.mxu0 0.0
          %1375 = vmatprep.subr.mxu0 0.0
          %1376 = vmatpush1.msra.mxu0 0.0
          %1377 = vmatprep.subr.mxu0 0.0
          %1378 = vmatpush1.msra.mxu0 0.0
          %1379 = vmatprep.subr.mxu0 0.0
          %1380 = vmatpush1.msra.mxu0 0.0
          %1381 = vmatprep.subr.mxu0 0.0
          %1382 = vmatpush1.msra.mxu0 0.0
          %1383 = vmatprep.subr.mxu0 0.0
          %1384 = vmatpush1.msra.mxu0 0.0
          %1385 = vmatprep.subr.mxu0 0.0
          %1386 = vmatpush1.msra.mxu0 0.0
          %1387 = vmatprep.subr.mxu0 0.0
          %1388 = vmatpush1.msra.mxu0 0.0
          %1389 = vmatprep.subr.mxu0 0.0
          %1390 = vmatpush1.msra.mxu0 0.0
          %1391 = vmatprep.subr.mxu0 0.0
          %1392 = vmatpush1.msra.mxu0 0.0
          %1393 = vmatprep.subr.mxu0 0.0
          %1394 = vmatpush1.msra.mxu0 0.0
          %1395 = vmatprep.subr.mxu0 0.0
          %1396 = vmatpush1.msra.mxu0 0.0
          %1397 = vmatprep.subr.mxu0 0.0
          %1398 = vmatpush1.msra.mxu0 0.0
          %1399 = vmatprep.mubr.f32.mxu0 0.0
          %1400 = vmatmul.mubr.f32.gmra.mrb[0].mxu0 %v911
          %v1401 = vpop.f32.mrb[0].mxu0
          %v1402 = vadd.f32 %v1333, %v1401
          %v1403 = vpop.f32.mrb[0].mxu0
          %1404 = vdwg.mxu0
          %s1405 = scalar_lea.vmem [#allocation3], 16
          %1406 = vst.msk [vmem:[%s1405] sm:$0xff] %vm983, %v1402
          %s1407 = scalar_lea.vmem [#allocation15], 96
          %v1408 = vld [vmem:[%s1407] sm:$0xff]
          %v1409 = vld [vmem:[%s1407 + $0x8] sm:$0xff]
          %v1410 = vld [vmem:[%s1407 + $0x10] sm:$0xff]
          %v1411 = vld [vmem:[%s1407 + $0x18] sm:$0xff]
          %s1412 = scalar_lea.vmem [#allocation16], 3
          %v1413 = vld [vmem:[%s1412] sm:$0x1]
          %v1415 = vlaneseq
          %v1416 = vshrl.u32 %v1415, 7
          %v1417 = vsub.s32 0, %v1416
          %v1418 = vrot.slane %v1413, %v1417
          %1420 = vmatprep.subr.mxu0 0.0
          %1421 = vmatpush1.msra.mxu0 %v1408
          %1422 = vmatprep.subr.mxu0 0.0
          %1423 = vmatpush1.msra.mxu0 %v1409
          %1424 = vmatprep.subr.mxu0 0.0
          %1425 = vmatpush1.msra.mxu0 %v1410
          %1426 = vmatprep.subr.mxu0 0.0
          %1427 = vmatpush1.msra.mxu0 %v1411
          %1428 = vmatprep.subr.mxu0 0.0
          %1429 = vmatpush1.msra.mxu0 0.0
          %1430 = vmatprep.subr.mxu0 0.0
          %1431 = vmatpush1.msra.mxu0 0.0
          %1432 = vmatprep.subr.mxu0 0.0
          %1433 = vmatpush1.msra.mxu0 0.0
          %1434 = vmatprep.subr.mxu0 0.0
          %1435 = vmatpush1.msra.mxu0 0.0
          %1436 = vmatprep.subr.mxu0 0.0
          %1437 = vmatpush1.msra.mxu0 0.0
          %1438 = vmatprep.subr.mxu0 0.0
          %1439 = vmatpush1.msra.mxu0 0.0
          %1440 = vmatprep.subr.mxu0 0.0
          %1441 = vmatpush1.msra.mxu0 0.0
          %1442 = vmatprep.subr.mxu0 0.0
          %1443 = vmatpush1.msra.mxu0 0.0
          %1444 = vmatprep.subr.mxu0 0.0
          %1445 = vmatpush1.msra.mxu0 0.0
          %1446 = vmatprep.subr.mxu0 0.0
          %1447 = vmatpush1.msra.mxu0 0.0
          %1448 = vmatprep.subr.mxu0 0.0
          %1449 = vmatpush1.msra.mxu0 0.0
          %1450 = vmatprep.subr.mxu0 0.0
          %1451 = vmatpush1.msra.mxu0 0.0
          %1452 = vmatprep.subr.mxu0 0.0
          %1453 = vmatpush1.msra.mxu0 0.0
          %1454 = vmatprep.subr.mxu0 0.0
          %1455 = vmatpush1.msra.mxu0 0.0
          %1456 = vmatprep.subr.mxu0 0.0
          %1457 = vmatpush1.msra.mxu0 0.0
          %1458 = vmatprep.subr.mxu0 0.0
          %1459 = vmatpush1.msra.mxu0 0.0
          %1460 = vmatprep.subr.mxu0 0.0
          %1461 = vmatpush1.msra.mxu0 0.0
          %1462 = vmatprep.subr.mxu0 0.0
          %1463 = vmatpush1.msra.mxu0 0.0
          %1464 = vmatprep.subr.mxu0 0.0
          %1465 = vmatpush1.msra.mxu0 0.0
          %1466 = vmatprep.subr.mxu0 0.0
          %1467 = vmatpush1.msra.mxu0 0.0
          %1468 = vmatprep.subr.mxu0 0.0
          %1469 = vmatpush1.msra.mxu0 0.0
          %1470 = vmatprep.subr.mxu0 0.0
          %1471 = vmatpush1.msra.mxu0 0.0
          %1472 = vmatprep.subr.mxu0 0.0
          %1473 = vmatpush1.msra.mxu0 0.0
          %1474 = vmatprep.subr.mxu0 0.0
          %1475 = vmatpush1.msra.mxu0 0.0
          %1476 = vmatprep.subr.mxu0 0.0
          %1477 = vmatpush1.msra.mxu0 0.0
          %1478 = vmatprep.subr.mxu0 0.0
          %1479 = vmatpush1.msra.mxu0 0.0
          %1480 = vmatprep.subr.mxu0 0.0
          %1481 = vmatpush1.msra.mxu0 0.0
          %1482 = vmatprep.subr.mxu0 0.0
          %1483 = vmatpush1.msra.mxu0 0.0
          %1484 = vmatprep.mubr.f32.mxu0 0.0
          %1485 = vmatmul.mubr.f32.gmra.mrb[0].mxu0 %v911
          %v1486 = vpop.f32.mrb[0].mxu0
          %v1487 = vadd.f32 %v1418, %v1486
          %v1488 = vpop.f32.mrb[0].mxu0
          %1489 = vdwg.mxu0
          %s1490 = scalar_lea.vmem [#allocation2], 24
          %1491 = vst.msk [vmem:[%s1490] sm:$0xff] %vm983, %v1487
          %s1492 = scalar_lea.vmem [#allocation18], 96
          %v1493 = vld [vmem:[%s1492] sm:$0xff]
          %v1494 = vld [vmem:[%s1492 + $0x8] sm:$0xff]
          %v1495 = vld [vmem:[%s1492 + $0x10] sm:$0xff]
          %v1496 = vld [vmem:[%s1492 + $0x18] sm:$0xff]
          %s1497 = scalar_lea.vmem [#allocation19], 3
          %v1498 = vld [vmem:[%s1497] sm:$0x1]
          %v1500 = vlaneseq
          %v1501 = vshrl.u32 %v1500, 7
          %v1502 = vsub.s32 0, %v1501
          %v1503 = vrot.slane %v1498, %v1502
          %1505 = vmatprep.subr.mxu0 0.0
          %1506 = vmatpush1.msra.mxu0 %v1493
          %1507 = vmatprep.subr.mxu0 0.0
          %1508 = vmatpush1.msra.mxu0 %v1494
          %1509 = vmatprep.subr.mxu0 0.0
          %1510 = vmatpush1.msra.mxu0 %v1495
          %1511 = vmatprep.subr.mxu0 0.0
          %1512 = vmatpush1.msra.mxu0 %v1496
          %1513 = vmatprep.subr.mxu0 0.0
          %1514 = vmatpush1.msra.mxu0 0.0
          %1515 = vmatprep.subr.mxu0 0.0
          %1516 = vmatpush1.msra.mxu0 0.0
          %1517 = vmatprep.subr.mxu0 0.0
          %1518 = vmatpush1.msra.mxu0 0.0
          %1519 = vmatprep.subr.mxu0 0.0
          %1520 = vmatpush1.msra.mxu0 0.0
          %1521 = vmatprep.subr.mxu0 0.0
          %1522 = vmatpush1.msra.mxu0 0.0
          %1523 = vmatprep.subr.mxu0 0.0
          %1524 = vmatpush1.msra.mxu0 0.0
          %1525 = vmatprep.subr.mxu0 0.0
          %1526 = vmatpush1.msra.mxu0 0.0
          %1527 = vmatprep.subr.mxu0 0.0
          %1528 = vmatpush1.msra.mxu0 0.0
          %1529 = vmatprep.subr.mxu0 0.0
          %1530 = vmatpush1.msra.mxu0 0.0
          %1531 = vmatprep.subr.mxu0 0.0
          %1532 = vmatpush1.msra.mxu0 0.0
          %1533 = vmatprep.subr.mxu0 0.0
          %1534 = vmatpush1.msra.mxu0 0.0
          %1535 = vmatprep.subr.mxu0 0.0
          %1536 = vmatpush1.msra.mxu0 0.0
          %1537 = vmatprep.subr.mxu0 0.0
          %1538 = vmatpush1.msra.mxu0 0.0
          %1539 = vmatprep.subr.mxu0 0.0
          %1540 = vmatpush1.msra.mxu0 0.0
          %1541 = vmatprep.subr.mxu0 0.0
          %1542 = vmatpush1.msra.mxu0 0.0
          %1543 = vmatprep.subr.mxu0 0.0
          %1544 = vmatpush1.msra.mxu0 0.0
          %1545 = vmatprep.subr.mxu0 0.0
          %1546 = vmatpush1.msra.mxu0 0.0
          %1547 = vmatprep.subr.mxu0 0.0
          %1548 = vmatpush1.msra.mxu0 0.0
          %1549 = vmatprep.subr.mxu0 0.0
          %1550 = vmatpush1.msra.mxu0 0.0
          %1551 = vmatprep.subr.mxu0 0.0
          %1552 = vmatpush1.msra.mxu0 0.0
          %1553 = vmatprep.subr.mxu0 0.0
          %1554 = vmatpush1.msra.mxu0 0.0
          %1555 = vmatprep.subr.mxu0 0.0
          %1556 = vmatpush1.msra.mxu0 0.0
          %1557 = vmatprep.subr.mxu0 0.0
          %1558 = vmatpush1.msra.mxu0 0.0
          %1559 = vmatprep.subr.mxu0 0.0
          %1560 = vmatpush1.msra.mxu0 0.0
          %1561 = vmatprep.subr.mxu0 0.0
          %1562 = vmatpush1.msra.mxu0 0.0
          %1563 = vmatprep.subr.mxu0 0.0
          %1564 = vmatpush1.msra.mxu0 0.0
          %1565 = vmatprep.subr.mxu0 0.0
          %1566 = vmatpush1.msra.mxu0 0.0
          %1567 = vmatprep.subr.mxu0 0.0
          %1568 = vmatpush1.msra.mxu0 0.0
          %1569 = vmatprep.mubr.f32.mxu0 0.0
          %1570 = vmatmul.mubr.f32.gmra.mrb[0].mxu0 %v911
          %v1571 = vpop.f32.mrb[0].mxu0
          %v1572 = vadd.f32 %v1503, %v1571
          %v1573 = vpop.f32.mrb[0].mxu0
          %1574 = vdwg.mxu0
          %s1575 = scalar_lea.vmem [#allocation3], 24
          %1576 = vst.msk [vmem:[%s1575] sm:$0xff] %vm983, %v1572
        $region168: #{tpu_custom_call.1} parent=91 // pred_fallthru
          _
        %v1577 = vld [vmem:[%s732] sm:$0xff]
        %v1578 = vld [vmem:[#allocation9] sm:$0x1]
        %v1579 = vld [vmem:[#allocation10] sm:$0x1]
        %vm1580 = vcmask 261120
        %v1581 = vsel %vm1580, %v1577, 0.0
        %1582 = vadd.xlane.f32.xlu0 %v1581
        %v1583 = vpop.xlane.xlu0 %1582
        %v1584 = vrcp.pop 32.0
        %v1585 = vmul.f32 %v1583, %v1584
        %v1586 = vsub.f32 %v1577, %v1585
        %v1587 = vmul.f32 %v1586, %v1586
        %v1588 = vsel %vm1580, %v1587, 0.0
        %1589 = vadd.xlane.f32.xlu0 %v1588
        %v1590 = vpop.xlane.xlu0 %1589
        %v1591 = vmul.f32 %v1590, %v1584
        %v1592 = vadd.f32 %v1591, 1e-05
        %v1593 = vrsqrt.pop %v1592
        %v1594 = vmul.f32 %v1586, %v1593
        %v1596 = vlaneseq
        %v1597 = vshrl.u32 %v1596, 7
        %v1598 = vsub.s32 0, %v1597
        %v1599 = vrot.slane %v1578, %v1598
        %v1601 = vmul.f32 %v1594, %v1599
        %v1603 = vlaneseq
        %v1604 = vshrl.u32 %v1603, 7
        %v1605 = vsub.s32 0, %v1604
        %v1606 = vrot.slane %v1579, %v1605
        %v1608 = vadd.f32 %v1601, %v1606
        %v1609 = vld [vmem:[#allocation12] sm:$0xff]
        %v1610 = vld [vmem:[#allocation12 + $0x8] sm:$0xff]
        %v1611 = vld [vmem:[#allocation12 + $0x10] sm:$0xff]
        %v1612 = vld [vmem:[#allocation12 + $0x18] sm:$0xff]
        %v1613 = vld [vmem:[#allocation13] sm:$0x1]
        %v1615 = vlaneseq
        %v1616 = vshrl.u32 %v1615, 7
        %v1617 = vsub.s32 0, %v1616
        %v1618 = vrot.slane %v1613, %v1617
        %v1621 = vsel %vm1580, %v1608, 0
        %1623 = vmatprep.subr.mxu0 0.0
        %1624 = vmatpush1.msra.mxu0 %v1609
        %1625 = vmatprep.subr.mxu0 0.0
        %1626 = vmatpush1.msra.mxu0 %v1610
        %1627 = vmatprep.subr.mxu0 0.0
        %1628 = vmatpush1.msra.mxu0 %v1611
        %1629 = vmatprep.subr.mxu0 0.0
        %1630 = vmatpush1.msra.mxu0 %v1612
        %1631 = vmatprep.subr.mxu0 0.0
        %1632 = vmatpush1.msra.mxu0 0.0
        %1633 = vmatprep.subr.mxu0 0.0
        %1634 = vmatpush1.msra.mxu0 0.0
        %1635 = vmatprep.subr.mxu0 0.0
        %1636 = vmatpush1.msra.mxu0 0.0
        %1637 = vmatprep.subr.mxu0 0.0
        %1638 = vmatpush1.msra.mxu0 0.0
        %1639 = vmatprep.subr.mxu0 0.0
        %1640 = vmatpush1.msra.mxu0 0.0
        %1641 = vmatprep.subr.mxu0 0.0
        %1642 = vmatpush1.msra.mxu0 0.0
        %1643 = vmatprep.subr.mxu0 0.0
        %1644 = vmatpush1.msra.mxu0 0.0
        %1645 = vmatprep.subr.mxu0 0.0
        %1646 = vmatpush1.msra.mxu0 0.0
        %1647 = vmatprep.subr.mxu0 0.0
        %1648 = vmatpush1.msra.mxu0 0.0
        %1649 = vmatprep.subr.mxu0 0.0
        %1650 = vmatpush1.msra.mxu0 0.0
        %1651 = vmatprep.subr.mxu0 0.0
        %1652 = vmatpush1.msra.mxu0 0.0
        %1653 = vmatprep.subr.mxu0 0.0
        %1654 = vmatpush1.msra.mxu0 0.0
        %1655 = vmatprep.subr.mxu0 0.0
        %1656 = vmatpush1.msra.mxu0 0.0
        %1657 = vmatprep.subr.mxu0 0.0
        %1658 = vmatpush1.msra.mxu0 0.0
        %1659 = vmatprep.subr.mxu0 0.0
        %1660 = vmatpush1.msra.mxu0 0.0
        %1661 = vmatprep.subr.mxu0 0.0
        %1662 = vmatpush1.msra.mxu0 0.0
        %1663 = vmatprep.subr.mxu0 0.0
        %1664 = vmatpush1.msra.mxu0 0.0
        %1665 = vmatprep.subr.mxu0 0.0
        %1666 = vmatpush1.msra.mxu0 0.0
        %1667 = vmatprep.subr.mxu0 0.0
        %1668 = vmatpush1.msra.mxu0 0.0
        %1669 = vmatprep.subr.mxu0 0.0
        %1670 = vmatpush1.msra.mxu0 0.0
        %1671 = vmatprep.subr.mxu0 0.0
        %1672 = vmatpush1.msra.mxu0 0.0
        %1673 = vmatprep.subr.mxu0 0.0
        %1674 = vmatpush1.msra.mxu0 0.0
        %1675 = vmatprep.subr.mxu0 0.0
        %1676 = vmatpush1.msra.mxu0 0.0
        %1677 = vmatprep.subr.mxu0 0.0
        %1678 = vmatpush1.msra.mxu0 0.0
        %1679 = vmatprep.subr.mxu0 0.0
        %1680 = vmatpush1.msra.mxu0 0.0
        %1681 = vmatprep.subr.mxu0 0.0
        %1682 = vmatpush1.msra.mxu0 0.0
        %1683 = vmatprep.subr.mxu0 0.0
        %1684 = vmatpush1.msra.mxu0 0.0
        %1685 = vmatprep.subr.mxu0 0.0
        %1686 = vmatpush1.msra.mxu0 0.0
        %1687 = vmatprep.mubr.f32.mxu0 0.0
        %1688 = vmatmul.mubr.f32.gmra.mrb[0].mxu0 %v1621
        %v1689 = vpop.f32.mrb[0].mxu0
        %v1690 = vadd.f32 %v1618, %v1689
        %v1691 = vpop.f32.mrb[0].mxu0
        %1692 = vdwg.mxu0
        %v1693 = vmul.f32 %v1690, 0.35355338
        %v1694 = vld [vmem:[#allocation2] sm:$0xff]
        %v1695 = vld [vmem:[#allocation3] sm:$0xff]
        %vm1696 = vcmask 64512
        %v1698 = vsel %vm1696, %v1693, 0
        %v1701 = vsel %vm1696, %v1694, 0
        %1703 = vmatprep.subr.mxu0 0.0
        %1704 = vmatpush1.xpose.msra.mxu0 %v1701
        %1705 = vmatprep.subr.mxu0 0.0
        %1706 = vmatpush1.xpose.msra.mxu0 0.0
        %1707 = vmatprep.subr.mxu0 0.0
        %1708 = vmatpush1.xpose.msra.mxu0 0.0
        %1709 = vmatprep.subr.mxu0 0.0
        %1710 = vmatpush1.xpose.msra.mxu0 0.0
        %1711 = vmatprep.subr.mxu0 0.0
        %1712 = vmatpush1.xpose.msra.mxu0 0.0
        %1713 = vmatprep.subr.mxu0 0.0
        %1714 = vmatpush1.xpose.msra.mxu0 0.0
        %1715 = vmatprep.subr.mxu0 0.0
        %1716 = vmatpush1.xpose.msra.mxu0 0.0
        %1717 = vmatprep.subr.mxu0 0.0
        %1718 = vmatpush1.xpose.msra.mxu0 0.0
        %1719 = vmatprep.subr.mxu0 0.0
        %1720 = vmatpush1.xpose.msra.mxu0 0.0
        %1721 = vmatprep.subr.mxu0 0.0
        %1722 = vmatpush1.xpose.msra.mxu0 0.0
        %1723 = vmatprep.subr.mxu0 0.0
        %1724 = vmatpush1.xpose.msra.mxu0 0.0
        %1725 = vmatprep.subr.mxu0 0.0
        %1726 = vmatpush1.xpose.msra.mxu0 0.0
        %1727 = vmatprep.subr.mxu0 0.0
        %1728 = vmatpush1.xpose.msra.mxu0 0.0
        %1729 = vmatprep.subr.mxu0 0.0
        %1730 = vmatpush1.xpose.msra.mxu0 0.0
        %1731 = vmatprep.subr.mxu0 0.0
        %1732 = vmatpush1.xpose.msra.mxu0 0.0
        %1733 = vmatprep.subr.mxu0 0.0
        %1734 = vmatpush1.xpose.msra.mxu0 0.0
        %1735 = vmatprep.subr.mxu0 0.0
        %1736 = vmatpush1.xpose.msra.mxu0 0.0
        %1737 = vmatprep.subr.mxu0 0.0
        %1738 = vmatpush1.xpose.msra.mxu0 0.0
        %1739 = vmatprep.subr.mxu0 0.0
        %1740 = vmatpush1.xpose.msra.mxu0 0.0
        %1741 = vmatprep.subr.mxu0 0.0
        %1742 = vmatpush1.xpose.msra.mxu0 0.0
        %1743 = vmatprep.subr.mxu0 0.0
        %1744 = vmatpush1.xpose.msra.mxu0 0.0
        %1745 = vmatprep.subr.mxu0 0.0
        %1746 = vmatpush1.xpose.msra.mxu0 0.0
        %1747 = vmatprep.subr.mxu0 0.0
        %1748 = vmatpush1.xpose.msra.mxu0 0.0
        %1749 = vmatprep.subr.mxu0 0.0
        %1750 = vmatpush1.xpose.msra.mxu0 0.0
        %1751 = vmatprep.subr.mxu0 0.0
        %1752 = vmatpush1.xpose.msra.mxu0 0.0
        %1753 = vmatprep.subr.mxu0 0.0
        %1754 = vmatpush1.xpose.msra.mxu0 0.0
        %1755 = vmatprep.subr.mxu0 0.0
        %1756 = vmatpush1.xpose.msra.mxu0 0.0
        %1757 = vmatprep.subr.mxu0 0.0
        %1758 = vmatpush1.xpose.msra.mxu0 0.0
        %1759 = vmatprep.subr.mxu0 0.0
        %1760 = vmatpush1.xpose.msra.mxu0 0.0
        %1761 = vmatprep.subr.mxu0 0.0
        %1762 = vmatpush1.xpose.msra.mxu0 0.0
        %1763 = vmatprep.subr.mxu0 0.0
        %1764 = vmatpush1.xpose.msra.mxu0 0.0
        %1765 = vmatprep.subr.mxu0 0.0
        %1766 = vmatpush1.xpose.msra.mxu0 0.0
        %1767 = vmatprep.mubr.f32.mxu0 0.0
        %1768 = vmatmul.mubr.f32.gmra.mrb[0].mxu0 %v1698
        %v1769 = vpop.f32.mrb[0].mxu0
        %v1770 = vadd.f32 0.0, %v1769
        %v1771 = vpop.f32.mrb[0].mxu0
        %1772 = vdwg.mxu0
        %v1773 = vsel %vm1696, %v1770, -inf
        %1774 = vmax.xlane.f32.xlu0 %v1773
        %v1775 = vpop.xlane.xlu0 %1774
        %v1776 = vsub.f32 %v1770, %v1775
        %v1777 = vmul.f32 %v1776, 1.442695
        %v1778 = vpow.pop %v1777
        %v1779 = vsel %vm1696, %v1778, 0.0
        %1780 = vadd.xlane.f32.xlu0 %v1779
        %v1781 = vpop.xlane.xlu0 %1780
        %v1782 = vrcp.pop %v1781
        %v1783 = vmul.f32 %v1778, %v1782
        %v1785 = vsel %vm1696, %v1783, 0
        %1787 = vmatprep.subr.mxu0 0.0
        %1788 = vmatpush1.msra.mxu0 %v1695
        %1789 = vmatprep.subr.mxu0 0.0
        %1790 = vmatpush1.msra.mxu0 0.0
        %1791 = vmatprep.subr.mxu0 0.0
        %1792 = vmatpush1.msra.mxu0 0.0
        %1793 = vmatprep.subr.mxu0 0.0
        %1794 = vmatpush1.msra.mxu0 0.0
        %1795 = vmatprep.subr.mxu0 0.0
        %1796 = vmatpush1.msra.mxu0 0.0
        %1797 = vmatprep.subr.mxu0 0.0
        %1798 = vmatpush1.msra.mxu0 0.0
        %1799 = vmatprep.subr.mxu0 0.0
        %1800 = vmatpush1.msra.mxu0 0.0
        %1801 = vmatprep.subr.mxu0 0.0
        %1802 = vmatpush1.msra.mxu0 0.0
        %1803 = vmatprep.subr.mxu0 0.0
        %1804 = vmatpush1.msra.mxu0 0.0
        %1805 = vmatprep.subr.mxu0 0.0
        %1806 = vmatpush1.msra.mxu0 0.0
        %1807 = vmatprep.subr.mxu0 0.0
        %1808 = vmatpush1.msra.mxu0 0.0
        %1809 = vmatprep.subr.mxu0 0.0
        %1810 = vmatpush1.msra.mxu0 0.0
        %1811 = vmatprep.subr.mxu0 0.0
        %1812 = vmatpush1.msra.mxu0 0.0
        %1813 = vmatprep.subr.mxu0 0.0
        %1814 = vmatpush1.msra.mxu0 0.0
        %1815 = vmatprep.subr.mxu0 0.0
        %1816 = vmatpush1.msra.mxu0 0.0
        %1817 = vmatprep.subr.mxu0 0.0
        %1818 = vmatpush1.msra.mxu0 0.0
        %1819 = vmatprep.subr.mxu0 0.0
        %1820 = vmatpush1.msra.mxu0 0.0
        %1821 = vmatprep.subr.mxu0 0.0
        %1822 = vmatpush1.msra.mxu0 0.0
        %1823 = vmatprep.subr.mxu0 0.0
        %1824 = vmatpush1.msra.mxu0 0.0
        %1825 = vmatprep.subr.mxu0 0.0
        %1826 = vmatpush1.msra.mxu0 0.0
        %1827 = vmatprep.subr.mxu0 0.0
        %1828 = vmatpush1.msra.mxu0 0.0
        %1829 = vmatprep.subr.mxu0 0.0
        %1830 = vmatpush1.msra.mxu0 0.0
        %1831 = vmatprep.subr.mxu0 0.0
        %1832 = vmatpush1.msra.mxu0 0.0
        %1833 = vmatprep.subr.mxu0 0.0
        %1834 = vmatpush1.msra.mxu0 0.0
        %1835 = vmatprep.subr.mxu0 0.0
        %1836 = vmatpush1.msra.mxu0 0.0
        %1837 = vmatprep.subr.mxu0 0.0
        %1838 = vmatpush1.msra.mxu0 0.0
        %1839 = vmatprep.subr.mxu0 0.0
        %1840 = vmatpush1.msra.mxu0 0.0
        %1841 = vmatprep.subr.mxu0 0.0
        %1842 = vmatpush1.msra.mxu0 0.0
        %1843 = vmatprep.subr.mxu0 0.0
        %1844 = vmatpush1.msra.mxu0 0.0
        %1845 = vmatprep.subr.mxu0 0.0
        %1846 = vmatpush1.msra.mxu0 0.0
        %1847 = vmatprep.subr.mxu0 0.0
        %1848 = vmatpush1.msra.mxu0 0.0
        %1849 = vmatprep.subr.mxu0 0.0
        %1850 = vmatpush1.msra.mxu0 0.0
        %1851 = vmatprep.mubr.f32.mxu0 0.0
        %1852 = vmatmul.mubr.f32.gmra.mrb[0].mxu0 %v1785
        %v1853 = vpop.f32.mrb[0].mxu0
        %v1854 = vadd.f32 0.0, %v1853
        %v1855 = vpop.f32.mrb[0].mxu0
        %1856 = vdwg.mxu0
        %v1857 = vld [vmem:[#allocation21] sm:$0xff]
        %s1858 = scalar_lea.vmem [#allocation12], 32
        %v1859 = vld [vmem:[%s1858] sm:$0xff]
        %v1860 = vld [vmem:[%s1858 + $0x8] sm:$0xff]
        %v1861 = vld [vmem:[%s1858 + $0x10] sm:$0xff]
        %v1862 = vld [vmem:[%s1858 + $0x18] sm:$0xff]
        %s1863 = scalar_lea.vmem [#allocation13], 1
        %v1864 = vld [vmem:[%s1863] sm:$0x1]
        %v1866 = vlaneseq
        %v1867 = vshrl.u32 %v1866, 7
        %v1868 = vsub.s32 0, %v1867
        %v1869 = vrot.slane %v1864, %v1868
        %1871 = vmatprep.subr.mxu0 0.0
        %1872 = vmatpush1.msra.mxu0 %v1859
        %1873 = vmatprep.subr.mxu0 0.0
        %1874 = vmatpush1.msra.mxu0 %v1860
        %1875 = vmatprep.subr.mxu0 0.0
        %1876 = vmatpush1.msra.mxu0 %v1861
        %1877 = vmatprep.subr.mxu0 0.0
        %1878 = vmatpush1.msra.mxu0 %v1862
        %1879 = vmatprep.subr.mxu0 0.0
        %1880 = vmatpush1.msra.mxu0 0.0
        %1881 = vmatprep.subr.mxu0 0.0
        %1882 = vmatpush1.msra.mxu0 0.0
        %1883 = vmatprep.subr.mxu0 0.0
        %1884 = vmatpush1.msra.mxu0 0.0
        %1885 = vmatprep.subr.mxu0 0.0
        %1886 = vmatpush1.msra.mxu0 0.0
        %1887 = vmatprep.subr.mxu0 0.0
        %1888 = vmatpush1.msra.mxu0 0.0
        %1889 = vmatprep.subr.mxu0 0.0
        %1890 = vmatpush1.msra.mxu0 0.0
        %1891 = vmatprep.subr.mxu0 0.0
        %1892 = vmatpush1.msra.mxu0 0.0
        %1893 = vmatprep.subr.mxu0 0.0
        %1894 = vmatpush1.msra.mxu0 0.0
        %1895 = vmatprep.subr.mxu0 0.0
        %1896 = vmatpush1.msra.mxu0 0.0
        %1897 = vmatprep.subr.mxu0 0.0
        %1898 = vmatpush1.msra.mxu0 0.0
        %1899 = vmatprep.subr.mxu0 0.0
        %1900 = vmatpush1.msra.mxu0 0.0
        %1901 = vmatprep.subr.mxu0 0.0
        %1902 = vmatpush1.msra.mxu0 0.0
        %1903 = vmatprep.subr.mxu0 0.0
        %1904 = vmatpush1.msra.mxu0 0.0
        %1905 = vmatprep.subr.mxu0 0.0
        %1906 = vmatpush1.msra.mxu0 0.0
        %1907 = vmatprep.subr.mxu0 0.0
        %1908 = vmatpush1.msra.mxu0 0.0
        %1909 = vmatprep.subr.mxu0 0.0
        %1910 = vmatpush1.msra.mxu0 0.0
        %1911 = vmatprep.subr.mxu0 0.0
        %1912 = vmatpush1.msra.mxu0 0.0
        %1913 = vmatprep.subr.mxu0 0.0
        %1914 = vmatpush1.msra.mxu0 0.0
        %1915 = vmatprep.subr.mxu0 0.0
        %1916 = vmatpush1.msra.mxu0 0.0
        %1917 = vmatprep.subr.mxu0 0.0
        %1918 = vmatpush1.msra.mxu0 0.0
        %1919 = vmatprep.subr.mxu0 0.0
        %1920 = vmatpush1.msra.mxu0 0.0
        %1921 = vmatprep.subr.mxu0 0.0
        %1922 = vmatpush1.msra.mxu0 0.0
        %1923 = vmatprep.subr.mxu0 0.0
        %1924 = vmatpush1.msra.mxu0 0.0
        %1925 = vmatprep.subr.mxu0 0.0
        %1926 = vmatpush1.msra.mxu0 0.0
        %1927 = vmatprep.subr.mxu0 0.0
        %1928 = vmatpush1.msra.mxu0 0.0
        %1929 = vmatprep.subr.mxu0 0.0
        %1930 = vmatpush1.msra.mxu0 0.0
        %1931 = vmatprep.subr.mxu0 0.0
        %1932 = vmatpush1.msra.mxu0 0.0
        %1933 = vmatprep.subr.mxu0 0.0
        %1934 = vmatpush1.msra.mxu0 0.0
        %1935 = vmatprep.mubr.f32.mxu0 0.0
        %1936 = vmatmul.mubr.f32.gmra.mrb[0].mxu0 %v1621
        %v1937 = vpop.f32.mrb[0].mxu0
        %v1938 = vadd.f32 %v1869, %v1937
        %v1939 = vpop.f32.mrb[0].mxu0
        %1940 = vdwg.mxu0
        %v1941 = vmul.f32 %v1938, 0.35355338
        %s1942 = scalar_lea.vmem [#allocation2], 8
        %v1943 = vld [vmem:[%s1942] sm:$0xff]
        %s1944 = scalar_lea.vmem [#allocation3], 8
        %v1945 = vld [vmem:[%s1944] sm:$0xff]
        %v1947 = vsel %vm1696, %v1941, 0
        %v1950 = vsel %vm1696, %v1943, 0
        %1952 = vmatprep.subr.mxu0 0.0
        %1953 = vmatpush1.xpose.msra.mxu0 %v1950
        %1954 = vmatprep.subr.mxu0 0.0
        %1955 = vmatpush1.xpose.msra.mxu0 0.0
        %1956 = vmatprep.subr.mxu0 0.0
        %1957 = vmatpush1.xpose.msra.mxu0 0.0
        %1958 = vmatprep.subr.mxu0 0.0
        %1959 = vmatpush1.xpose.msra.mxu0 0.0
        %1960 = vmatprep.subr.mxu0 0.0
        %1961 = vmatpush1.xpose.msra.mxu0 0.0
        %1962 = vmatprep.subr.mxu0 0.0
        %1963 = vmatpush1.xpose.msra.mxu0 0.0
        %1964 = vmatprep.subr.mxu0 0.0
        %1965 = vmatpush1.xpose.msra.mxu0 0.0
        %1966 = vmatprep.subr.mxu0 0.0
        %1967 = vmatpush1.xpose.msra.mxu0 0.0
        %1968 = vmatprep.subr.mxu0 0.0
        %1969 = vmatpush1.xpose.msra.mxu0 0.0
        %1970 = vmatprep.subr.mxu0 0.0
        %1971 = vmatpush1.xpose.msra.mxu0 0.0
        %1972 = vmatprep.subr.mxu0 0.0
        %1973 = vmatpush1.xpose.msra.mxu0 0.0
        %1974 = vmatprep.subr.mxu0 0.0
        %1975 = vmatpush1.xpose.msra.mxu0 0.0
        %1976 = vmatprep.subr.mxu0 0.0
        %1977 = vmatpush1.xpose.msra.mxu0 0.0
        %1978 = vmatprep.subr.mxu0 0.0
        %1979 = vmatpush1.xpose.msra.mxu0 0.0
        %1980 = vmatprep.subr.mxu0 0.0
        %1981 = vmatpush1.xpose.msra.mxu0 0.0
        %1982 = vmatprep.subr.mxu0 0.0
        %1983 = vmatpush1.xpose.msra.mxu0 0.0
        %1984 = vmatprep.subr.mxu0 0.0
        %1985 = vmatpush1.xpose.msra.mxu0 0.0
        %1986 = vmatprep.subr.mxu0 0.0
        %1987 = vmatpush1.xpose.msra.mxu0 0.0
        %1988 = vmatprep.subr.mxu0 0.0
        %1989 = vmatpush1.xpose.msra.mxu0 0.0
        %1990 = vmatprep.subr.mxu0 0.0
        %1991 = vmatpush1.xpose.msra.mxu0 0.0
        %1992 = vmatprep.subr.mxu0 0.0
        %1993 = vmatpush1.xpose.msra.mxu0 0.0
        %1994 = vmatprep.subr.mxu0 0.0
        %1995 = vmatpush1.xpose.msra.mxu0 0.0
        %1996 = vmatprep.subr.mxu0 0.0
        %1997 = vmatpush1.xpose.msra.mxu0 0.0
        %1998 = vmatprep.subr.mxu0 0.0
        %1999 = vmatpush1.xpose.msra.mxu0 0.0
        %2000 = vmatprep.subr.mxu0 0.0
        %2001 = vmatpush1.xpose.msra.mxu0 0.0
        %2002 = vmatprep.subr.mxu0 0.0
        %2003 = vmatpush1.xpose.msra.mxu0 0.0
        %2004 = vmatprep.subr.mxu0 0.0
        %2005 = vmatpush1.xpose.msra.mxu0 0.0
        %2006 = vmatprep.subr.mxu0 0.0
        %2007 = vmatpush1.xpose.msra.mxu0 0.0
        %2008 = vmatprep.subr.mxu0 0.0
        %2009 = vmatpush1.xpose.msra.mxu0 0.0
        %2010 = vmatprep.subr.mxu0 0.0
        %2011 = vmatpush1.xpose.msra.mxu0 0.0
        %2012 = vmatprep.subr.mxu0 0.0
        %2013 = vmatpush1.xpose.msra.mxu0 0.0
        %2014 = vmatprep.subr.mxu0 0.0
        %2015 = vmatpush1.xpose.msra.mxu0 0.0
        %2016 = vmatprep.mubr.f32.mxu0 0.0
        %2017 = vmatmul.mubr.f32.gmra.mrb[0].mxu0 %v1947
        %v2018 = vpop.f32.mrb[0].mxu0
        %v2019 = vadd.f32 0.0, %v2018
        %v2020 = vpop.f32.mrb[0].mxu0
        %2021 = vdwg.mxu0
        %v2022 = vsel %vm1696, %v2019, -inf
        %2023 = vmax.xlane.f32.xlu0 %v2022
        %v2024 = vpop.xlane.xlu0 %2023
        %v2025 = vsub.f32 %v2019, %v2024
        %v2026 = vmul.f32 %v2025, 1.442695
        %v2027 = vpow.pop %v2026
        %v2028 = vsel %vm1696, %v2027, 0.0
        %2029 = vadd.xlane.f32.xlu0 %v2028
        %v2030 = vpop.xlane.xlu0 %2029
        %v2031 = vrcp.pop %v2030
        %v2032 = vmul.f32 %v2027, %v2031
        %v2034 = vsel %vm1696, %v2032, 0
        %2036 = vmatprep.subr.mxu0 0.0
        %2037 = vmatpush1.msra.mxu0 %v1945
        %2038 = vmatprep.subr.mxu0 0.0
        %2039 = vmatpush1.msra.mxu0 0.0
        %2040 = vmatprep.subr.mxu0 0.0
        %2041 = vmatpush1.msra.mxu0 0.0
        %2042 = vmatprep.subr.mxu0 0.0
        %2043 = vmatpush1.msra.mxu0 0.0
        %2044 = vmatprep.subr.mxu0 0.0
        %2045 = vmatpush1.msra.mxu0 0.0
        %2046 = vmatprep.subr.mxu0 0.0
        %2047 = vmatpush1.msra.mxu0 0.0
        %2048 = vmatprep.subr.mxu0 0.0
        %2049 = vmatpush1.msra.mxu0 0.0
        %2050 = vmatprep.subr.mxu0 0.0
        %2051 = vmatpush1.msra.mxu0 0.0
        %2052 = vmatprep.subr.mxu0 0.0
        %2053 = vmatpush1.msra.mxu0 0.0
        %2054 = vmatprep.subr.mxu0 0.0
        %2055 = vmatpush1.msra.mxu0 0.0
        %2056 = vmatprep.subr.mxu0 0.0
        %2057 = vmatpush1.msra.mxu0 0.0
        %2058 = vmatprep.subr.mxu0 0.0
        %2059 = vmatpush1.msra.mxu0 0.0
        %2060 = vmatprep.subr.mxu0 0.0
        %2061 = vmatpush1.msra.mxu0 0.0
        %2062 = vmatprep.subr.mxu0 0.0
        %2063 = vmatpush1.msra.mxu0 0.0
        %2064 = vmatprep.subr.mxu0 0.0
        %2065 = vmatpush1.msra.mxu0 0.0
        %2066 = vmatprep.subr.mxu0 0.0
        %2067 = vmatpush1.msra.mxu0 0.0
        %2068 = vmatprep.subr.mxu0 0.0
        %2069 = vmatpush1.msra.mxu0 0.0
        %2070 = vmatprep.subr.mxu0 0.0
        %2071 = vmatpush1.msra.mxu0 0.0
        %2072 = vmatprep.subr.mxu0 0.0
        %2073 = vmatpush1.msra.mxu0 0.0
        %2074 = vmatprep.subr.mxu0 0.0
        %2075 = vmatpush1.msra.mxu0 0.0
        %2076 = vmatprep.subr.mxu0 0.0
        %2077 = vmatpush1.msra.mxu0 0.0
        %2078 = vmatprep.subr.mxu0 0.0
        %2079 = vmatpush1.msra.mxu0 0.0
        %2080 = vmatprep.subr.mxu0 0.0
        %2081 = vmatpush1.msra.mxu0 0.0
        %2082 = vmatprep.subr.mxu0 0.0
        %2083 = vmatpush1.msra.mxu0 0.0
        %2084 = vmatprep.subr.mxu0 0.0
        %2085 = vmatpush1.msra.mxu0 0.0
        %2086 = vmatprep.subr.mxu0 0.0
        %2087 = vmatpush1.msra.mxu0 0.0
        %2088 = vmatprep.subr.mxu0 0.0
        %2089 = vmatpush1.msra.mxu0 0.0
        %2090 = vmatprep.subr.mxu0 0.0
        %2091 = vmatpush1.msra.mxu0 0.0
        %2092 = vmatprep.subr.mxu0 0.0
        %2093 = vmatpush1.msra.mxu0 0.0
        %2094 = vmatprep.subr.mxu0 0.0
        %2095 = vmatpush1.msra.mxu0 0.0
        %2096 = vmatprep.subr.mxu0 0.0
        %2097 = vmatpush1.msra.mxu0 0.0
        %2098 = vmatprep.subr.mxu0 0.0
        %2099 = vmatpush1.msra.mxu0 0.0
        %2100 = vmatprep.mubr.f32.mxu0 0.0
        %2101 = vmatmul.mubr.f32.gmra.mrb[0].mxu0 %v2034
        %v2102 = vpop.f32.mrb[0].mxu0
        %v2103 = vadd.f32 0.0, %v2102
        %v2104 = vpop.f32.mrb[0].mxu0
        %2105 = vdwg.mxu0
        %s2106 = scalar_lea.vmem [#allocation21], 8
        %v2107 = vld [vmem:[%s2106] sm:$0xff]
        %v2109 = vsel %vm1696, %v2103, 0
        %2111 = vmatprep.subr.mxu0 0.0
        %2112 = vmatpush1.msra.mxu0 %v2107
        %2113 = vmatprep.subr.mxu0 0.0
        %2114 = vmatpush1.msra.mxu0 0.0
        %2115 = vmatprep.subr.mxu0 0.0
        %2116 = vmatpush1.msra.mxu0 0.0
        %2117 = vmatprep.subr.mxu0 0.0
        %2118 = vmatpush1.msra.mxu0 0.0
        %2119 = vmatprep.subr.mxu0 0.0
        %2120 = vmatpush1.msra.mxu0 0.0
        %2121 = vmatprep.subr.mxu0 0.0
        %2122 = vmatpush1.msra.mxu0 0.0
        %2123 = vmatprep.subr.mxu0 0.0
        %2124 = vmatpush1.msra.mxu0 0.0
        %2125 = vmatprep.subr.mxu0 0.0
        %2126 = vmatpush1.msra.mxu0 0.0
        %2127 = vmatprep.subr.mxu0 0.0
        %2128 = vmatpush1.msra.mxu0 0.0
        %2129 = vmatprep.subr.mxu0 0.0
        %2130 = vmatpush1.msra.mxu0 0.0
        %2131 = vmatprep.subr.mxu0 0.0
        %2132 = vmatpush1.msra.mxu0 0.0
        %2133 = vmatprep.subr.mxu0 0.0
        %2134 = vmatpush1.msra.mxu0 0.0
        %2135 = vmatprep.subr.mxu0 0.0
        %2136 = vmatpush1.msra.mxu0 0.0
        %2137 = vmatprep.subr.mxu0 0.0
        %2138 = vmatpush1.msra.mxu0 0.0
        %2139 = vmatprep.subr.mxu0 0.0
        %2140 = vmatpush1.msra.mxu0 0.0
        %2141 = vmatprep.subr.mxu0 0.0
        %2142 = vmatpush1.msra.mxu0 0.0
        %2143 = vmatprep.subr.mxu0 0.0
        %2144 = vmatpush1.msra.mxu0 0.0
        %2145 = vmatprep.subr.mxu0 0.0
        %2146 = vmatpush1.msra.mxu0 0.0
        %2147 = vmatprep.subr.mxu0 0.0
        %2148 = vmatpush1.msra.mxu0 0.0
        %2149 = vmatprep.subr.mxu0 0.0
        %2150 = vmatpush1.msra.mxu0 0.0
        %2151 = vmatprep.subr.mxu0 0.0
        %2152 = vmatpush1.msra.mxu0 0.0
        %2153 = vmatprep.subr.mxu0 0.0
        %2154 = vmatpush1.msra.mxu0 0.0
        %2155 = vmatprep.subr.mxu0 0.0
        %2156 = vmatpush1.msra.mxu0 0.0
        %2157 = vmatprep.subr.mxu0 0.0
        %2158 = vmatpush1.msra.mxu0 0.0
        %2159 = vmatprep.subr.mxu0 0.0
        %2160 = vmatpush1.msra.mxu0 0.0
        %2161 = vmatprep.subr.mxu0 0.0
        %2162 = vmatpush1.msra.mxu0 0.0
        %2163 = vmatprep.subr.mxu0 0.0
        %2164 = vmatpush1.msra.mxu0 0.0
        %2165 = vmatprep.subr.mxu0 0.0
        %2166 = vmatpush1.msra.mxu0 0.0
        %2167 = vmatprep.subr.mxu0 0.0
        %2168 = vmatpush1.msra.mxu0 0.0
        %2169 = vmatprep.subr.mxu0 0.0
        %2170 = vmatpush1.msra.mxu0 0.0
        %2171 = vmatprep.subr.mxu0 0.0
        %2172 = vmatpush1.msra.mxu0 0.0
        %2173 = vmatprep.subr.mxu0 0.0
        %2174 = vmatpush1.msra.mxu0 0.0
        %2175 = vmatprep.mubr.f32.mxu0 0.0
        %2176 = vmatmul.mubr.f32.gmra.mrb[0].mxu0 %v2109
        %v2177 = vpop.f32.mrb[0].mxu0
        %v2178 = vadd.f32 0.0, %v2177
        %v2179 = vpop.f32.mrb[0].mxu0
        %2180 = vdwg.mxu0
        %v2182 = vsel %vm1696, %v1854, 0
        %2184 = vmatprep.subr.mxu0 0.0
        %2185 = vmatpush1.msra.mxu0 %v1857
        %2186 = vmatprep.subr.mxu0 0.0
        %2187 = vmatpush1.msra.mxu0 0.0
        %2188 = vmatprep.subr.mxu0 0.0
        %2189 = vmatpush1.msra.mxu0 0.0
        %2190 = vmatprep.subr.mxu0 0.0
        %2191 = vmatpush1.msra.mxu0 0.0
        %2192 = vmatprep.subr.mxu0 0.0
        %2193 = vmatpush1.msra.mxu0 0.0
        %2194 = vmatprep.subr.mxu0 0.0
        %2195 = vmatpush1.msra.mxu0 0.0
        %2196 = vmatprep.subr.mxu0 0.0
        %2197 = vmatpush1.msra.mxu0 0.0
        %2198 = vmatprep.subr.mxu0 0.0
        %2199 = vmatpush1.msra.mxu0 0.0
        %2200 = vmatprep.subr.mxu0 0.0
        %2201 = vmatpush1.msra.mxu0 0.0
        %2202 = vmatprep.subr.mxu0 0.0
        %2203 = vmatpush1.msra.mxu0 0.0
        %2204 = vmatprep.subr.mxu0 0.0
        %2205 = vmatpush1.msra.mxu0 0.0
        %2206 = vmatprep.subr.mxu0 0.0
        %2207 = vmatpush1.msra.mxu0 0.0
        %2208 = vmatprep.subr.mxu0 0.0
        %2209 = vmatpush1.msra.mxu0 0.0
        %2210 = vmatprep.subr.mxu0 0.0
        %2211 = vmatpush1.msra.mxu0 0.0
        %2212 = vmatprep.subr.mxu0 0.0
        %2213 = vmatpush1.msra.mxu0 0.0
        %2214 = vmatprep.subr.mxu0 0.0
        %2215 = vmatpush1.msra.mxu0 0.0
        %2216 = vmatprep.subr.mxu0 0.0
        %2217 = vmatpush1.msra.mxu0 0.0
        %2218 = vmatprep.subr.mxu0 0.0
        %2219 = vmatpush1.msra.mxu0 0.0
        %2220 = vmatprep.subr.mxu0 0.0
        %2221 = vmatpush1.msra.mxu0 0.0
        %2222 = vmatprep.subr.mxu0 0.0
        %2223 = vmatpush1.msra.mxu0 0.0
        %2224 = vmatprep.subr.mxu0 0.0
        %2225 = vmatpush1.msra.mxu0 0.0
        %2226 = vmatprep.subr.mxu0 0.0
        %2227 = vmatpush1.msra.mxu0 0.0
        %2228 = vmatprep.subr.mxu0 0.0
        %2229 = vmatpush1.msra.mxu0 0.0
        %2230 = vmatprep.subr.mxu0 0.0
        %2231 = vmatpush1.msra.mxu0 0.0
        %2232 = vmatprep.subr.mxu0 0.0
        %2233 = vmatpush1.msra.mxu0 0.0
        %2234 = vmatprep.subr.mxu0 0.0
        %2235 = vmatpush1.msra.mxu0 0.0
        %2236 = vmatprep.subr.mxu0 0.0
        %2237 = vmatpush1.msra.mxu0 0.0
        %2238 = vmatprep.subr.mxu0 0.0
        %2239 = vmatpush1.msra.mxu0 0.0
        %2240 = vmatprep.subr.mxu0 0.0
        %2241 = vmatpush1.msra.mxu0 0.0
        %2242 = vmatprep.subr.mxu0 0.0
        %2243 = vmatpush1.msra.mxu0 0.0
        %2244 = vmatprep.subr.mxu0 0.0
        %2245 = vmatpush1.msra.mxu0 0.0
        %2246 = vmatprep.subr.mxu0 0.0
        %2247 = vmatpush1.msra.mxu0 0.0
        %2248 = vmatprep.mubr.f32.mxu0 0.0
        %2249 = vmatmul.mubr.f32.gmra.mrb[0].mxu0 %v2182
        %v2250 = vpop.f32.mrb[0].mxu0
        %v2251 = vadd.f32 %v2178, %v2250
        %v2252 = vpop.f32.mrb[0].mxu0
        %2253 = vdwg.mxu0
        %s2254 = scalar_lea.vmem [#allocation12], 64
        %v2255 = vld [vmem:[%s2254] sm:$0xff]
        %v2256 = vld [vmem:[%s2254 + $0x8] sm:$0xff]
        %v2257 = vld [vmem:[%s2254 + $0x10] sm:$0xff]
        %v2258 = vld [vmem:[%s2254 + $0x18] sm:$0xff]
        %s2259 = scalar_lea.vmem [#allocation13], 2
        %v2260 = vld [vmem:[%s2259] sm:$0x1]
        %v2262 = vlaneseq
        %v2263 = vshrl.u32 %v2262, 7
        %v2264 = vsub.s32 0, %v2263
        %v2265 = vrot.slane %v2260, %v2264
        %2267 = vmatprep.subr.mxu0 0.0
        %2268 = vmatpush1.msra.mxu0 %v2255
        %2269 = vmatprep.subr.mxu0 0.0
        %2270 = vmatpush1.msra.mxu0 %v2256
        %2271 = vmatprep.subr.mxu0 0.0
        %2272 = vmatpush1.msra.mxu0 %v2257
        %2273 = vmatprep.subr.mxu0 0.0
        %2274 = vmatpush1.msra.mxu0 %v2258
        %2275 = vmatprep.subr.mxu0 0.0
        %2276 = vmatpush1.msra.mxu0 0.0
        %2277 = vmatprep.subr.mxu0 0.0
        %2278 = vmatpush1.msra.mxu0 0.0
        %2279 = vmatprep.subr.mxu0 0.0
        %2280 = vmatpush1.msra.mxu0 0.0
        %2281 = vmatprep.subr.mxu0 0.0
        %2282 = vmatpush1.msra.mxu0 0.0
        %2283 = vmatprep.subr.mxu0 0.0
        %2284 = vmatpush1.msra.mxu0 0.0
        %2285 = vmatprep.subr.mxu0 0.0
        %2286 = vmatpush1.msra.mxu0 0.0
        %2287 = vmatprep.subr.mxu0 0.0
        %2288 = vmatpush1.msra.mxu0 0.0
        %2289 = vmatprep.subr.mxu0 0.0
        %2290 = vmatpush1.msra.mxu0 0.0
        %2291 = vmatprep.subr.mxu0 0.0
        %2292 = vmatpush1.msra.mxu0 0.0
        %2293 = vmatprep.subr.mxu0 0.0
        %2294 = vmatpush1.msra.mxu0 0.0
        %2295 = vmatprep.subr.mxu0 0.0
        %2296 = vmatpush1.msra.mxu0 0.0
        %2297 = vmatprep.subr.mxu0 0.0
        %2298 = vmatpush1.msra.mxu0 0.0
        %2299 = vmatprep.subr.mxu0 0.0
        %2300 = vmatpush1.msra.mxu0 0.0
        %2301 = vmatprep.subr.mxu0 0.0
        %2302 = vmatpush1.msra.mxu0 0.0
        %2303 = vmatprep.subr.mxu0 0.0
        %2304 = vmatpush1.msra.mxu0 0.0
        %2305 = vmatprep.subr.mxu0 0.0
        %2306 = vmatpush1.msra.mxu0 0.0
        %2307 = vmatprep.subr.mxu0 0.0
        %2308 = vmatpush1.msra.mxu0 0.0
        %2309 = vmatprep.subr.mxu0 0.0
        %2310 = vmatpush1.msra.mxu0 0.0
        %2311 = vmatprep.subr.mxu0 0.0
        %2312 = vmatpush1.msra.mxu0 0.0
        %2313 = vmatprep.subr.mxu0 0.0
        %2314 = vmatpush1.msra.mxu0 0.0
        %2315 = vmatprep.subr.mxu0 0.0
        %2316 = vmatpush1.msra.mxu0 0.0
        %2317 = vmatprep.subr.mxu0 0.0
        %2318 = vmatpush1.msra.mxu0 0.0
        %2319 = vmatprep.subr.mxu0 0.0
        %2320 = vmatpush1.msra.mxu0 0.0
        %2321 = vmatprep.subr.mxu0 0.0
        %2322 = vmatpush1.msra.mxu0 0.0
        %2323 = vmatprep.subr.mxu0 0.0
        %2324 = vmatpush1.msra.mxu0 0.0
        %2325 = vmatprep.subr.mxu0 0.0
        %2326 = vmatpush1.msra.mxu0 0.0
        %2327 = vmatprep.subr.mxu0 0.0
        %2328 = vmatpush1.msra.mxu0 0.0
        %2329 = vmatprep.subr.mxu0 0.0
        %2330 = vmatpush1.msra.mxu0 0.0
        %2331 = vmatprep.mubr.f32.mxu0 0.0
        %2332 = vmatmul.mubr.f32.gmra.mrb[0].mxu0 %v1621
        %v2333 = vpop.f32.mrb[0].mxu0
        %v2334 = vadd.f32 %v2265, %v2333
        %v2335 = vpop.f32.mrb[0].mxu0
        %2336 = vdwg.mxu0
        %v2337 = vmul.f32 %v2334, 0.35355338
        %s2338 = scalar_lea.vmem [#allocation2], 16
        %v2339 = vld [vmem:[%s2338] sm:$0xff]
        %s2340 = scalar_lea.vmem [#allocation3], 16
        %v2341 = vld [vmem:[%s2340] sm:$0xff]
        %v2343 = vsel %vm1696, %v2337, 0
        %v2346 = vsel %vm1696, %v2339, 0
        %2348 = vmatprep.subr.mxu0 0.0
        %2349 = vmatpush1.xpose.msra.mxu0 %v2346
        %2350 = vmatprep.subr.mxu0 0.0
        %2351 = vmatpush1.xpose.msra.mxu0 0.0
        %2352 = vmatprep.subr.mxu0 0.0
        %2353 = vmatpush1.xpose.msra.mxu0 0.0
        %2354 = vmatprep.subr.mxu0 0.0
        %2355 = vmatpush1.xpose.msra.mxu0 0.0
        %2356 = vmatprep.subr.mxu0 0.0
        %2357 = vmatpush1.xpose.msra.mxu0 0.0
        %2358 = vmatprep.subr.mxu0 0.0
        %2359 = vmatpush1.xpose.msra.mxu0 0.0
        %2360 = vmatprep.subr.mxu0 0.0
        %2361 = vmatpush1.xpose.msra.mxu0 0.0
        %2362 = vmatprep.subr.mxu0 0.0
        %2363 = vmatpush1.xpose.msra.mxu0 0.0
        %2364 = vmatprep.subr.mxu0 0.0
        %2365 = vmatpush1.xpose.msra.mxu0 0.0
        %2366 = vmatprep.subr.mxu0 0.0
        %2367 = vmatpush1.xpose.msra.mxu0 0.0
        %2368 = vmatprep.subr.mxu0 0.0
        %2369 = vmatpush1.xpose.msra.mxu0 0.0
        %2370 = vmatprep.subr.mxu0 0.0
        %2371 = vmatpush1.xpose.msra.mxu0 0.0
        %2372 = vmatprep.subr.mxu0 0.0
        %2373 = vmatpush1.xpose.msra.mxu0 0.0
        %2374 = vmatprep.subr.mxu0 0.0
        %2375 = vmatpush1.xpose.msra.mxu0 0.0
        %2376 = vmatprep.subr.mxu0 0.0
        %2377 = vmatpush1.xpose.msra.mxu0 0.0
        %2378 = vmatprep.subr.mxu0 0.0
        %2379 = vmatpush1.xpose.msra.mxu0 0.0
        %2380 = vmatprep.subr.mxu0 0.0
        %2381 = vmatpush1.xpose.msra.mxu0 0.0
        %2382 = vmatprep.subr.mxu0 0.0
        %2383 = vmatpush1.xpose.msra.mxu0 0.0
        %2384 = vmatprep.subr.mxu0 0.0
        %2385 = vmatpush1.xpose.msra.mxu0 0.0
        %2386 = vmatprep.subr.mxu0 0.0
        %2387 = vmatpush1.xpose.msra.mxu0 0.0
        %2388 = vmatprep.subr.mxu0 0.0
        %2389 = vmatpush1.xpose.msra.mxu0 0.0
        %2390 = vmatprep.subr.mxu0 0.0
        %2391 = vmatpush1.xpose.msra.mxu0 0.0
        %2392 = vmatprep.subr.mxu0 0.0
        %2393 = vmatpush1.xpose.msra.mxu0 0.0
        %2394 = vmatprep.subr.mxu0 0.0
        %2395 = vmatpush1.xpose.msra.mxu0 0.0
        %2396 = vmatprep.subr.mxu0 0.0
        %2397 = vmatpush1.xpose.msra.mxu0 0.0
        %2398 = vmatprep.subr.mxu0 0.0
        %2399 = vmatpush1.xpose.msra.mxu0 0.0
        %2400 = vmatprep.subr.mxu0 0.0
        %2401 = vmatpush1.xpose.msra.mxu0 0.0
        %2402 = vmatprep.subr.mxu0 0.0
        %2403 = vmatpush1.xpose.msra.mxu0 0.0
        %2404 = vmatprep.subr.mxu0 0.0
        %2405 = vmatpush1.xpose.msra.mxu0 0.0
        %2406 = vmatprep.subr.mxu0 0.0
        %2407 = vmatpush1.xpose.msra.mxu0 0.0
        %2408 = vmatprep.subr.mxu0 0.0
        %2409 = vmatpush1.xpose.msra.mxu0 0.0
        %2410 = vmatprep.subr.mxu0 0.0
        %2411 = vmatpush1.xpose.msra.mxu0 0.0
        %2412 = vmatprep.mubr.f32.mxu0 0.0
        %2413 = vmatmul.mubr.f32.gmra.mrb[0].mxu0 %v2343
        %v2414 = vpop.f32.mrb[0].mxu0
        %v2415 = vadd.f32 0.0, %v2414
        %v2416 = vpop.f32.mrb[0].mxu0
        %2417 = vdwg.mxu0
        %v2418 = vsel %vm1696, %v2415, -inf
        %2419 = vmax.xlane.f32.xlu0 %v2418
        %v2420 = vpop.xlane.xlu0 %2419
        %v2421 = vsub.f32 %v2415, %v2420
        %v2422 = vmul.f32 %v2421, 1.442695
        %v2423 = vpow.pop %v2422
        %v2424 = vsel %vm1696, %v2423, 0.0
        %2425 = vadd.xlane.f32.xlu0 %v2424
        %v2426 = vpop.xlane.xlu0 %2425
        %v2427 = vrcp.pop %v2426
        %v2428 = vmul.f32 %v2423, %v2427
        %v2430 = vsel %vm1696, %v2428, 0
        %2432 = vmatprep.subr.mxu0 0.0
        %2433 = vmatpush1.msra.mxu0 %v2341
        %2434 = vmatprep.subr.mxu0 0.0
        %2435 = vmatpush1.msra.mxu0 0.0
        %2436 = vmatprep.subr.mxu0 0.0
        %2437 = vmatpush1.msra.mxu0 0.0
        %2438 = vmatprep.subr.mxu0 0.0
        %2439 = vmatpush1.msra.mxu0 0.0
        %2440 = vmatprep.subr.mxu0 0.0
        %2441 = vmatpush1.msra.mxu0 0.0
        %2442 = vmatprep.subr.mxu0 0.0
        %2443 = vmatpush1.msra.mxu0 0.0
        %2444 = vmatprep.subr.mxu0 0.0
        %2445 = vmatpush1.msra.mxu0 0.0
        %2446 = vmatprep.subr.mxu0 0.0
        %2447 = vmatpush1.msra.mxu0 0.0
        %2448 = vmatprep.subr.mxu0 0.0
        %2449 = vmatpush1.msra.mxu0 0.0
        %2450 = vmatprep.subr.mxu0 0.0
        %2451 = vmatpush1.msra.mxu0 0.0
        %2452 = vmatprep.subr.mxu0 0.0
        %2453 = vmatpush1.msra.mxu0 0.0
        %2454 = vmatprep.subr.mxu0 0.0
        %2455 = vmatpush1.msra.mxu0 0.0
        %2456 = vmatprep.subr.mxu0 0.0
        %2457 = vmatpush1.msra.mxu0 0.0
        %2458 = vmatprep.subr.mxu0 0.0
        %2459 = vmatpush1.msra.mxu0 0.0
        %2460 = vmatprep.subr.mxu0 0.0
        %2461 = vmatpush1.msra.mxu0 0.0
        %2462 = vmatprep.subr.mxu0 0.0
        %2463 = vmatpush1.msra.mxu0 0.0
        %2464 = vmatprep.subr.mxu0 0.0
        %2465 = vmatpush1.msra.mxu0 0.0
        %2466 = vmatprep.subr.mxu0 0.0
        %2467 = vmatpush1.msra.mxu0 0.0
        %2468 = vmatprep.subr.mxu0 0.0
        %2469 = vmatpush1.msra.mxu0 0.0
        %2470 = vmatprep.subr.mxu0 0.0
        %2471 = vmatpush1.msra.mxu0 0.0
        %2472 = vmatprep.subr.mxu0 0.0
        %2473 = vmatpush1.msra.mxu0 0.0
        %2474 = vmatprep.subr.mxu0 0.0
        %2475 = vmatpush1.msra.mxu0 0.0
        %2476 = vmatprep.subr.mxu0 0.0
        %2477 = vmatpush1.msra.mxu0 0.0
        %2478 = vmatprep.subr.mxu0 0.0
        %2479 = vmatpush1.msra.mxu0 0.0
        %2480 = vmatprep.subr.mxu0 0.0
        %2481 = vmatpush1.msra.mxu0 0.0
        %2482 = vmatprep.subr.mxu0 0.0
        %2483 = vmatpush1.msra.mxu0 0.0
        %2484 = vmatprep.subr.mxu0 0.0
        %2485 = vmatpush1.msra.mxu0 0.0
        %2486 = vmatprep.subr.mxu0 0.0
        %2487 = vmatpush1.msra.mxu0 0.0
        %2488 = vmatprep.subr.mxu0 0.0
        %2489 = vmatpush1.msra.mxu0 0.0
        %2490 = vmatprep.subr.mxu0 0.0
        %2491 = vmatpush1.msra.mxu0 0.0
        %2492 = vmatprep.subr.mxu0 0.0
        %2493 = vmatpush1.msra.mxu0 0.0
        %2494 = vmatprep.subr.mxu0 0.0
        %2495 = vmatpush1.msra.mxu0 0.0
        %2496 = vmatprep.mubr.f32.mxu0 0.0
        %2497 = vmatmul.mubr.f32.gmra.mrb[0].mxu0 %v2430
        %v2498 = vpop.f32.mrb[0].mxu0
        %v2499 = vadd.f32 0.0, %v2498
        %v2500 = vpop.f32.mrb[0].mxu0
        %2501 = vdwg.mxu0
        %s2502 = scalar_lea.vmem [#allocation21], 16
        %v2503 = vld [vmem:[%s2502] sm:$0xff]
        %v2505 = vsel %vm1696, %v2499, 0
        %2507 = vmatprep.subr.mxu0 0.0
        %2508 = vmatpush1.msra.mxu0 %v2503
        %2509 = vmatprep.subr.mxu0 0.0
        %2510 = vmatpush1.msra.mxu0 0.0
        %2511 = vmatprep.subr.mxu0 0.0
        %2512 = vmatpush1.msra.mxu0 0.0
        %2513 = vmatprep.subr.mxu0 0.0
        %2514 = vmatpush1.msra.mxu0 0.0
        %2515 = vmatprep.subr.mxu0 0.0
        %2516 = vmatpush1.msra.mxu0 0.0
        %2517 = vmatprep.subr.mxu0 0.0
        %2518 = vmatpush1.msra.mxu0 0.0
        %2519 = vmatprep.subr.mxu0 0.0
        %2520 = vmatpush1.msra.mxu0 0.0
        %2521 = vmatprep.subr.mxu0 0.0
        %2522 = vmatpush1.msra.mxu0 0.0
        %2523 = vmatprep.subr.mxu0 0.0
        %2524 = vmatpush1.msra.mxu0 0.0
        %2525 = vmatprep.subr.mxu0 0.0
        %2526 = vmatpush1.msra.mxu0 0.0
        %2527 = vmatprep.subr.mxu0 0.0
        %2528 = vmatpush1.msra.mxu0 0.0
        %2529 = vmatprep.subr.mxu0 0.0
        %2530 = vmatpush1.msra.mxu0 0.0
        %2531 = vmatprep.subr.mxu0 0.0
        %2532 = vmatpush1.msra.mxu0 0.0
        %2533 = vmatprep.subr.mxu0 0.0
        %2534 = vmatpush1.msra.mxu0 0.0
        %2535 = vmatprep.subr.mxu0 0.0
        %2536 = vmatpush1.msra.mxu0 0.0
        %2537 = vmatprep.subr.mxu0 0.0
        %2538 = vmatpush1.msra.mxu0 0.0
        %2539 = vmatprep.subr.mxu0 0.0
        %2540 = vmatpush1.msra.mxu0 0.0
        %2541 = vmatprep.subr.mxu0 0.0
        %2542 = vmatpush1.msra.mxu0 0.0
        %2543 = vmatprep.subr.mxu0 0.0
        %2544 = vmatpush1.msra.mxu0 0.0
        %2545 = vmatprep.subr.mxu0 0.0
        %2546 = vmatpush1.msra.mxu0 0.0
        %2547 = vmatprep.subr.mxu0 0.0
        %2548 = vmatpush1.msra.mxu0 0.0
        %2549 = vmatprep.subr.mxu0 0.0
        %2550 = vmatpush1.msra.mxu0 0.0
        %2551 = vmatprep.subr.mxu0 0.0
        %2552 = vmatpush1.msra.mxu0 0.0
        %2553 = vmatprep.subr.mxu0 0.0
        %2554 = vmatpush1.msra.mxu0 0.0
        %2555 = vmatprep.subr.mxu0 0.0
        %2556 = vmatpush1.msra.mxu0 0.0
        %2557 = vmatprep.subr.mxu0 0.0
        %2558 = vmatpush1.msra.mxu0 0.0
        %2559 = vmatprep.subr.mxu0 0.0
        %2560 = vmatpush1.msra.mxu0 0.0
        %2561 = vmatprep.subr.mxu0 0.0
        %2562 = vmatpush1.msra.mxu0 0.0
        %2563 = vmatprep.subr.mxu0 0.0
        %2564 = vmatpush1.msra.mxu0 0.0
        %2565 = vmatprep.subr.mxu0 0.0
        %2566 = vmatpush1.msra.mxu0 0.0
        %2567 = vmatprep.subr.mxu0 0.0
        %2568 = vmatpush1.msra.mxu0 0.0
        %2569 = vmatprep.subr.mxu0 0.0
        %2570 = vmatpush1.msra.mxu0 0.0
        %2571 = vmatprep.mubr.f32.mxu0 0.0
        %2572 = vmatmul.mubr.f32.gmra.mrb[0].mxu0 %v2505
        %v2573 = vpop.f32.mrb[0].mxu0
        %v2574 = vadd.f32 0.0, %v2573
        %v2575 = vpop.f32.mrb[0].mxu0
        %2576 = vdwg.mxu0
        %v2577 = vadd.f32 %v2251, %v2574
        %s2578 = scalar_lea.vmem [#allocation12], 96
        %v2579 = vld [vmem:[%s2578] sm:$0xff]
        %v2580 = vld [vmem:[%s2578 + $0x8] sm:$0xff]
        %v2581 = vld [vmem:[%s2578 + $0x10] sm:$0xff]
        %v2582 = vld [vmem:[%s2578 + $0x18] sm:$0xff]
        %s2583 = scalar_lea.vmem [#allocation13], 3
        %v2584 = vld [vmem:[%s2583] sm:$0x1]
        %v2586 = vlaneseq
        %v2587 = vshrl.u32 %v2586, 7
        %v2588 = vsub.s32 0, %v2587
        %v2589 = vrot.slane %v2584, %v2588
        %2591 = vmatprep.subr.mxu0 0.0
        %2592 = vmatpush1.msra.mxu0 %v2579
        %2593 = vmatprep.subr.mxu0 0.0
        %2594 = vmatpush1.msra.mxu0 %v2580
        %2595 = vmatprep.subr.mxu0 0.0
        %2596 = vmatpush1.msra.mxu0 %v2581
        %2597 = vmatprep.subr.mxu0 0.0
        %2598 = vmatpush1.msra.mxu0 %v2582
        %2599 = vmatprep.subr.mxu0 0.0
        %2600 = vmatpush1.msra.mxu0 0.0
        %2601 = vmatprep.subr.mxu0 0.0
        %2602 = vmatpush1.msra.mxu0 0.0
        %2603 = vmatprep.subr.mxu0 0.0
        %2604 = vmatpush1.msra.mxu0 0.0
        %2605 = vmatprep.subr.mxu0 0.0
        %2606 = vmatpush1.msra.mxu0 0.0
        %2607 = vmatprep.subr.mxu0 0.0
        %2608 = vmatpush1.msra.mxu0 0.0
        %2609 = vmatprep.subr.mxu0 0.0
        %2610 = vmatpush1.msra.mxu0 0.0
        %2611 = vmatprep.subr.mxu0 0.0
        %2612 = vmatpush1.msra.mxu0 0.0
        %2613 = vmatprep.subr.mxu0 0.0
        %2614 = vmatpush1.msra.mxu0 0.0
        %2615 = vmatprep.subr.mxu0 0.0
        %2616 = vmatpush1.msra.mxu0 0.0
        %2617 = vmatprep.subr.mxu0 0.0
        %2618 = vmatpush1.msra.mxu0 0.0
        %2619 = vmatprep.subr.mxu0 0.0
        %2620 = vmatpush1.msra.mxu0 0.0
        %2621 = vmatprep.subr.mxu0 0.0
        %2622 = vmatpush1.msra.mxu0 0.0
        %2623 = vmatprep.subr.mxu0 0.0
        %2624 = vmatpush1.msra.mxu0 0.0
        %2625 = vmatprep.subr.mxu0 0.0
        %2626 = vmatpush1.msra.mxu0 0.0
        %2627 = vmatprep.subr.mxu0 0.0
        %2628 = vmatpush1.msra.mxu0 0.0
        %2629 = vmatprep.subr.mxu0 0.0
        %2630 = vmatpush1.msra.mxu0 0.0
        %2631 = vmatprep.subr.mxu0 0.0
        %2632 = vmatpush1.msra.mxu0 0.0
        %2633 = vmatprep.subr.mxu0 0.0
        %2634 = vmatpush1.msra.mxu0 0.0
        %2635 = vmatprep.subr.mxu0 0.0
        %2636 = vmatpush1.msra.mxu0 0.0
        %2637 = vmatprep.subr.mxu0 0.0
        %2638 = vmatpush1.msra.mxu0 0.0
        %2639 = vmatprep.subr.mxu0 0.0
        %2640 = vmatpush1.msra.mxu0 0.0
        %2641 = vmatprep.subr.mxu0 0.0
        %2642 = vmatpush1.msra.mxu0 0.0
        %2643 = vmatprep.subr.mxu0 0.0
        %2644 = vmatpush1.msra.mxu0 0.0
        %2645 = vmatprep.subr.mxu0 0.0
        %2646 = vmatpush1.msra.mxu0 0.0
        %2647 = vmatprep.subr.mxu0 0.0
        %2648 = vmatpush1.msra.mxu0 0.0
        %2649 = vmatprep.subr.mxu0 0.0
        %2650 = vmatpush1.msra.mxu0 0.0
        %2651 = vmatprep.subr.mxu0 0.0
        %2652 = vmatpush1.msra.mxu0 0.0
        %2653 = vmatprep.subr.mxu0 0.0
        %2654 = vmatpush1.msra.mxu0 0.0
        %2655 = vmatprep.mubr.f32.mxu0 0.0
        %2656 = vmatmul.mubr.f32.gmra.mrb[0].mxu0 %v1621
        %v2657 = vpop.f32.mrb[0].mxu0
        %v2658 = vadd.f32 %v2589, %v2657
        %v2659 = vpop.f32.mrb[0].mxu0
        %2660 = vdwg.mxu0
        %v2661 = vmul.f32 %v2658, 0.35355338
        %s2662 = scalar_lea.vmem [#allocation2], 24
        %v2663 = vld [vmem:[%s2662] sm:$0xff]
        %s2664 = scalar_lea.vmem [#allocation3], 24
        %v2665 = vld [vmem:[%s2664] sm:$0xff]
        %v2667 = vsel %vm1696, %v2661, 0
        %v2670 = vsel %vm1696, %v2663, 0
        %2672 = vmatprep.subr.mxu0 0.0
        %2673 = vmatpush1.xpose.msra.mxu0 %v2670
        %2674 = vmatprep.subr.mxu0 0.0
        %2675 = vmatpush1.xpose.msra.mxu0 0.0
        %2676 = vmatprep.subr.mxu0 0.0
        %2677 = vmatpush1.xpose.msra.mxu0 0.0
        %2678 = vmatprep.subr.mxu0 0.0
        %2679 = vmatpush1.xpose.msra.mxu0 0.0
        %2680 = vmatprep.subr.mxu0 0.0
        %2681 = vmatpush1.xpose.msra.mxu0 0.0
        %2682 = vmatprep.subr.mxu0 0.0
        %2683 = vmatpush1.xpose.msra.mxu0 0.0
        %2684 = vmatprep.subr.mxu0 0.0
        %2685 = vmatpush1.xpose.msra.mxu0 0.0
        %2686 = vmatprep.subr.mxu0 0.0
        %2687 = vmatpush1.xpose.msra.mxu0 0.0
        %2688 = vmatprep.subr.mxu0 0.0
        %2689 = vmatpush1.xpose.msra.mxu0 0.0
        %2690 = vmatprep.subr.mxu0 0.0
        %2691 = vmatpush1.xpose.msra.mxu0 0.0
        %2692 = vmatprep.subr.mxu0 0.0
        %2693 = vmatpush1.xpose.msra.mxu0 0.0
        %2694 = vmatprep.subr.mxu0 0.0
        %2695 = vmatpush1.xpose.msra.mxu0 0.0
        %2696 = vmatprep.subr.mxu0 0.0
        %2697 = vmatpush1.xpose.msra.mxu0 0.0
        %2698 = vmatprep.subr.mxu0 0.0
        %2699 = vmatpush1.xpose.msra.mxu0 0.0
        %2700 = vmatprep.subr.mxu0 0.0
        %2701 = vmatpush1.xpose.msra.mxu0 0.0
        %2702 = vmatprep.subr.mxu0 0.0
        %2703 = vmatpush1.xpose.msra.mxu0 0.0
        %2704 = vmatprep.subr.mxu0 0.0
        %2705 = vmatpush1.xpose.msra.mxu0 0.0
        %2706 = vmatprep.subr.mxu0 0.0
        %2707 = vmatpush1.xpose.msra.mxu0 0.0
        %2708 = vmatprep.subr.mxu0 0.0
        %2709 = vmatpush1.xpose.msra.mxu0 0.0
        %2710 = vmatprep.subr.mxu0 0.0
        %2711 = vmatpush1.xpose.msra.mxu0 0.0
        %2712 = vmatprep.subr.mxu0 0.0
        %2713 = vmatpush1.xpose.msra.mxu0 0.0
        %2714 = vmatprep.subr.mxu0 0.0
        %2715 = vmatpush1.xpose.msra.mxu0 0.0
        %2716 = vmatprep.subr.mxu0 0.0
        %2717 = vmatpush1.xpose.msra.mxu0 0.0
        %2718 = vmatprep.subr.mxu0 0.0
        %2719 = vmatpush1.xpose.msra.mxu0 0.0
        %2720 = vmatprep.subr.mxu0 0.0
        %2721 = vmatpush1.xpose.msra.mxu0 0.0
        %2722 = vmatprep.subr.mxu0 0.0
        %2723 = vmatpush1.xpose.msra.mxu0 0.0
        %2724 = vmatprep.subr.mxu0 0.0
        %2725 = vmatpush1.xpose.msra.mxu0 0.0
        %2726 = vmatprep.subr.mxu0 0.0
        %2727 = vmatpush1.xpose.msra.mxu0 0.0
        %2728 = vmatprep.subr.mxu0 0.0
        %2729 = vmatpush1.xpose.msra.mxu0 0.0
        %2730 = vmatprep.subr.mxu0 0.0
        %2731 = vmatpush1.xpose.msra.mxu0 0.0
        %2732 = vmatprep.subr.mxu0 0.0
        %2733 = vmatpush1.xpose.msra.mxu0 0.0
        %2734 = vmatprep.subr.mxu0 0.0
        %2735 = vmatpush1.xpose.msra.mxu0 0.0
        %2736 = vmatprep.mubr.f32.mxu0 0.0
        %2737 = vmatmul.mubr.f32.gmra.mrb[0].mxu0 %v2667
        %v2738 = vpop.f32.mrb[0].mxu0
        %v2739 = vadd.f32 0.0, %v2738
        %v2740 = vpop.f32.mrb[0].mxu0
        %2741 = vdwg.mxu0
        %v2742 = vsel %vm1696, %v2739, -inf
        %2743 = vmax.xlane.f32.xlu0 %v2742
        %v2744 = vpop.xlane.xlu0 %2743
        %v2745 = vsub.f32 %v2739, %v2744
        %v2746 = vmul.f32 %v2745, 1.442695
        %v2747 = vpow.pop %v2746
        %v2748 = vsel %vm1696, %v2747, 0.0
        %2749 = vadd.xlane.f32.xlu0 %v2748
        %v2750 = vpop.xlane.xlu0 %2749
        %v2751 = vrcp.pop %v2750
        %v2752 = vmul.f32 %v2747, %v2751
        %v2754 = vsel %vm1696, %v2752, 0
        %2756 = vmatprep.subr.mxu0 0.0
        %2757 = vmatpush1.msra.mxu0 %v2665
        %2758 = vmatprep.subr.mxu0 0.0
        %2759 = vmatpush1.msra.mxu0 0.0
        %2760 = vmatprep.subr.mxu0 0.0
        %2761 = vmatpush1.msra.mxu0 0.0
        %2762 = vmatprep.subr.mxu0 0.0
        %2763 = vmatpush1.msra.mxu0 0.0
        %2764 = vmatprep.subr.mxu0 0.0
        %2765 = vmatpush1.msra.mxu0 0.0
        %2766 = vmatprep.subr.mxu0 0.0
        %2767 = vmatpush1.msra.mxu0 0.0
        %2768 = vmatprep.subr.mxu0 0.0
        %2769 = vmatpush1.msra.mxu0 0.0
        %2770 = vmatprep.subr.mxu0 0.0
        %2771 = vmatpush1.msra.mxu0 0.0
        %2772 = vmatprep.subr.mxu0 0.0
        %2773 = vmatpush1.msra.mxu0 0.0
        %2774 = vmatprep.subr.mxu0 0.0
        %2775 = vmatpush1.msra.mxu0 0.0
        %2776 = vmatprep.subr.mxu0 0.0
        %2777 = vmatpush1.msra.mxu0 0.0
        %2778 = vmatprep.subr.mxu0 0.0
        %2779 = vmatpush1.msra.mxu0 0.0
        %2780 = vmatprep.subr.mxu0 0.0
        %2781 = vmatpush1.msra.mxu0 0.0
        %2782 = vmatprep.subr.mxu0 0.0
        %2783 = vmatpush1.msra.mxu0 0.0
        %2784 = vmatprep.subr.mxu0 0.0
        %2785 = vmatpush1.msra.mxu0 0.0
        %2786 = vmatprep.subr.mxu0 0.0
        %2787 = vmatpush1.msra.mxu0 0.0
        %2788 = vmatprep.subr.mxu0 0.0
        %2789 = vmatpush1.msra.mxu0 0.0
        %2790 = vmatprep.subr.mxu0 0.0
        %2791 = vmatpush1.msra.mxu0 0.0
        %2792 = vmatprep.subr.mxu0 0.0
        %2793 = vmatpush1.msra.mxu0 0.0
        %2794 = vmatprep.subr.mxu0 0.0
        %2795 = vmatpush1.msra.mxu0 0.0
        %2796 = vmatprep.subr.mxu0 0.0
        %2797 = vmatpush1.msra.mxu0 0.0
        %2798 = vmatprep.subr.mxu0 0.0
        %2799 = vmatpush1.msra.mxu0 0.0
        %2800 = vmatprep.subr.mxu0 0.0
        %2801 = vmatpush1.msra.mxu0 0.0
        %2802 = vmatprep.subr.mxu0 0.0
        %2803 = vmatpush1.msra.mxu0 0.0
        %2804 = vmatprep.subr.mxu0 0.0
        %2805 = vmatpush1.msra.mxu0 0.0
        %2806 = vmatprep.subr.mxu0 0.0
        %2807 = vmatpush1.msra.mxu0 0.0
        %2808 = vmatprep.subr.mxu0 0.0
        %2809 = vmatpush1.msra.mxu0 0.0
        %2810 = vmatprep.subr.mxu0 0.0
        %2811 = vmatpush1.msra.mxu0 0.0
        %2812 = vmatprep.subr.mxu0 0.0
        %2813 = vmatpush1.msra.mxu0 0.0
        %2814 = vmatprep.subr.mxu0 0.0
        %2815 = vmatpush1.msra.mxu0 0.0
        %2816 = vmatprep.subr.mxu0 0.0
        %2817 = vmatpush1.msra.mxu0 0.0
        %2818 = vmatprep.subr.mxu0 0.0
        %2819 = vmatpush1.msra.mxu0 0.0
        %2820 = vmatprep.mubr.f32.mxu0 0.0
        %2821 = vmatmul.mubr.f32.gmra.mrb[0].mxu0 %v2754
        %v2822 = vpop.f32.mrb[0].mxu0
        %v2823 = vadd.f32 0.0, %v2822
        %v2824 = vpop.f32.mrb[0].mxu0
        %2825 = vdwg.mxu0
        %s2826 = scalar_lea.vmem [#allocation21], 24
        %v2827 = vld [vmem:[%s2826] sm:$0xff]
        %v2829 = vsel %vm1696, %v2823, 0
        %2831 = vmatprep.subr.mxu0 0.0
        %2832 = vmatpush1.msra.mxu0 %v2827
        %2833 = vmatprep.subr.mxu0 0.0
        %2834 = vmatpush1.msra.mxu0 0.0
        %2835 = vmatprep.subr.mxu0 0.0
        %2836 = vmatpush1.msra.mxu0 0.0
        %2837 = vmatprep.subr.mxu0 0.0
        %2838 = vmatpush1.msra.mxu0 0.0
        %2839 = vmatprep.subr.mxu0 0.0
        %2840 = vmatpush1.msra.mxu0 0.0
        %2841 = vmatprep.subr.mxu0 0.0
        %2842 = vmatpush1.msra.mxu0 0.0
        %2843 = vmatprep.subr.mxu0 0.0
        %2844 = vmatpush1.msra.mxu0 0.0
        %2845 = vmatprep.subr.mxu0 0.0
        %2846 = vmatpush1.msra.mxu0 0.0
        %2847 = vmatprep.subr.mxu0 0.0
        %2848 = vmatpush1.msra.mxu0 0.0
        %2849 = vmatprep.subr.mxu0 0.0
        %2850 = vmatpush1.msra.mxu0 0.0
        %2851 = vmatprep.subr.mxu0 0.0
        %2852 = vmatpush1.msra.mxu0 0.0
        %2853 = vmatprep.subr.mxu0 0.0
        %2854 = vmatpush1.msra.mxu0 0.0
        %2855 = vmatprep.subr.mxu0 0.0
        %2856 = vmatpush1.msra.mxu0 0.0
        %2857 = vmatprep.subr.mxu0 0.0
        %2858 = vmatpush1.msra.mxu0 0.0
        %2859 = vmatprep.subr.mxu0 0.0
        %2860 = vmatpush1.msra.mxu0 0.0
        %2861 = vmatprep.subr.mxu0 0.0
        %2862 = vmatpush1.msra.mxu0 0.0
        %2863 = vmatprep.subr.mxu0 0.0
        %2864 = vmatpush1.msra.mxu0 0.0
        %2865 = vmatprep.subr.mxu0 0.0
        %2866 = vmatpush1.msra.mxu0 0.0
        %2867 = vmatprep.subr.mxu0 0.0
        %2868 = vmatpush1.msra.mxu0 0.0
        %2869 = vmatprep.subr.mxu0 0.0
        %2870 = vmatpush1.msra.mxu0 0.0
        %2871 = vmatprep.subr.mxu0 0.0
        %2872 = vmatpush1.msra.mxu0 0.0
        %2873 = vmatprep.subr.mxu0 0.0
        %2874 = vmatpush1.msra.mxu0 0.0
        %2875 = vmatprep.subr.mxu0 0.0
        %2876 = vmatpush1.msra.mxu0 0.0
        %2877 = vmatprep.subr.mxu0 0.0
        %2878 = vmatpush1.msra.mxu0 0.0
        %2879 = vmatprep.subr.mxu0 0.0
        %2880 = vmatpush1.msra.mxu0 0.0
        %2881 = vmatprep.subr.mxu0 0.0
        %2882 = vmatpush1.msra.mxu0 0.0
        %2883 = vmatprep.subr.mxu0 0.0
        %2884 = vmatpush1.msra.mxu0 0.0
        %2885 = vmatprep.subr.mxu0 0.0
        %2886 = vmatpush1.msra.mxu0 0.0
        %2887 = vmatprep.subr.mxu0 0.0
        %2888 = vmatpush1.msra.mxu0 0.0
        %2889 = vmatprep.subr.mxu0 0.0
        %2890 = vmatpush1.msra.mxu0 0.0
        %2891 = vmatprep.subr.mxu0 0.0
        %2892 = vmatpush1.msra.mxu0 0.0
        %2893 = vmatprep.subr.mxu0 0.0
        %2894 = vmatpush1.msra.mxu0 0.0
        %2895 = vmatprep.mubr.f32.mxu0 0.0
        %2896 = vmatmul.mubr.f32.gmra.mrb[0].mxu0 %v2829
        %v2897 = vpop.f32.mrb[0].mxu0
        %v2898 = vadd.f32 0.0, %v2897
        %v2899 = vpop.f32.mrb[0].mxu0
        %2900 = vdwg.mxu0
        %v2901 = vadd.f32 %v2577, %v2898
        %v2902 = vadd.f32 %v1577, %v2901
        %v2903 = vld [vmem:[#allocation22] sm:$0x1]
        %v2905 = vlaneseq
        %v2906 = vshrl.u32 %v2905, 7
        %v2907 = vsub.s32 0, %v2906
        %v2908 = vrot.slane %v2903, %v2907
        %v2910 = vadd.f32 %v2902, %v2908
        %v2911 = vld [vmem:[#allocation24] sm:$0x1]
        %v2912 = vld [vmem:[#allocation25] sm:$0x1]
        %v2913 = vsel %vm1580, %v2910, 0.0
        %2914 = vadd.xlane.f32.xlu0 %v2913
        %v2915 = vpop.xlane.xlu0 %2914
        %v2916 = vmul.f32 %v2915, %v1584
        %v2917 = vsub.f32 %v2910, %v2916
        %v2918 = vmul.f32 %v2917, %v2917
        %v2919 = vsel %vm1580, %v2918, 0.0
        %2920 = vadd.xlane.f32.xlu0 %v2919
        %v2921 = vpop.xlane.xlu0 %2920
        %v2922 = vmul.f32 %v2921, %v1584
        %v2923 = vadd.f32 %v2922, 1e-05
        %v2924 = vrsqrt.pop %v2923
        %v2925 = vmul.f32 %v2917, %v2924
        %v2927 = vlaneseq
        %v2928 = vshrl.u32 %v2927, 7
        %v2929 = vsub.s32 0, %v2928
        %v2930 = vrot.slane %v2911, %v2929
        %v2932 = vmul.f32 %v2925, %v2930
        %v2934 = vlaneseq
        %v2935 = vshrl.u32 %v2934, 7
        %v2936 = vsub.s32 0, %v2935
        %v2937 = vrot.slane %v2912, %v2936
        %v2939 = vadd.f32 %v2932, %v2937
        %v2940 = vld [vmem:[#allocation27] sm:$0xff]
        %v2941 = vld [vmem:[#allocation27 + $0x8] sm:$0xff]
        %v2942 = vld [vmem:[#allocation27 + $0x10] sm:$0xff]
        %v2943 = vld [vmem:[#allocation27 + $0x18] sm:$0xff]
        %v2944 = vld [vmem:[#allocation28] sm:$0x1]
        %v2946 = vlaneseq
        %v2947 = vshrl.u32 %v2946, 7
        %v2948 = vsub.s32 0, %v2947
        %v2949 = vrot.slane %v2944, %v2948
        %v2952 = vsel %vm1580, %v2939, 0
        %2954 = vmatprep.subr.mxu0 0.0
        %2955 = vmatpush1.msra.mxu0 %v2940
        %2956 = vmatprep.subr.mxu0 0.0
        %2957 = vmatpush1.msra.mxu0 %v2941
        %2958 = vmatprep.subr.mxu0 0.0
        %2959 = vmatpush1.msra.mxu0 %v2942
        %2960 = vmatprep.subr.mxu0 0.0
        %2961 = vmatpush1.msra.mxu0 %v2943
        %2962 = vmatprep.subr.mxu0 0.0
        %2963 = vmatpush1.msra.mxu0 0.0
        %2964 = vmatprep.subr.mxu0 0.0
        %2965 = vmatpush1.msra.mxu0 0.0
        %2966 = vmatprep.subr.mxu0 0.0
        %2967 = vmatpush1.msra.mxu0 0.0
        %2968 = vmatprep.subr.mxu0 0.0
        %2969 = vmatpush1.msra.mxu0 0.0
        %2970 = vmatprep.subr.mxu0 0.0
        %2971 = vmatpush1.msra.mxu0 0.0
        %2972 = vmatprep.subr.mxu0 0.0
        %2973 = vmatpush1.msra.mxu0 0.0
        %2974 = vmatprep.subr.mxu0 0.0
        %2975 = vmatpush1.msra.mxu0 0.0
        %2976 = vmatprep.subr.mxu0 0.0
        %2977 = vmatpush1.msra.mxu0 0.0
        %2978 = vmatprep.subr.mxu0 0.0
        %2979 = vmatpush1.msra.mxu0 0.0
        %2980 = vmatprep.subr.mxu0 0.0
        %2981 = vmatpush1.msra.mxu0 0.0
        %2982 = vmatprep.subr.mxu0 0.0
        %2983 = vmatpush1.msra.mxu0 0.0
        %2984 = vmatprep.subr.mxu0 0.0
        %2985 = vmatpush1.msra.mxu0 0.0
        %2986 = vmatprep.subr.mxu0 0.0
        %2987 = vmatpush1.msra.mxu0 0.0
        %2988 = vmatprep.subr.mxu0 0.0
        %2989 = vmatpush1.msra.mxu0 0.0
        %2990 = vmatprep.subr.mxu0 0.0
        %2991 = vmatpush1.msra.mxu0 0.0
        %2992 = vmatprep.subr.mxu0 0.0
        %2993 = vmatpush1.msra.mxu0 0.0
        %2994 = vmatprep.subr.mxu0 0.0
        %2995 = vmatpush1.msra.mxu0 0.0
        %2996 = vmatprep.subr.mxu0 0.0
        %2997 = vmatpush1.msra.mxu0 0.0
        %2998 = vmatprep.subr.mxu0 0.0
        %2999 = vmatpush1.msra.mxu0 0.0
        %3000 = vmatprep.subr.mxu0 0.0
        %3001 = vmatpush1.msra.mxu0 0.0
        %3002 = vmatprep.subr.mxu0 0.0
        %3003 = vmatpush1.msra.mxu0 0.0
        %3004 = vmatprep.subr.mxu0 0.0
        %3005 = vmatpush1.msra.mxu0 0.0
        %3006 = vmatprep.subr.mxu0 0.0
        %3007 = vmatpush1.msra.mxu0 0.0
        %3008 = vmatprep.subr.mxu0 0.0
        %3009 = vmatpush1.msra.mxu0 0.0
        %3010 = vmatprep.subr.mxu0 0.0
        %3011 = vmatpush1.msra.mxu0 0.0
        %3012 = vmatprep.subr.mxu0 0.0
        %3013 = vmatpush1.msra.mxu0 0.0
        %3014 = vmatprep.subr.mxu0 0.0
        %3015 = vmatpush1.msra.mxu0 0.0
        %3016 = vmatprep.subr.mxu0 0.0
        %3017 = vmatpush1.msra.mxu0 0.0
        %3018 = vmatprep.mubr.f32.mxu0 0.0
        %3019 = vmatmul.mubr.f32.gmra.mrb[0].mxu0 %v2952
        %v3020 = vpop.f32.mrb[0].mxu0
        %v3021 = vadd.f32 %v2949, %v3020
        %v3022 = vpop.f32.mrb[0].mxu0
        %3023 = vdwg.mxu0
        %v3024 = vmul.f32 %v3021, 0.5
        %v3025 = vmul.f32 %v3021, 0.70710677
        %v3026 = verf.f32.pop %v3025
        %v3027 = vadd.f32 %v3026, 1.0
        %v3028 = vmul.f32 %v3024, %v3027
        %v3029 = vld [vmem:[#allocation30] sm:$0xff]
        %v3030 = vld [vmem:[#allocation30 + $0x8] sm:$0xff]
        %v3031 = vld [vmem:[#allocation30 + $0x10] sm:$0xff]
        %v3032 = vld [vmem:[#allocation30 + $0x18] sm:$0xff]
        %v3033 = vld [vmem:[#allocation30 + $0x20] sm:$0xff]
        %v3034 = vld [vmem:[#allocation30 + $0x28] sm:$0xff]
        %v3035 = vld [vmem:[#allocation30 + $0x30] sm:$0xff]
        %v3036 = vld [vmem:[#allocation30 + $0x38] sm:$0xff]
        %v3037 = vld [vmem:[#allocation30 + $0x40] sm:$0xff]
        %v3038 = vld [vmem:[#allocation30 + $0x48] sm:$0xff]
        %v3039 = vld [vmem:[#allocation30 + $0x50] sm:$0xff]
        %v3040 = vld [vmem:[#allocation30 + $0x58] sm:$0xff]
        %v3041 = vld [vmem:[#allocation30 + $0x60] sm:$0xff]
        %v3042 = vld [vmem:[#allocation30 + $0x68] sm:$0xff]
        %v3043 = vld [vmem:[#allocation30 + $0x70] sm:$0xff]
        %v3044 = vld [vmem:[#allocation30 + $0x78] sm:$0xff]
        %v3045 = vld [vmem:[#allocation31] sm:$0x1]
        %v3047 = vlaneseq
        %v3048 = vshrl.u32 %v3047, 7
        %v3049 = vsub.s32 0, %v3048
        %v3050 = vrot.slane %v3045, %v3049
        %3052 = vmatprep.subr.mxu0 0.0
        %3053 = vmatpush1.msra.mxu0 %v3029
        %3054 = vmatprep.subr.mxu0 0.0
        %3055 = vmatpush1.msra.mxu0 %v3030
        %3056 = vmatprep.subr.mxu0 0.0
        %3057 = vmatpush1.msra.mxu0 %v3031
        %3058 = vmatprep.subr.mxu0 0.0
        %3059 = vmatpush1.msra.mxu0 %v3032
        %3060 = vmatprep.subr.mxu0 0.0
        %3061 = vmatpush1.msra.mxu0 %v3033
        %3062 = vmatprep.subr.mxu0 0.0
        %3063 = vmatpush1.msra.mxu0 %v3034
        %3064 = vmatprep.subr.mxu0 0.0
        %3065 = vmatpush1.msra.mxu0 %v3035
        %3066 = vmatprep.subr.mxu0 0.0
        %3067 = vmatpush1.msra.mxu0 %v3036
        %3068 = vmatprep.subr.mxu0 0.0
        %3069 = vmatpush1.msra.mxu0 %v3037
        %3070 = vmatprep.subr.mxu0 0.0
        %3071 = vmatpush1.msra.mxu0 %v3038
        %3072 = vmatprep.subr.mxu0 0.0
        %3073 = vmatpush1.msra.mxu0 %v3039
        %3074 = vmatprep.subr.mxu0 0.0
        %3075 = vmatpush1.msra.mxu0 %v3040
        %3076 = vmatprep.subr.mxu0 0.0
        %3077 = vmatpush1.msra.mxu0 %v3041
        %3078 = vmatprep.subr.mxu0 0.0
        %3079 = vmatpush1.msra.mxu0 %v3042
        %3080 = vmatprep.subr.mxu0 0.0
        %3081 = vmatpush1.msra.mxu0 %v3043
        %3082 = vmatprep.subr.mxu0 0.0
        %3083 = vmatpush1.msra.mxu0 %v3044
        %3084 = vmatprep.subr.mxu0 0.0
        %3085 = vmatpush1.msra.mxu0 0.0
        %3086 = vmatprep.subr.mxu0 0.0
        %3087 = vmatpush1.msra.mxu0 0.0
        %3088 = vmatprep.subr.mxu0 0.0
        %3089 = vmatpush1.msra.mxu0 0.0
        %3090 = vmatprep.subr.mxu0 0.0
        %3091 = vmatpush1.msra.mxu0 0.0
        %3092 = vmatprep.subr.mxu0 0.0
        %3093 = vmatpush1.msra.mxu0 0.0
        %3094 = vmatprep.subr.mxu0 0.0
        %3095 = vmatpush1.msra.mxu0 0.0
        %3096 = vmatprep.subr.mxu0 0.0
        %3097 = vmatpush1.msra.mxu0 0.0
        %3098 = vmatprep.subr.mxu0 0.0
        %3099 = vmatpush1.msra.mxu0 0.0
        %3100 = vmatprep.subr.mxu0 0.0
        %3101 = vmatpush1.msra.mxu0 0.0
        %3102 = vmatprep.subr.mxu0 0.0
        %3103 = vmatpush1.msra.mxu0 0.0
        %3104 = vmatprep.subr.mxu0 0.0
        %3105 = vmatpush1.msra.mxu0 0.0
        %3106 = vmatprep.subr.mxu0 0.0
        %3107 = vmatpush1.msra.mxu0 0.0
        %3108 = vmatprep.subr.mxu0 0.0
        %3109 = vmatpush1.msra.mxu0 0.0
        %3110 = vmatprep.subr.mxu0 0.0
        %3111 = vmatpush1.msra.mxu0 0.0
        %3112 = vmatprep.subr.mxu0 0.0
        %3113 = vmatpush1.msra.mxu0 0.0
        %3114 = vmatprep.subr.mxu0 0.0
        %3115 = vmatpush1.msra.mxu0 0.0
        %3116 = vmatprep.mubr.f32.mxu0 0.0
        %3117 = vmatmul.mubr.f32.gmra.mrb[0].mxu0 %v3028
        %v3118 = vpop.f32.mrb[0].mxu0
        %v3119 = vadd.f32 %v3050, %v3118
        %v3120 = vpop.f32.mrb[0].mxu0
        %3121 = vdwg.mxu0
        %v3122 = vadd.f32 %v2910, %v3119
        %3123 = vst.msk [vmem:[%s862] sm:$0xff] %vm1580, %v3122
        %s3124 = sand.u32 %s458, 1
        %s3125 = scalar_lea.sflag [#allocation6], %s3124
        %s3126 = sand.u32 %s458, 1
        %s3127 = smul.addr %s3126, 8
        %s3128 = scalar_lea.vmem [#allocation33], %s3127
        // Predicated region
        $region169: #{tpu_custom_call.1} parent=91 // pred_check
          %p3129 = pneg %p468
        $region170: #{tpu_custom_call.1} parent=91 // pred_check_branch
          %3131 = sbr.rel (%p3129) target = $region172
        $region171: #{tpu_custom_call.1} parent=91 // pred_region
          %s3133 = ssub.s32 128, 128
          %3134 = vsyncadd %s3125, %s3133
          %s3135 = sadd.s32 %s51, %s50
          %s3136 = smul.addr %s3135, 128
          %s3137 = scalar_lea.hbm %s18, %s3136
          %s3139 = sshll.u32 %s3128, 4
          %s3140 = int_to_ptr.vmem [resolvable:$true] %s3139
          %3142 = dma.vmem_to_hbm [thread:$0]  %s3140, 128, %s3137, %s3125
        $region172: #{tpu_custom_call.1} parent=91 // pred_fallthru
          _
      $region92: #{tpu_custom_call.1} parent=5 // pred_fallthru
        _
      %p3143 = scmp.le.s32.totalorder 2, %s41
      // Predicated region
      $region173: #{tpu_custom_call.1} parent=5 // pred_check
        %p3144 = pneg %p3143
      $region174: #{tpu_custom_call.1} parent=5 // pred_check_branch
        %3146 = sbr.rel (%p3144) target = $region176
      $region175: #{tpu_custom_call.1} parent=5 // pred_region
        %s3147 = ssub.s32 %s41, 2
        // Predicated region
        $region177: #{tpu_custom_call.1} parent=175 // pred_check
          %p3148 = pneg %p474
        $region178: #{tpu_custom_call.1} parent=175 // pred_check_branch
          %3150 = sbr.rel (%p3148) target = $region180
        $region179: #{tpu_custom_call.1} parent=175 // pred_region
          %s3151 = sand.u32 %s459, 1
          %s3152 = scalar_lea.sflag [#allocation6], %s3151
          %s3153 = sand.u32 %s459, 1
          %s3154 = smul.addr %s3153, 8
          %s3155 = scalar_lea.vmem [#allocation33], %s3154
          %3156 = dma.done %s3152, 128
        $region180: #{tpu_custom_call.1} parent=175 // pred_fallthru
          _
      $region176: #{tpu_custom_call.1} parent=5 // pred_fallthru
        _
    $region6: #{tpu_custom_call.1} parent=1 // loop_footer
      %s45 = sadd.s32 1, %s41
    $region7: #{tpu_custom_call.1} parent=1 // loop_footer_branch
      %40 = sbr.rel target = $region3
    $region8: #{tpu_custom_call.1} parent=1 // loop_exit
      _
    %3157 = vsyncpa [#allocation5], 1
    %s3158 = scalar_lea.sflag [#allocation5], 1
    %3159 = vsyncpa %s3158, 1
    %3160 = vsyncpa [#allocation8], 1
    %s3161 = scalar_lea.sflag [#allocation8], 1
    %3162 = vsyncpa %s3161, 1
    %3163 = vsyncpa [#allocation11], 1
    %3164 = vsyncpa [#allocation14], 1
    %3165 = vsyncpa [#allocation17], 1
    %3166 = vsyncpa [#allocation20], 1
    %3167 = vsyncpa [#allocation23], 1
    %3168 = vsyncpa [#allocation26], 1
    %3169 = vsyncpa [#allocation29], 1
    %3170 = vsyncpa [#allocation32], 1
    %3171 = vsyncpa [#allocation6], 1
    %s3172 = scalar_lea.sflag [#allocation6], 1
    %3173 = vsyncpa %s3172, 1

</llo_original>
